<compile_context>
chip_gen: v5e
topology: v5e:2x2
jax: 0.10.0
libtpu: 0.0.40
codegen_flags: <defaults>
</compile_context>

<pallas_src>
import math
import jax
import jax.numpy as jnp
from jax.experimental import pallas as pl
from jax.experimental.pallas import tpu as pltpu

# ---- model config (small, consistent with the module) ----
N_EMBD = 32
N_HEAD = 4
HEAD_DIM = N_EMBD // N_HEAD
N_LAYER = 2
VOCAB_SIZE = 32
SQUARES_SIZE = 16     # max board-token sequence length (block size)
SPECIAL_SIZE = 4
POLICY_OUT = 1968
POLICY_PAD = 2048     # lane-dense (multiple of 128) padded head width
LN_EPS = 1e-5


def _layernorm(x, w, b):
    mu = jnp.mean(x, axis=-1, keepdims=True)
    var = jnp.mean((x - mu) ** 2, axis=-1, keepdims=True)
    return (x - mu) * jax.lax.rsqrt(var + LN_EPS) * w + b


def _gelu_exact(x):
    # nn.GELU() default = exact erf-based GELU
    return 0.5 * x * (1.0 + jax.lax.erf(x * (1.0 / math.sqrt(2.0))))


# ---------------- fused whole-model kernel (batch-0 rows only) ----------------
def _chess_fused_kernel(x_ref,
                        ln1w, ln1b, wq, bq, wkt, bkt, wv, bv, wproj, bproj,
                        ln2w, ln2b, wfc, bfc, wfc2, bfc2,
                        lnfw, lnfb, wp, bp, out_ref):
    # x_ref : (S, C) f32 — batch-0 activations only (other batches are dead work)
    # weights stacked on a leading L axis; matmul weights are bf16
    # out_ref : (S, POLICY_PAD) f32 policy logits (padded to 2048 lanes)
    x = x_ref[...]                                   # (S, C) f32

    for l in range(N_LAYER):                         # static unroll (L = 2)
        # --- attention branch (pre-LN) ---
        h = _layernorm(x, ln1w[l], ln1b[l])
        hb = h.astype(jnp.bfloat16)

        # 1/sqrt(head_dim) is pre-folded into wq / bq (host-side, free).
        q = jnp.dot(hb, wq[l], preferred_element_type=jnp.float32) + bq[l]      # (S, C)
        # K^T computed directly as Wk^T @ h^T via dot_general — one op per layer,
        # so per-head K slices below are sublane-aligned row slices.
        kt = jax.lax.dot_general(wkt[l], hb, (((1,), (1,)), ((), ())),
                                 preferred_element_type=jnp.float32) + bkt[l]    # (C, S)
        v = jnp.dot(hb, wv[l], preferred_element_type=jnp.float32) + bv[l]       # (S, C)

        qb = q.astype(jnp.bfloat16)
        ktb = kt.astype(jnp.bfloat16)
        vb = v.astype(jnp.bfloat16)

        heads = []
        for hh in range(N_HEAD):                     # static unroll (4 heads)
            sl = slice(hh * HEAD_DIM, (hh + 1) * HEAD_DIM)
            # plain (S,D)@(D,S) matmul — no implicit K transpose, already scaled
            s = jnp.dot(qb[:, sl], ktb[sl, :], preferred_element_type=jnp.float32)
            s = s - jnp.max(s, axis=-1, keepdims=True)
            e = jnp.exp(s)
            inv = pl.reciprocal(jnp.sum(e, axis=-1, keepdims=True), approx=True)
            p = (e * inv).astype(jnp.bfloat16)       # non-causal softmax (SDPA default)
            heads.append(jnp.dot(p, vb[:, sl], preferred_element_type=jnp.float32))

        # one full-depth (S,32)@(32,32) projection matmul instead of 4 K=8 matmuls
        y = jnp.concatenate(heads, axis=-1).astype(jnp.bfloat16)                 # (S, C)
        att = jnp.dot(y, wproj[l], preferred_element_type=jnp.float32) + bproj[l]
        x = x + att                                   # dropout = identity (eval / p=0)

        # --- MLP branch (pre-LN) ---
        h2 = _layernorm(x, ln2w[l], ln2b[l])
        m = jnp.dot(h2.astype(jnp.bfloat16), wfc[l],
                    preferred_element_type=jnp.float32) + bfc[l]
        m = _gelu_exact(m)
        m = jnp.dot(m.astype(jnp.bfloat16), wfc2[l],
                    preferred_element_type=jnp.float32) + bfc2[l]
        x = x + m

    # --- final LayerNorm + policy head (only batch-0 rows are resident) ---
    hf = _layernorm(x, lnfw[...], lnfb[...])
    out_ref[...] = jnp.dot(hf.astype(jnp.bfloat16), wp[...],
                           preferred_element_type=jnp.float32) + bp[...]


# ---------------- parameter init (matches _init_weights distributions) ----------------
def init_params(key):
    keys = iter(jax.random.split(key, 64))

    def uniform(shape, a):
        return jax.random.uniform(next(keys), shape, jnp.float32, -a, a)

    a_emb = math.sqrt(1.0 / N_EMBD)
    a_c = 1.0 / math.sqrt(N_EMBD)
    a_4c = 1.0 / math.sqrt(4 * N_EMBD)

    params = {
        "wte": uniform((VOCAB_SIZE, N_EMBD), a_emb),
        "wpe": uniform((SQUARES_SIZE, N_EMBD), a_emb),
        "blocks": [],
        "lnf_w": jnp.ones((1, N_EMBD), jnp.float32),
        "lnf_b": jnp.zeros((1, N_EMBD), jnp.float32),
        "policy_w": uniform((N_EMBD, POLICY_OUT), a_c),   # out_features==1968 -> (-a, a), bias 0
        "policy_b": jnp.zeros((1, POLICY_OUT), jnp.float32),
    }
    for _ in range(N_LAYER):
        params["blocks"].append({
            "ln1_w": jnp.ones((1, N_EMBD), jnp.float32),
            "ln1_b": jnp.zeros((1, N_EMBD), jnp.float32),
            "w_qkv": uniform((N_EMBD, 3 * N_EMBD), 2 * a_c),
            "b_qkv": jnp.full((1, 3 * N_EMBD), 0.01, jnp.float32),
            "w_proj": uniform((N_EMBD, N_EMBD), 2 * a_c),
            "b_proj": jnp.full((1, N_EMBD), 0.01, jnp.float32),
            "ln2_w": jnp.ones((1, N_EMBD), jnp.float32),
            "ln2_b": jnp.zeros((1, N_EMBD), jnp.float32),
            "w_fc": uniform((N_EMBD, 4 * N_EMBD), 2 * a_c),
            "b_fc": jnp.full((1, 4 * N_EMBD), 0.01, jnp.float32),
            "w_fc2": uniform((4 * N_EMBD, N_EMBD), 2 * a_4c),
            "b_fc2": jnp.full((1, N_EMBD), 0.01, jnp.float32),
        })
    return params


# ---------------- one-time weight preparation (out of the per-call path) ----------------
def prepare_params(params):
    """Stack per-layer weights, split qkv, fold the score scale, cast matmul
    weights to bf16 and pad the policy head — all once, host/XLA side."""
    C = N_EMBD
    blocks = params["blocks"]
    stack = lambda name: jnp.stack([blk[name] for blk in blocks], axis=0)
    bf16 = lambda a: a.astype(jnp.bfloat16)
    scale = 1.0 / math.sqrt(HEAD_DIM)

    w_qkv = stack("w_qkv")                            # (L, C, 3C) f32
    b_qkv = stack("b_qkv")                            # (L, 1, 3C) f32

    wq = bf16(w_qkv[:, :, 0 * C:1 * C] * scale)       # scale folded into Wq
    bq = b_qkv[:, :, 0 * C:1 * C] * scale             # ... and its bias
    wkt = bf16(jnp.transpose(w_qkv[:, :, 1 * C:2 * C], (0, 2, 1)))   # (L, C, C) = Wk^T
    bkt = jnp.transpose(b_qkv[:, :, 1 * C:2 * C], (0, 2, 1))          # (L, C, 1)
    wv = bf16(w_qkv[:, :, 2 * C:3 * C])
    bv = b_qkv[:, :, 2 * C:3 * C]

    # pad policy head to a lane-dense 2048-wide output (done once, not per call)
    wp = jnp.zeros((C, POLICY_PAD), jnp.bfloat16).at[:, :POLICY_OUT].set(
        bf16(params["policy_w"]))
    bp = jnp.zeros((1, POLICY_PAD), jnp.float32).at[:, :POLICY_OUT].set(
        params["policy_b"])

    kernel_inputs = (
        stack("ln1_w"), stack("ln1_b"),
        wq, bq, wkt, bkt, wv, bv,
        bf16(stack("w_proj")), stack("b_proj"),
        stack("ln2_w"), stack("ln2_b"),
        bf16(stack("w_fc")), stack("b_fc"),
        bf16(stack("w_fc2")), stack("b_fc2"),
        params["lnf_w"], params["lnf_b"],
        wp, bp,
    )
    return {"wte": params["wte"], "wpe": params["wpe"],
            "kernel_inputs": kernel_inputs}


# ---------------- full Chess forward ----------------
def chess_forward(prepped, squares, special_tokens, legal_indices=None, p=None):
    B, T = squares.shape
    assert T <= SQUARES_SIZE
    S = T + SPECIAL_SIZE
    C = N_EMBD

    # The reference only feeds batch element 0 into the policy head, and
    # attention never mixes batch elements, so only batch 0 is computed.
    # TODO(synk): embedding gather stays in XLA (data-dependent row gather);
    # folding it into the kernel via scalar prefetch is possible but low value.
    tok_emb = prepped["wte"][squares[0]]                               # (T, C)
    pos_emb = prepped["wpe"][:T]                                       # (T, C)
    special_emb = jnp.broadcast_to(
        special_tokens[0][:, None].astype(jnp.float32), (SPECIAL_SIZE, C))
    x0 = jnp.concatenate([tok_emb + pos_emb, special_emb], axis=0)     # (S, C)

    inputs = (x0,) + prepped["kernel_inputs"]
    full = lambda a: pl.BlockSpec(a.shape, lambda i, nd=a.ndim: (0,) * nd)

    x_policy_pad = pl.pallas_call(
        _chess_fused_kernel,
        out_shape=jax.ShapeDtypeStruct((S, POLICY_PAD), jnp.float32),
        grid=(1,),
        in_specs=[full(a) for a in inputs],
        out_specs=pl.BlockSpec((S, POLICY_PAD), lambda i: (0, 0)),
        compiler_params=pltpu.CompilerParams(
            dimension_semantics=("arbitrary",)),     # tiny single-board work: one TC
    )(*inputs)

    x_policy = x_policy_pad[:, :POLICY_OUT]
    # TODO(synk): reference only defines loss_p when p is given (and references an
    # undefined `v`, so returning loss with p=None would NameError); return None.
    return x_policy, None


if __name__ == "__main__":
    key = jax.random.PRNGKey(0)
    kp, ks, kt = jax.random.split(key, 3)
    params = init_params(kp)
    prepped = prepare_params(params)          # one-time prep, hoisted out of the call path

    B, T = 2, 8
    squares = jax.random.randint(ks, (B, T), 0, VOCAB_SIZE, dtype=jnp.int32)
    special_tokens = jax.random.normal(kt, (B, SPECIAL_SIZE), jnp.float32)
    legal_indices = jnp.full((B, 8), -1, jnp.int32)                    # unused by forward

    x_policy, _ = chess_forward(prepped, squares, special_tokens, legal_indices)
    jax.block_until_ready(x_policy)
    assert x_policy.shape == (T + SPECIAL_SIZE, POLICY_OUT)
    assert bool(jnp.all(jnp.isfinite(x_policy)))
    print("KERNEL_OK")
</pallas_src>

<mosaic_0001>
module attributes {stable_mosaic.version = 11 : i64} {
  func.func @_chess_fused_kernel(%arg0: i32, %arg1: memref<12x32xf32, #tpu.memory_space<vmem>>, %arg2: memref<2x1x32xf32, #tpu.memory_space<vmem>>, %arg3: memref<2x1x32xf32, #tpu.memory_space<vmem>>, %arg4: memref<2x32x32xbf16, #tpu.memory_space<vmem>>, %arg5: memref<2x1x32xf32, #tpu.memory_space<vmem>>, %arg6: memref<2x32x32xbf16, #tpu.memory_space<vmem>>, %arg7: memref<2x32x1xf32, #tpu.memory_space<vmem>>, %arg8: memref<2x32x32xbf16, #tpu.memory_space<vmem>>, %arg9: memref<2x1x32xf32, #tpu.memory_space<vmem>>, %arg10: memref<2x32x32xbf16, #tpu.memory_space<vmem>>, %arg11: memref<2x1x32xf32, #tpu.memory_space<vmem>>, %arg12: memref<2x1x32xf32, #tpu.memory_space<vmem>>, %arg13: memref<2x1x32xf32, #tpu.memory_space<vmem>>, %arg14: memref<2x32x128xbf16, #tpu.memory_space<vmem>>, %arg15: memref<2x1x128xf32, #tpu.memory_space<vmem>>, %arg16: memref<2x128x32xbf16, #tpu.memory_space<vmem>>, %arg17: memref<2x1x32xf32, #tpu.memory_space<vmem>>, %arg18: memref<1x32xf32, #tpu.memory_space<vmem>>, %arg19: memref<1x32xf32, #tpu.memory_space<vmem>>, %arg20: memref<32x2048xbf16, #tpu.memory_space<vmem>>, %arg21: memref<1x2048xf32, #tpu.memory_space<vmem>>, %arg22: memref<12x2048xf32, #tpu.memory_space<vmem>>) attributes {dimension_semantics = [#tpu.dimension_semantics<arbitrary>], iteration_bounds = array<i64: 1>, scalar_prefetch = 0 : i64, scratch_operands = 0 : i64, tpu.core_type = #tpu.core_type<tc>, window_params = [{pipeline_mode = #tpu.pipeline_mode<synchronous>, transform_indices = @transform_0, window_bounds = array<i64: 12, 32>}, {pipeline_mode = #tpu.pipeline_mode<synchronous>, transform_indices = @transform_1, window_bounds = array<i64: 2, 1, 32>}, {pipeline_mode = #tpu.pipeline_mode<synchronous>, transform_indices = @transform_2, window_bounds = array<i64: 2, 1, 32>}, {pipeline_mode = #tpu.pipeline_mode<synchronous>, transform_indices = @transform_3, window_bounds = array<i64: 2, 32, 32>}, {pipeline_mode = #tpu.pipeline_mode<synchronous>, transform_indices = @transform_4, window_bounds = array<i64: 2, 1, 32>}, {pipeline_mode = #tpu.pipeline_mode<synchronous>, transform_indices = @transform_5, window_bounds = array<i64: 2, 32, 32>}, {pipeline_mode = #tpu.pipeline_mode<synchronous>, transform_indices = @transform_6, window_bounds = array<i64: 2, 32, 1>}, {pipeline_mode = #tpu.pipeline_mode<synchronous>, transform_indices = @transform_7, window_bounds = array<i64: 2, 32, 32>}, {pipeline_mode = #tpu.pipeline_mode<synchronous>, transform_indices = @transform_8, window_bounds = array<i64: 2, 1, 32>}, {pipeline_mode = #tpu.pipeline_mode<synchronous>, transform_indices = @transform_9, window_bounds = array<i64: 2, 32, 32>}, {pipeline_mode = #tpu.pipeline_mode<synchronous>, transform_indices = @transform_10, window_bounds = array<i64: 2, 1, 32>}, {pipeline_mode = #tpu.pipeline_mode<synchronous>, transform_indices = @transform_11, window_bounds = array<i64: 2, 1, 32>}, {pipeline_mode = #tpu.pipeline_mode<synchronous>, transform_indices = @transform_12, window_bounds = array<i64: 2, 1, 32>}, {pipeline_mode = #tpu.pipeline_mode<synchronous>, transform_indices = @transform_13, window_bounds = array<i64: 2, 32, 128>}, {pipeline_mode = #tpu.pipeline_mode<synchronous>, transform_indices = @transform_14, window_bounds = array<i64: 2, 1, 128>}, {pipeline_mode = #tpu.pipeline_mode<synchronous>, transform_indices = @transform_15, window_bounds = array<i64: 2, 128, 32>}, {pipeline_mode = #tpu.pipeline_mode<synchronous>, transform_indices = @transform_16, window_bounds = array<i64: 2, 1, 32>}, {pipeline_mode = #tpu.pipeline_mode<synchronous>, transform_indices = @transform_17, window_bounds = array<i64: 1, 32>}, {pipeline_mode = #tpu.pipeline_mode<synchronous>, transform_indices = @transform_18, window_bounds = array<i64: 1, 32>}, {pipeline_mode = #tpu.pipeline_mode<synchronous>, transform_indices = @transform_19, window_bounds = array<i64: 32, 2048>}, {pipeline_mode = #tpu.pipeline_mode<synchronous>, transform_indices = @transform_20, window_bounds = array<i64: 1, 2048>}, {pipeline_mode = #tpu.pipeline_mode<synchronous>, transform_indices = @transform_21, window_bounds = array<i64: 12, 2048>}]} {
    %c0 = arith.constant 0 : index
    %c0_0 = arith.constant 0 : index
    %0 = vector.load %arg1[%c0, %c0_0] : memref<12x32xf32, #tpu.memory_space<vmem>>, vector<12x32xf32>
    %c0_1 = arith.constant 0 : index
    %c0_2 = arith.constant 0 : index
    %c0_3 = arith.constant 0 : index
    %1 = vector.load %arg2[%c0_1, %c0_2, %c0_3] : memref<2x1x32xf32, #tpu.memory_space<vmem>>, vector<1x1x32xf32>
    %2 = vector.shape_cast %1 : vector<1x1x32xf32> to vector<1x32xf32>
    %c0_4 = arith.constant 0 : index
    %c0_5 = arith.constant 0 : index
    %c0_6 = arith.constant 0 : index
    %3 = vector.load %arg3[%c0_4, %c0_5, %c0_6] : memref<2x1x32xf32, #tpu.memory_space<vmem>>, vector<1x1x32xf32>
    %4 = vector.shape_cast %3 : vector<1x1x32xf32> to vector<1x32xf32>
    %cst = arith.constant dense<0.000000e+00> : vector<12xf32>
    %5 = vector.multi_reduction <add>, %0, %cst [1] : vector<12x32xf32> to vector<12xf32>
    %6 = vector.shape_cast %5 : vector<12xf32> to vector<12x1xf32>
    %cst_7 = arith.constant 3.200000e+01 : f32
    %7 = vector.broadcast %cst_7 : f32 to vector<12x1xf32>
    %8 = arith.divf %6, %7 : vector<12x1xf32>
    %9 = vector.broadcast %8 : vector<12x1xf32> to vector<12x32xf32>
    %10 = arith.subf %0, %9 : vector<12x32xf32>
    %11 = arith.mulf %10, %10 : vector<12x32xf32>
    %cst_8 = arith.constant dense<0.000000e+00> : vector<12xf32>
    %12 = vector.multi_reduction <add>, %11, %cst_8 [1] : vector<12x32xf32> to vector<12xf32>
    %13 = vector.shape_cast %12 : vector<12xf32> to vector<12x1xf32>
    %cst_9 = arith.constant 3.200000e+01 : f32
    %14 = vector.broadcast %cst_9 : f32 to vector<12x1xf32>
    %15 = arith.divf %13, %14 : vector<12x1xf32>
    %16 = vector.broadcast %8 : vector<12x1xf32> to vector<12x32xf32>
    %17 = arith.subf %0, %16 : vector<12x32xf32>
    %cst_10 = arith.constant 9.99999974E-6 : f32
    %18 = vector.broadcast %cst_10 : f32 to vector<12x1xf32>
    %19 = arith.addf %15, %18 : vector<12x1xf32>
    %20 = math.rsqrt %19 : vector<12x1xf32>
    %21 = vector.broadcast %20 : vector<12x1xf32> to vector<12x32xf32>
    %22 = arith.mulf %17, %21 : vector<12x32xf32>
    %23 = vector.broadcast %2 : vector<1x32xf32> to vector<12x32xf32>
    %24 = arith.mulf %22, %23 : vector<12x32xf32>
    %25 = vector.broadcast %4 : vector<1x32xf32> to vector<12x32xf32>
    %26 = arith.addf %24, %25 : vector<12x32xf32>
    %27 = arith.truncf %26 : vector<12x32xf32> to vector<12x32xbf16>
    %c0_11 = arith.constant 0 : index
    %c0_12 = arith.constant 0 : index
    %c0_13 = arith.constant 0 : index
    %28 = vector.load %arg4[%c0_11, %c0_12, %c0_13] : memref<2x32x32xbf16, #tpu.memory_space<vmem>>, vector<1x32x32xbf16>
    %29 = vector.shape_cast %28 : vector<1x32x32xbf16> to vector<32x32xbf16>
    %cst_14 = arith.constant dense<0.000000e+00> : vector<12x32xf32>
    %30 = tpu.matmul %27, %29, %cst_14 {dimension_numbers = #tpu.dot_dimension_numbers<[1], [0], [0], [1], [0, 0, 1, 1], [], []>} : vector<12x32xbf16>, vector<32x32xbf16>, vector<12x32xf32> -> vector<12x32xf32>
    %c0_15 = arith.constant 0 : index
    %c0_16 = arith.constant 0 : index
    %c0_17 = arith.constant 0 : index
    %31 = vector.load %arg5[%c0_15, %c0_16, %c0_17] : memref<2x1x32xf32, #tpu.memory_space<vmem>>, vector<1x1x32xf32>
    %32 = vector.shape_cast %31 : vector<1x1x32xf32> to vector<1x32xf32>
    %33 = vector.broadcast %32 : vector<1x32xf32> to vector<12x32xf32>
    %34 = arith.addf %30, %33 : vector<12x32xf32>
    %c0_18 = arith.constant 0 : index
    %c0_19 = arith.constant 0 : index
    %c0_20 = arith.constant 0 : index
    %35 = vector.load %arg6[%c0_18, %c0_19, %c0_20] : memref<2x32x32xbf16, #tpu.memory_space<vmem>>, vector<1x32x32xbf16>
    %36 = vector.shape_cast %35 : vector<1x32x32xbf16> to vector<32x32xbf16>
    %cst_21 = arith.constant dense<0.000000e+00> : vector<32x12xf32>
    %37 = tpu.matmul %36, %27, %cst_21 {dimension_numbers = #tpu.dot_dimension_numbers<[1], [1], [0], [0], [0, 0, 1, 0], [], []>} : vector<32x32xbf16>, vector<12x32xbf16>, vector<32x12xf32> -> vector<32x12xf32>
    %c0_22 = arith.constant 0 : index
    %c0_23 = arith.constant 0 : index
    %c0_24 = arith.constant 0 : index
    %38 = vector.load %arg7[%c0_22, %c0_23, %c0_24] : memref<2x32x1xf32, #tpu.memory_space<vmem>>, vector<1x32x1xf32>
    %39 = vector.shape_cast %38 : vector<1x32x1xf32> to vector<32x1xf32>
    %40 = vector.broadcast %39 : vector<32x1xf32> to vector<32x12xf32>
    %41 = arith.addf %37, %40 : vector<32x12xf32>
    %c0_25 = arith.constant 0 : index
    %c0_26 = arith.constant 0 : index
    %c0_27 = arith.constant 0 : index
    %42 = vector.load %arg8[%c0_25, %c0_26, %c0_27] : memref<2x32x32xbf16, #tpu.memory_space<vmem>>, vector<1x32x32xbf16>
    %43 = vector.shape_cast %42 : vector<1x32x32xbf16> to vector<32x32xbf16>
    %cst_28 = arith.constant dense<0.000000e+00> : vector<12x32xf32>
    %44 = tpu.matmul %27, %43, %cst_28 {dimension_numbers = #tpu.dot_dimension_numbers<[1], [0], [0], [1], [0, 0, 1, 1], [], []>} : vector<12x32xbf16>, vector<32x32xbf16>, vector<12x32xf32> -> vector<12x32xf32>
    %c0_29 = arith.constant 0 : index
    %c0_30 = arith.constant 0 : index
    %c0_31 = arith.constant 0 : index
    %45 = vector.load %arg9[%c0_29, %c0_30, %c0_31] : memref<2x1x32xf32, #tpu.memory_space<vmem>>, vector<1x1x32xf32>
    %46 = vector.shape_cast %45 : vector<1x1x32xf32> to vector<1x32xf32>
    %47 = vector.broadcast %46 : vector<1x32xf32> to vector<12x32xf32>
    %48 = arith.addf %44, %47 : vector<12x32xf32>
    %49 = arith.truncf %34 : vector<12x32xf32> to vector<12x32xbf16>
    %50 = arith.truncf %41 : vector<32x12xf32> to vector<32x12xbf16>
    %51 = arith.truncf %48 : vector<12x32xf32> to vector<12x32xbf16>
    %52 = vector.extract_strided_slice %49 {offsets = [0, 0], sizes = [12, 8], strides = [1, 1]} : vector<12x32xbf16> to vector<12x8xbf16>
    %53 = vector.extract_strided_slice %50 {offsets = [0, 0], sizes = [8, 12], strides = [1, 1]} : vector<32x12xbf16> to vector<8x12xbf16>
    %cst_32 = arith.constant dense<0.000000e+00> : vector<12x12xf32>
    %54 = tpu.matmul %52, %53, %cst_32 {dimension_numbers = #tpu.dot_dimension_numbers<[1], [0], [0], [1], [0, 0, 1, 1], [], []>} : vector<12x8xbf16>, vector<8x12xbf16>, vector<12x12xf32> -> vector<12x12xf32>
    %cst_33 = arith.constant dense<0xFF800000> : vector<12xf32>
    %55 = vector.multi_reduction <maximumf>, %54, %cst_33 [1] : vector<12x12xf32> to vector<12xf32>
    %56 = vector.shape_cast %55 : vector<12xf32> to vector<12x1xf32>
    %57 = vector.broadcast %56 : vector<12x1xf32> to vector<12x12xf32>
    %58 = arith.subf %54, %57 : vector<12x12xf32>
    %59 = math.exp %58 : vector<12x12xf32>
    %cst_34 = arith.constant dense<0.000000e+00> : vector<12xf32>
    %60 = vector.multi_reduction <add>, %59, %cst_34 [1] : vector<12x12xf32> to vector<12xf32>
    %61 = vector.shape_cast %60 : vector<12xf32> to vector<12x1xf32>
    %62 = tpu.reciprocal %61 {approx = true} : vector<12x1xf32> -> vector<12x1xf32>
    %63 = vector.broadcast %62 : vector<12x1xf32> to vector<12x12xf32>
    %64 = arith.mulf %59, %63 : vector<12x12xf32>
    %65 = arith.truncf %64 : vector<12x12xf32> to vector<12x12xbf16>
    %66 = vector.extract_strided_slice %51 {offsets = [0, 0], sizes = [12, 8], strides = [1, 1]} : vector<12x32xbf16> to vector<12x8xbf16>
    %cst_35 = arith.constant dense<0.000000e+00> : vector<12x8xf32>
    %67 = tpu.matmul %65, %66, %cst_35 {dimension_numbers = #tpu.dot_dimension_numbers<[1], [0], [0], [1], [0, 0, 1, 1], [], []>} : vector<12x12xbf16>, vector<12x8xbf16>, vector<12x8xf32> -> vector<12x8xf32>
    %68 = vector.extract_strided_slice %49 {offsets = [0, 8], sizes = [12, 8], strides = [1, 1]} : vector<12x32xbf16> to vector<12x8xbf16>
    %69 = vector.extract_strided_slice %50 {offsets = [8, 0], sizes = [8, 12], strides = [1, 1]} : vector<32x12xbf16> to vector<8x12xbf16>
    %cst_36 = arith.constant dense<0.000000e+00> : vector<12x12xf32>
    %70 = tpu.matmul %68, %69, %cst_36 {dimension_numbers = #tpu.dot_dimension_numbers<[1], [0], [0], [1], [0, 0, 1, 1], [], []>} : vector<12x8xbf16>, vector<8x12xbf16>, vector<12x12xf32> -> vector<12x12xf32>
    %cst_37 = arith.constant dense<0xFF800000> : vector<12xf32>
    %71 = vector.multi_reduction <maximumf>, %70, %cst_37 [1] : vector<12x12xf32> to vector<12xf32>
    %72 = vector.shape_cast %71 : vector<12xf32> to vector<12x1xf32>
    %73 = vector.broadcast %72 : vector<12x1xf32> to vector<12x12xf32>
    %74 = arith.subf %70, %73 : vector<12x12xf32>
    %75 = math.exp %74 : vector<12x12xf32>
    %cst_38 = arith.constant dense<0.000000e+00> : vector<12xf32>
    %76 = vector.multi_reduction <add>, %75, %cst_38 [1] : vector<12x12xf32> to vector<12xf32>
    %77 = vector.shape_cast %76 : vector<12xf32> to vector<12x1xf32>
    %78 = tpu.reciprocal %77 {approx = true} : vector<12x1xf32> -> vector<12x1xf32>
    %79 = vector.broadcast %78 : vector<12x1xf32> to vector<12x12xf32>
    %80 = arith.mulf %75, %79 : vector<12x12xf32>
    %81 = arith.truncf %80 : vector<12x12xf32> to vector<12x12xbf16>
    %82 = vector.extract_strided_slice %51 {offsets = [0, 8], sizes = [12, 8], strides = [1, 1]} : vector<12x32xbf16> to vector<12x8xbf16>
    %cst_39 = arith.constant dense<0.000000e+00> : vector<12x8xf32>
    %83 = tpu.matmul %81, %82, %cst_39 {dimension_numbers = #tpu.dot_dimension_numbers<[1], [0], [0], [1], [0, 0, 1, 1], [], []>} : vector<12x12xbf16>, vector<12x8xbf16>, vector<12x8xf32> -> vector<12x8xf32>
    %84 = vector.extract_strided_slice %49 {offsets = [0, 16], sizes = [12, 8], strides = [1, 1]} : vector<12x32xbf16> to vector<12x8xbf16>
    %85 = vector.extract_strided_slice %50 {offsets = [16, 0], sizes = [8, 12], strides = [1, 1]} : vector<32x12xbf16> to vector<8x12xbf16>
    %cst_40 = arith.constant dense<0.000000e+00> : vector<12x12xf32>
    %86 = tpu.matmul %84, %85, %cst_40 {dimension_numbers = #tpu.dot_dimension_numbers<[1], [0], [0], [1], [0, 0, 1, 1], [], []>} : vector<12x8xbf16>, vector<8x12xbf16>, vector<12x12xf32> -> vector<12x12xf32>
    %cst_41 = arith.constant dense<0xFF800000> : vector<12xf32>
    %87 = vector.multi_reduction <maximumf>, %86, %cst_41 [1] : vector<12x12xf32> to vector<12xf32>
    %88 = vector.shape_cast %87 : vector<12xf32> to vector<12x1xf32>
    %89 = vector.broadcast %88 : vector<12x1xf32> to vector<12x12xf32>
    %90 = arith.subf %86, %89 : vector<12x12xf32>
    %91 = math.exp %90 : vector<12x12xf32>
    %cst_42 = arith.constant dense<0.000000e+00> : vector<12xf32>
    %92 = vector.multi_reduction <add>, %91, %cst_42 [1] : vector<12x12xf32> to vector<12xf32>
    %93 = vector.shape_cast %92 : vector<12xf32> to vector<12x1xf32>
    %94 = tpu.reciprocal %93 {approx = true} : vector<12x1xf32> -> vector<12x1xf32>
    %95 = vector.broadcast %94 : vector<12x1xf32> to vector<12x12xf32>
    %96 = arith.mulf %91, %95 : vector<12x12xf32>
    %97 = arith.truncf %96 : vector<12x12xf32> to vector<12x12xbf16>
    %98 = vector.extract_strided_slice %51 {offsets = [0, 16], sizes = [12, 8], strides = [1, 1]} : vector<12x32xbf16> to vector<12x8xbf16>
    %cst_43 = arith.constant dense<0.000000e+00> : vector<12x8xf32>
    %99 = tpu.matmul %97, %98, %cst_43 {dimension_numbers = #tpu.dot_dimension_numbers<[1], [0], [0], [1], [0, 0, 1, 1], [], []>} : vector<12x12xbf16>, vector<12x8xbf16>, vector<12x8xf32> -> vector<12x8xf32>
    %100 = vector.extract_strided_slice %49 {offsets = [0, 24], sizes = [12, 8], strides = [1, 1]} : vector<12x32xbf16> to vector<12x8xbf16>
    %101 = vector.extract_strided_slice %50 {offsets = [24, 0], sizes = [8, 12], strides = [1, 1]} : vector<32x12xbf16> to vector<8x12xbf16>
    %cst_44 = arith.constant dense<0.000000e+00> : vector<12x12xf32>
    %102 = tpu.matmul %100, %101, %cst_44 {dimension_numbers = #tpu.dot_dimension_numbers<[1], [0], [0], [1], [0, 0, 1, 1], [], []>} : vector<12x8xbf16>, vector<8x12xbf16>, vector<12x12xf32> -> vector<12x12xf32>
    %cst_45 = arith.constant dense<0xFF800000> : vector<12xf32>
    %103 = vector.multi_reduction <maximumf>, %102, %cst_45 [1] : vector<12x12xf32> to vector<12xf32>
    %104 = vector.shape_cast %103 : vector<12xf32> to vector<12x1xf32>
    %105 = vector.broadcast %104 : vector<12x1xf32> to vector<12x12xf32>
    %106 = arith.subf %102, %105 : vector<12x12xf32>
    %107 = math.exp %106 : vector<12x12xf32>
    %cst_46 = arith.constant dense<0.000000e+00> : vector<12xf32>
    %108 = vector.multi_reduction <add>, %107, %cst_46 [1] : vector<12x12xf32> to vector<12xf32>
    %109 = vector.shape_cast %108 : vector<12xf32> to vector<12x1xf32>
    %110 = tpu.reciprocal %109 {approx = true} : vector<12x1xf32> -> vector<12x1xf32>
    %111 = vector.broadcast %110 : vector<12x1xf32> to vector<12x12xf32>
    %112 = arith.mulf %107, %111 : vector<12x12xf32>
    %113 = arith.truncf %112 : vector<12x12xf32> to vector<12x12xbf16>
    %114 = vector.extract_strided_slice %51 {offsets = [0, 24], sizes = [12, 8], strides = [1, 1]} : vector<12x32xbf16> to vector<12x8xbf16>
    %cst_47 = arith.constant dense<0.000000e+00> : vector<12x8xf32>
    %115 = tpu.matmul %113, %114, %cst_47 {dimension_numbers = #tpu.dot_dimension_numbers<[1], [0], [0], [1], [0, 0, 1, 1], [], []>} : vector<12x12xbf16>, vector<12x8xbf16>, vector<12x8xf32> -> vector<12x8xf32>
    %116 = tpu.concatenate %67, %83, %99, %115 in 1 : vector<12x8xf32>, vector<12x8xf32>, vector<12x8xf32>, vector<12x8xf32> -> vector<12x32xf32>
    %117 = arith.truncf %116 : vector<12x32xf32> to vector<12x32xbf16>
    %c0_48 = arith.constant 0 : index
    %c0_49 = arith.constant 0 : index
    %c0_50 = arith.constant 0 : index
    %118 = vector.load %arg10[%c0_48, %c0_49, %c0_50] : memref<2x32x32xbf16, #tpu.memory_space<vmem>>, vector<1x32x32xbf16>
    %119 = vector.shape_cast %118 : vector<1x32x32xbf16> to vector<32x32xbf16>
    %cst_51 = arith.constant dense<0.000000e+00> : vector<12x32xf32>
    %120 = tpu.matmul %117, %119, %cst_51 {dimension_numbers = #tpu.dot_dimension_numbers<[1], [0], [0], [1], [0, 0, 1, 1], [], []>} : vector<12x32xbf16>, vector<32x32xbf16>, vector<12x32xf32> -> vector<12x32xf32>
    %c0_52 = arith.constant 0 : index
    %c0_53 = arith.constant 0 : index
    %c0_54 = arith.constant 0 : index
    %121 = vector.load %arg11[%c0_52, %c0_53, %c0_54] : memref<2x1x32xf32, #tpu.memory_space<vmem>>, vector<1x1x32xf32>
    %122 = vector.shape_cast %121 : vector<1x1x32xf32> to vector<1x32xf32>
    %123 = vector.broadcast %122 : vector<1x32xf32> to vector<12x32xf32>
    %124 = arith.addf %120, %123 : vector<12x32xf32>
    %125 = arith.addf %0, %124 : vector<12x32xf32>
    %c0_55 = arith.constant 0 : index
    %c0_56 = arith.constant 0 : index
    %c0_57 = arith.constant 0 : index
    %126 = vector.load %arg12[%c0_55, %c0_56, %c0_57] : memref<2x1x32xf32, #tpu.memory_space<vmem>>, vector<1x1x32xf32>
    %127 = vector.shape_cast %126 : vector<1x1x32xf32> to vector<1x32xf32>
    %c0_58 = arith.constant 0 : index
    %c0_59 = arith.constant 0 : index
    %c0_60 = arith.constant 0 : index
    %128 = vector.load %arg13[%c0_58, %c0_59, %c0_60] : memref<2x1x32xf32, #tpu.memory_space<vmem>>, vector<1x1x32xf32>
    %129 = vector.shape_cast %128 : vector<1x1x32xf32> to vector<1x32xf32>
    %cst_61 = arith.constant dense<0.000000e+00> : vector<12xf32>
    %130 = vector.multi_reduction <add>, %125, %cst_61 [1] : vector<12x32xf32> to vector<12xf32>
    %131 = vector.shape_cast %130 : vector<12xf32> to vector<12x1xf32>
    %cst_62 = arith.constant 3.200000e+01 : f32
    %132 = vector.broadcast %cst_62 : f32 to vector<12x1xf32>
    %133 = arith.divf %131, %132 : vector<12x1xf32>
    %134 = vector.broadcast %133 : vector<12x1xf32> to vector<12x32xf32>
    %135 = arith.subf %125, %134 : vector<12x32xf32>
    %136 = arith.mulf %135, %135 : vector<12x32xf32>
    %cst_63 = arith.constant dense<0.000000e+00> : vector<12xf32>
    %137 = vector.multi_reduction <add>, %136, %cst_63 [1] : vector<12x32xf32> to vector<12xf32>
    %138 = vector.shape_cast %137 : vector<12xf32> to vector<12x1xf32>
    %cst_64 = arith.constant 3.200000e+01 : f32
    %139 = vector.broadcast %cst_64 : f32 to vector<12x1xf32>
    %140 = arith.divf %138, %139 : vector<12x1xf32>
    %141 = vector.broadcast %133 : vector<12x1xf32> to vector<12x32xf32>
    %142 = arith.subf %125, %141 : vector<12x32xf32>
    %cst_65 = arith.constant 9.99999974E-6 : f32
    %143 = vector.broadcast %cst_65 : f32 to vector<12x1xf32>
    %144 = arith.addf %140, %143 : vector<12x1xf32>
    %145 = math.rsqrt %144 : vector<12x1xf32>
    %146 = vector.broadcast %145 : vector<12x1xf32> to vector<12x32xf32>
    %147 = arith.mulf %142, %146 : vector<12x32xf32>
    %148 = vector.broadcast %127 : vector<1x32xf32> to vector<12x32xf32>
    %149 = arith.mulf %147, %148 : vector<12x32xf32>
    %150 = vector.broadcast %129 : vector<1x32xf32> to vector<12x32xf32>
    %151 = arith.addf %149, %150 : vector<12x32xf32>
    %152 = arith.truncf %151 : vector<12x32xf32> to vector<12x32xbf16>
    %c0_66 = arith.constant 0 : index
    %c0_67 = arith.constant 0 : index
    %c0_68 = arith.constant 0 : index
    %153 = vector.load %arg14[%c0_66, %c0_67, %c0_68] : memref<2x32x128xbf16, #tpu.memory_space<vmem>>, vector<1x32x128xbf16>
    %154 = vector.shape_cast %153 : vector<1x32x128xbf16> to vector<32x128xbf16>
    %cst_69 = arith.constant dense<0.000000e+00> : vector<12x128xf32>
    %155 = tpu.matmul %152, %154, %cst_69 {dimension_numbers = #tpu.dot_dimension_numbers<[1], [0], [0], [1], [0, 0, 1, 1], [], []>} : vector<12x32xbf16>, vector<32x128xbf16>, vector<12x128xf32> -> vector<12x128xf32>
    %c0_70 = arith.constant 0 : index
    %c0_71 = arith.constant 0 : index
    %c0_72 = arith.constant 0 : index
    %156 = vector.load %arg15[%c0_70, %c0_71, %c0_72] : memref<2x1x128xf32, #tpu.memory_space<vmem>>, vector<1x1x128xf32>
    %157 = vector.shape_cast %156 : vector<1x1x128xf32> to vector<1x128xf32>
    %158 = vector.broadcast %157 : vector<1x128xf32> to vector<12x128xf32>
    %159 = arith.addf %155, %158 : vector<12x128xf32>
    %cst_73 = arith.constant 5.000000e-01 : f32
    %160 = vector.broadcast %cst_73 : f32 to vector<12x128xf32>
    %161 = arith.mulf %160, %159 : vector<12x128xf32>
    %cst_74 = arith.constant 0.707106769 : f32
    %162 = vector.broadcast %cst_74 : f32 to vector<12x128xf32>
    %163 = arith.mulf %159, %162 : vector<12x128xf32>
    %164 = math.erf %163 : vector<12x128xf32>
    %cst_75 = arith.constant 1.000000e+00 : f32
    %165 = vector.broadcast %cst_75 : f32 to vector<12x128xf32>
    %166 = arith.addf %165, %164 : vector<12x128xf32>
    %167 = arith.mulf %161, %166 : vector<12x128xf32>
    %168 = arith.truncf %167 : vector<12x128xf32> to vector<12x128xbf16>
    %c0_76 = arith.constant 0 : index
    %c0_77 = arith.constant 0 : index
    %c0_78 = arith.constant 0 : index
    %169 = vector.load %arg16[%c0_76, %c0_77, %c0_78] : memref<2x128x32xbf16, #tpu.memory_space<vmem>>, vector<1x128x32xbf16>
    %170 = vector.shape_cast %169 : vector<1x128x32xbf16> to vector<128x32xbf16>
    %cst_79 = arith.constant dense<0.000000e+00> : vector<12x32xf32>
    %171 = tpu.matmul %168, %170, %cst_79 {dimension_numbers = #tpu.dot_dimension_numbers<[1], [0], [0], [1], [0, 0, 1, 1], [], []>} : vector<12x128xbf16>, vector<128x32xbf16>, vector<12x32xf32> -> vector<12x32xf32>
    %c0_80 = arith.constant 0 : index
    %c0_81 = arith.constant 0 : index
    %c0_82 = arith.constant 0 : index
    %172 = vector.load %arg17[%c0_80, %c0_81, %c0_82] : memref<2x1x32xf32, #tpu.memory_space<vmem>>, vector<1x1x32xf32>
    %173 = vector.shape_cast %172 : vector<1x1x32xf32> to vector<1x32xf32>
    %174 = vector.broadcast %173 : vector<1x32xf32> to vector<12x32xf32>
    %175 = arith.addf %171, %174 : vector<12x32xf32>
    %176 = arith.addf %125, %175 : vector<12x32xf32>
    %c1 = arith.constant 1 : index
    %c0_83 = arith.constant 0 : index
    %c0_84 = arith.constant 0 : index
    %177 = vector.load %arg2[%c1, %c0_83, %c0_84] : memref<2x1x32xf32, #tpu.memory_space<vmem>>, vector<1x1x32xf32>
    %178 = vector.shape_cast %177 : vector<1x1x32xf32> to vector<1x32xf32>
    %c1_85 = arith.constant 1 : index
    %c0_86 = arith.constant 0 : index
    %c0_87 = arith.constant 0 : index
    %179 = vector.load %arg3[%c1_85, %c0_86, %c0_87] : memref<2x1x32xf32, #tpu.memory_space<vmem>>, vector<1x1x32xf32>
    %180 = vector.shape_cast %179 : vector<1x1x32xf32> to vector<1x32xf32>
    %cst_88 = arith.constant dense<0.000000e+00> : vector<12xf32>
    %181 = vector.multi_reduction <add>, %176, %cst_88 [1] : vector<12x32xf32> to vector<12xf32>
    %182 = vector.shape_cast %181 : vector<12xf32> to vector<12x1xf32>
    %cst_89 = arith.constant 3.200000e+01 : f32
    %183 = vector.broadcast %cst_89 : f32 to vector<12x1xf32>
    %184 = arith.divf %182, %183 : vector<12x1xf32>
    %185 = vector.broadcast %184 : vector<12x1xf32> to vector<12x32xf32>
    %186 = arith.subf %176, %185 : vector<12x32xf32>
    %187 = arith.mulf %186, %186 : vector<12x32xf32>
    %cst_90 = arith.constant dense<0.000000e+00> : vector<12xf32>
    %188 = vector.multi_reduction <add>, %187, %cst_90 [1] : vector<12x32xf32> to vector<12xf32>
    %189 = vector.shape_cast %188 : vector<12xf32> to vector<12x1xf32>
    %cst_91 = arith.constant 3.200000e+01 : f32
    %190 = vector.broadcast %cst_91 : f32 to vector<12x1xf32>
    %191 = arith.divf %189, %190 : vector<12x1xf32>
    %192 = vector.broadcast %184 : vector<12x1xf32> to vector<12x32xf32>
    %193 = arith.subf %176, %192 : vector<12x32xf32>
    %cst_92 = arith.constant 9.99999974E-6 : f32
    %194 = vector.broadcast %cst_92 : f32 to vector<12x1xf32>
    %195 = arith.addf %191, %194 : vector<12x1xf32>
    %196 = math.rsqrt %195 : vector<12x1xf32>
    %197 = vector.broadcast %196 : vector<12x1xf32> to vector<12x32xf32>
    %198 = arith.mulf %193, %197 : vector<12x32xf32>
    %199 = vector.broadcast %178 : vector<1x32xf32> to vector<12x32xf32>
    %200 = arith.mulf %198, %199 : vector<12x32xf32>
    %201 = vector.broadcast %180 : vector<1x32xf32> to vector<12x32xf32>
    %202 = arith.addf %200, %201 : vector<12x32xf32>
    %203 = arith.truncf %202 : vector<12x32xf32> to vector<12x32xbf16>
    %c1_93 = arith.constant 1 : index
    %c0_94 = arith.constant 0 : index
    %c0_95 = arith.constant 0 : index
    %204 = vector.load %arg4[%c1_93, %c0_94, %c0_95] : memref<2x32x32xbf16, #tpu.memory_space<vmem>>, vector<1x32x32xbf16>
    %205 = vector.shape_cast %204 : vector<1x32x32xbf16> to vector<32x32xbf16>
    %cst_96 = arith.constant dense<0.000000e+00> : vector<12x32xf32>
    %206 = tpu.matmul %203, %205, %cst_96 {dimension_numbers = #tpu.dot_dimension_numbers<[1], [0], [0], [1], [0, 0, 1, 1], [], []>} : vector<12x32xbf16>, vector<32x32xbf16>, vector<12x32xf32> -> vector<12x32xf32>
    %c1_97 = arith.constant 1 : index
    %c0_98 = arith.constant 0 : index
    %c0_99 = arith.constant 0 : index
    %207 = vector.load %arg5[%c1_97, %c0_98, %c0_99] : memref<2x1x32xf32, #tpu.memory_space<vmem>>, vector<1x1x32xf32>
    %208 = vector.shape_cast %207 : vector<1x1x32xf32> to vector<1x32xf32>
    %209 = vector.broadcast %208 : vector<1x32xf32> to vector<12x32xf32>
    %210 = arith.addf %206, %209 : vector<12x32xf32>
    %c1_100 = arith.constant 1 : index
    %c0_101 = arith.constant 0 : index
    %c0_102 = arith.constant 0 : index
    %211 = vector.load %arg6[%c1_100, %c0_101, %c0_102] : memref<2x32x32xbf16, #tpu.memory_space<vmem>>, vector<1x32x32xbf16>
    %212 = vector.shape_cast %211 : vector<1x32x32xbf16> to vector<32x32xbf16>
    %cst_103 = arith.constant dense<0.000000e+00> : vector<32x12xf32>
    %213 = tpu.matmul %212, %203, %cst_103 {dimension_numbers = #tpu.dot_dimension_numbers<[1], [1], [0], [0], [0, 0, 1, 0], [], []>} : vector<32x32xbf16>, vector<12x32xbf16>, vector<32x12xf32> -> vector<32x12xf32>
    %c1_104 = arith.constant 1 : index
    %c0_105 = arith.constant 0 : index
    %c0_106 = arith.constant 0 : index
    %214 = vector.load %arg7[%c1_104, %c0_105, %c0_106] : memref<2x32x1xf32, #tpu.memory_space<vmem>>, vector<1x32x1xf32>
    %215 = vector.shape_cast %214 : vector<1x32x1xf32> to vector<32x1xf32>
    %216 = vector.broadcast %215 : vector<32x1xf32> to vector<32x12xf32>
    %217 = arith.addf %213, %216 : vector<32x12xf32>
    %c1_107 = arith.constant 1 : index
    %c0_108 = arith.constant 0 : index
    %c0_109 = arith.constant 0 : index
    %218 = vector.load %arg8[%c1_107, %c0_108, %c0_109] : memref<2x32x32xbf16, #tpu.memory_space<vmem>>, vector<1x32x32xbf16>
    %219 = vector.shape_cast %218 : vector<1x32x32xbf16> to vector<32x32xbf16>
    %cst_110 = arith.constant dense<0.000000e+00> : vector<12x32xf32>
    %220 = tpu.matmul %203, %219, %cst_110 {dimension_numbers = #tpu.dot_dimension_numbers<[1], [0], [0], [1], [0, 0, 1, 1], [], []>} : vector<12x32xbf16>, vector<32x32xbf16>, vector<12x32xf32> -> vector<12x32xf32>
    %c1_111 = arith.constant 1 : index
    %c0_112 = arith.constant 0 : index
    %c0_113 = arith.constant 0 : index
    %221 = vector.load %arg9[%c1_111, %c0_112, %c0_113] : memref<2x1x32xf32, #tpu.memory_space<vmem>>, vector<1x1x32xf32>
    %222 = vector.shape_cast %221 : vector<1x1x32xf32> to vector<1x32xf32>
    %223 = vector.broadcast %222 : vector<1x32xf32> to vector<12x32xf32>
    %224 = arith.addf %220, %223 : vector<12x32xf32>
    %225 = arith.truncf %210 : vector<12x32xf32> to vector<12x32xbf16>
    %226 = arith.truncf %217 : vector<32x12xf32> to vector<32x12xbf16>
    %227 = arith.truncf %224 : vector<12x32xf32> to vector<12x32xbf16>
    %228 = vector.extract_strided_slice %225 {offsets = [0, 0], sizes = [12, 8], strides = [1, 1]} : vector<12x32xbf16> to vector<12x8xbf16>
    %229 = vector.extract_strided_slice %226 {offsets = [0, 0], sizes = [8, 12], strides = [1, 1]} : vector<32x12xbf16> to vector<8x12xbf16>
    %cst_114 = arith.constant dense<0.000000e+00> : vector<12x12xf32>
    %230 = tpu.matmul %228, %229, %cst_114 {dimension_numbers = #tpu.dot_dimension_numbers<[1], [0], [0], [1], [0, 0, 1, 1], [], []>} : vector<12x8xbf16>, vector<8x12xbf16>, vector<12x12xf32> -> vector<12x12xf32>
    %cst_115 = arith.constant dense<0xFF800000> : vector<12xf32>
    %231 = vector.multi_reduction <maximumf>, %230, %cst_115 [1] : vector<12x12xf32> to vector<12xf32>
    %232 = vector.shape_cast %231 : vector<12xf32> to vector<12x1xf32>
    %233 = vector.broadcast %232 : vector<12x1xf32> to vector<12x12xf32>
    %234 = arith.subf %230, %233 : vector<12x12xf32>
    %235 = math.exp %234 : vector<12x12xf32>
    %cst_116 = arith.constant dense<0.000000e+00> : vector<12xf32>
    %236 = vector.multi_reduction <add>, %235, %cst_116 [1] : vector<12x12xf32> to vector<12xf32>
    %237 = vector.shape_cast %236 : vector<12xf32> to vector<12x1xf32>
    %238 = tpu.reciprocal %237 {approx = true} : vector<12x1xf32> -> vector<12x1xf32>
    %239 = vector.broadcast %238 : vector<12x1xf32> to vector<12x12xf32>
    %240 = arith.mulf %235, %239 : vector<12x12xf32>
    %241 = arith.truncf %240 : vector<12x12xf32> to vector<12x12xbf16>
    %242 = vector.extract_strided_slice %227 {offsets = [0, 0], sizes = [12, 8], strides = [1, 1]} : vector<12x32xbf16> to vector<12x8xbf16>
    %cst_117 = arith.constant dense<0.000000e+00> : vector<12x8xf32>
    %243 = tpu.matmul %241, %242, %cst_117 {dimension_numbers = #tpu.dot_dimension_numbers<[1], [0], [0], [1], [0, 0, 1, 1], [], []>} : vector<12x12xbf16>, vector<12x8xbf16>, vector<12x8xf32> -> vector<12x8xf32>
    %244 = vector.extract_strided_slice %225 {offsets = [0, 8], sizes = [12, 8], strides = [1, 1]} : vector<12x32xbf16> to vector<12x8xbf16>
    %245 = vector.extract_strided_slice %226 {offsets = [8, 0], sizes = [8, 12], strides = [1, 1]} : vector<32x12xbf16> to vector<8x12xbf16>
    %cst_118 = arith.constant dense<0.000000e+00> : vector<12x12xf32>
    %246 = tpu.matmul %244, %245, %cst_118 {dimension_numbers = #tpu.dot_dimension_numbers<[1], [0], [0], [1], [0, 0, 1, 1], [], []>} : vector<12x8xbf16>, vector<8x12xbf16>, vector<12x12xf32> -> vector<12x12xf32>
    %cst_119 = arith.constant dense<0xFF800000> : vector<12xf32>
    %247 = vector.multi_reduction <maximumf>, %246, %cst_119 [1] : vector<12x12xf32> to vector<12xf32>
    %248 = vector.shape_cast %247 : vector<12xf32> to vector<12x1xf32>
    %249 = vector.broadcast %248 : vector<12x1xf32> to vector<12x12xf32>
    %250 = arith.subf %246, %249 : vector<12x12xf32>
    %251 = math.exp %250 : vector<12x12xf32>
    %cst_120 = arith.constant dense<0.000000e+00> : vector<12xf32>
    %252 = vector.multi_reduction <add>, %251, %cst_120 [1] : vector<12x12xf32> to vector<12xf32>
    %253 = vector.shape_cast %252 : vector<12xf32> to vector<12x1xf32>
    %254 = tpu.reciprocal %253 {approx = true} : vector<12x1xf32> -> vector<12x1xf32>
    %255 = vector.broadcast %254 : vector<12x1xf32> to vector<12x12xf32>
    %256 = arith.mulf %251, %255 : vector<12x12xf32>
    %257 = arith.truncf %256 : vector<12x12xf32> to vector<12x12xbf16>
    %258 = vector.extract_strided_slice %227 {offsets = [0, 8], sizes = [12, 8], strides = [1, 1]} : vector<12x32xbf16> to vector<12x8xbf16>
    %cst_121 = arith.constant dense<0.000000e+00> : vector<12x8xf32>
    %259 = tpu.matmul %257, %258, %cst_121 {dimension_numbers = #tpu.dot_dimension_numbers<[1], [0], [0], [1], [0, 0, 1, 1], [], []>} : vector<12x12xbf16>, vector<12x8xbf16>, vector<12x8xf32> -> vector<12x8xf32>
    %260 = vector.extract_strided_slice %225 {offsets = [0, 16], sizes = [12, 8], strides = [1, 1]} : vector<12x32xbf16> to vector<12x8xbf16>
    %261 = vector.extract_strided_slice %226 {offsets = [16, 0], sizes = [8, 12], strides = [1, 1]} : vector<32x12xbf16> to vector<8x12xbf16>
    %cst_122 = arith.constant dense<0.000000e+00> : vector<12x12xf32>
    %262 = tpu.matmul %260, %261, %cst_122 {dimension_numbers = #tpu.dot_dimension_numbers<[1], [0], [0], [1], [0, 0, 1, 1], [], []>} : vector<12x8xbf16>, vector<8x12xbf16>, vector<12x12xf32> -> vector<12x12xf32>
    %cst_123 = arith.constant dense<0xFF800000> : vector<12xf32>
    %263 = vector.multi_reduction <maximumf>, %262, %cst_123 [1] : vector<12x12xf32> to vector<12xf32>
    %264 = vector.shape_cast %263 : vector<12xf32> to vector<12x1xf32>
    %265 = vector.broadcast %264 : vector<12x1xf32> to vector<12x12xf32>
    %266 = arith.subf %262, %265 : vector<12x12xf32>
    %267 = math.exp %266 : vector<12x12xf32>
    %cst_124 = arith.constant dense<0.000000e+00> : vector<12xf32>
    %268 = vector.multi_reduction <add>, %267, %cst_124 [1] : vector<12x12xf32> to vector<12xf32>
    %269 = vector.shape_cast %268 : vector<12xf32> to vector<12x1xf32>
    %270 = tpu.reciprocal %269 {approx = true} : vector<12x1xf32> -> vector<12x1xf32>
    %271 = vector.broadcast %270 : vector<12x1xf32> to vector<12x12xf32>
    %272 = arith.mulf %267, %271 : vector<12x12xf32>
    %273 = arith.truncf %272 : vector<12x12xf32> to vector<12x12xbf16>
    %274 = vector.extract_strided_slice %227 {offsets = [0, 16], sizes = [12, 8], strides = [1, 1]} : vector<12x32xbf16> to vector<12x8xbf16>
    %cst_125 = arith.constant dense<0.000000e+00> : vector<12x8xf32>
    %275 = tpu.matmul %273, %274, %cst_125 {dimension_numbers = #tpu.dot_dimension_numbers<[1], [0], [0], [1], [0, 0, 1, 1], [], []>} : vector<12x12xbf16>, vector<12x8xbf16>, vector<12x8xf32> -> vector<12x8xf32>
    %276 = vector.extract_strided_slice %225 {offsets = [0, 24], sizes = [12, 8], strides = [1, 1]} : vector<12x32xbf16> to vector<12x8xbf16>
    %277 = vector.extract_strided_slice %226 {offsets = [24, 0], sizes = [8, 12], strides = [1, 1]} : vector<32x12xbf16> to vector<8x12xbf16>
    %cst_126 = arith.constant dense<0.000000e+00> : vector<12x12xf32>
    %278 = tpu.matmul %276, %277, %cst_126 {dimension_numbers = #tpu.dot_dimension_numbers<[1], [0], [0], [1], [0, 0, 1, 1], [], []>} : vector<12x8xbf16>, vector<8x12xbf16>, vector<12x12xf32> -> vector<12x12xf32>
    %cst_127 = arith.constant dense<0xFF800000> : vector<12xf32>
    %279 = vector.multi_reduction <maximumf>, %278, %cst_127 [1] : vector<12x12xf32> to vector<12xf32>
    %280 = vector.shape_cast %279 : vector<12xf32> to vector<12x1xf32>
    %281 = vector.broadcast %280 : vector<12x1xf32> to vector<12x12xf32>
    %282 = arith.subf %278, %281 : vector<12x12xf32>
    %283 = math.exp %282 : vector<12x12xf32>
    %cst_128 = arith.constant dense<0.000000e+00> : vector<12xf32>
    %284 = vector.multi_reduction <add>, %283, %cst_128 [1] : vector<12x12xf32> to vector<12xf32>
    %285 = vector.shape_cast %284 : vector<12xf32> to vector<12x1xf32>
    %286 = tpu.reciprocal %285 {approx = true} : vector<12x1xf32> -> vector<12x1xf32>
    %287 = vector.broadcast %286 : vector<12x1xf32> to vector<12x12xf32>
    %288 = arith.mulf %283, %287 : vector<12x12xf32>
    %289 = arith.truncf %288 : vector<12x12xf32> to vector<12x12xbf16>
    %290 = vector.extract_strided_slice %227 {offsets = [0, 24], sizes = [12, 8], strides = [1, 1]} : vector<12x32xbf16> to vector<12x8xbf16>
    %cst_129 = arith.constant dense<0.000000e+00> : vector<12x8xf32>
    %291 = tpu.matmul %289, %290, %cst_129 {dimension_numbers = #tpu.dot_dimension_numbers<[1], [0], [0], [1], [0, 0, 1, 1], [], []>} : vector<12x12xbf16>, vector<12x8xbf16>, vector<12x8xf32> -> vector<12x8xf32>
    %292 = tpu.concatenate %243, %259, %275, %291 in 1 : vector<12x8xf32>, vector<12x8xf32>, vector<12x8xf32>, vector<12x8xf32> -> vector<12x32xf32>
    %293 = arith.truncf %292 : vector<12x32xf32> to vector<12x32xbf16>
    %c1_130 = arith.constant 1 : index
    %c0_131 = arith.constant 0 : index
    %c0_132 = arith.constant 0 : index
    %294 = vector.load %arg10[%c1_130, %c0_131, %c0_132] : memref<2x32x32xbf16, #tpu.memory_space<vmem>>, vector<1x32x32xbf16>
    %295 = vector.shape_cast %294 : vector<1x32x32xbf16> to vector<32x32xbf16>
    %cst_133 = arith.constant dense<0.000000e+00> : vector<12x32xf32>
    %296 = tpu.matmul %293, %295, %cst_133 {dimension_numbers = #tpu.dot_dimension_numbers<[1], [0], [0], [1], [0, 0, 1, 1], [], []>} : vector<12x32xbf16>, vector<32x32xbf16>, vector<12x32xf32> -> vector<12x32xf32>
    %c1_134 = arith.constant 1 : index
    %c0_135 = arith.constant 0 : index
    %c0_136 = arith.constant 0 : index
    %297 = vector.load %arg11[%c1_134, %c0_135, %c0_136] : memref<2x1x32xf32, #tpu.memory_space<vmem>>, vector<1x1x32xf32>
    %298 = vector.shape_cast %297 : vector<1x1x32xf32> to vector<1x32xf32>
    %299 = vector.broadcast %298 : vector<1x32xf32> to vector<12x32xf32>
    %300 = arith.addf %296, %299 : vector<12x32xf32>
    %301 = arith.addf %176, %300 : vector<12x32xf32>
    %c1_137 = arith.constant 1 : index
    %c0_138 = arith.constant 0 : index
    %c0_139 = arith.constant 0 : index
    %302 = vector.load %arg12[%c1_137, %c0_138, %c0_139] : memref<2x1x32xf32, #tpu.memory_space<vmem>>, vector<1x1x32xf32>
    %303 = vector.shape_cast %302 : vector<1x1x32xf32> to vector<1x32xf32>
    %c1_140 = arith.constant 1 : index
    %c0_141 = arith.constant 0 : index
    %c0_142 = arith.constant 0 : index
    %304 = vector.load %arg13[%c1_140, %c0_141, %c0_142] : memref<2x1x32xf32, #tpu.memory_space<vmem>>, vector<1x1x32xf32>
    %305 = vector.shape_cast %304 : vector<1x1x32xf32> to vector<1x32xf32>
    %cst_143 = arith.constant dense<0.000000e+00> : vector<12xf32>
    %306 = vector.multi_reduction <add>, %301, %cst_143 [1] : vector<12x32xf32> to vector<12xf32>
    %307 = vector.shape_cast %306 : vector<12xf32> to vector<12x1xf32>
    %cst_144 = arith.constant 3.200000e+01 : f32
    %308 = vector.broadcast %cst_144 : f32 to vector<12x1xf32>
    %309 = arith.divf %307, %308 : vector<12x1xf32>
    %310 = vector.broadcast %309 : vector<12x1xf32> to vector<12x32xf32>
    %311 = arith.subf %301, %310 : vector<12x32xf32>
    %312 = arith.mulf %311, %311 : vector<12x32xf32>
    %cst_145 = arith.constant dense<0.000000e+00> : vector<12xf32>
    %313 = vector.multi_reduction <add>, %312, %cst_145 [1] : vector<12x32xf32> to vector<12xf32>
    %314 = vector.shape_cast %313 : vector<12xf32> to vector<12x1xf32>
    %cst_146 = arith.constant 3.200000e+01 : f32
    %315 = vector.broadcast %cst_146 : f32 to vector<12x1xf32>
    %316 = arith.divf %314, %315 : vector<12x1xf32>
    %317 = vector.broadcast %309 : vector<12x1xf32> to vector<12x32xf32>
    %318 = arith.subf %301, %317 : vector<12x32xf32>
    %cst_147 = arith.constant 9.99999974E-6 : f32
    %319 = vector.broadcast %cst_147 : f32 to vector<12x1xf32>
    %320 = arith.addf %316, %319 : vector<12x1xf32>
    %321 = math.rsqrt %320 : vector<12x1xf32>
    %322 = vector.broadcast %321 : vector<12x1xf32> to vector<12x32xf32>
    %323 = arith.mulf %318, %322 : vector<12x32xf32>
    %324 = vector.broadcast %303 : vector<1x32xf32> to vector<12x32xf32>
    %325 = arith.mulf %323, %324 : vector<12x32xf32>
    %326 = vector.broadcast %305 : vector<1x32xf32> to vector<12x32xf32>
    %327 = arith.addf %325, %326 : vector<12x32xf32>
    %328 = arith.truncf %327 : vector<12x32xf32> to vector<12x32xbf16>
    %c1_148 = arith.constant 1 : index
    %c0_149 = arith.constant 0 : index
    %c0_150 = arith.constant 0 : index
    %329 = vector.load %arg14[%c1_148, %c0_149, %c0_150] : memref<2x32x128xbf16, #tpu.memory_space<vmem>>, vector<1x32x128xbf16>
    %330 = vector.shape_cast %329 : vector<1x32x128xbf16> to vector<32x128xbf16>
    %cst_151 = arith.constant dense<0.000000e+00> : vector<12x128xf32>
    %331 = tpu.matmul %328, %330, %cst_151 {dimension_numbers = #tpu.dot_dimension_numbers<[1], [0], [0], [1], [0, 0, 1, 1], [], []>} : vector<12x32xbf16>, vector<32x128xbf16>, vector<12x128xf32> -> vector<12x128xf32>
    %c1_152 = arith.constant 1 : index
    %c0_153 = arith.constant 0 : index
    %c0_154 = arith.constant 0 : index
    %332 = vector.load %arg15[%c1_152, %c0_153, %c0_154] : memref<2x1x128xf32, #tpu.memory_space<vmem>>, vector<1x1x128xf32>
    %333 = vector.shape_cast %332 : vector<1x1x128xf32> to vector<1x128xf32>
    %334 = vector.broadcast %333 : vector<1x128xf32> to vector<12x128xf32>
    %335 = arith.addf %331, %334 : vector<12x128xf32>
    %cst_155 = arith.constant 5.000000e-01 : f32
    %336 = vector.broadcast %cst_155 : f32 to vector<12x128xf32>
    %337 = arith.mulf %336, %335 : vector<12x128xf32>
    %cst_156 = arith.constant 0.707106769 : f32
    %338 = vector.broadcast %cst_156 : f32 to vector<12x128xf32>
    %339 = arith.mulf %335, %338 : vector<12x128xf32>
    %340 = math.erf %339 : vector<12x128xf32>
    %cst_157 = arith.constant 1.000000e+00 : f32
    %341 = vector.broadcast %cst_157 : f32 to vector<12x128xf32>
    %342 = arith.addf %341, %340 : vector<12x128xf32>
    %343 = arith.mulf %337, %342 : vector<12x128xf32>
    %344 = arith.truncf %343 : vector<12x128xf32> to vector<12x128xbf16>
    %c1_158 = arith.constant 1 : index
    %c0_159 = arith.constant 0 : index
    %c0_160 = arith.constant 0 : index
    %345 = vector.load %arg16[%c1_158, %c0_159, %c0_160] : memref<2x128x32xbf16, #tpu.memory_space<vmem>>, vector<1x128x32xbf16>
    %346 = vector.shape_cast %345 : vector<1x128x32xbf16> to vector<128x32xbf16>
    %cst_161 = arith.constant dense<0.000000e+00> : vector<12x32xf32>
    %347 = tpu.matmul %344, %346, %cst_161 {dimension_numbers = #tpu.dot_dimension_numbers<[1], [0], [0], [1], [0, 0, 1, 1], [], []>} : vector<12x128xbf16>, vector<128x32xbf16>, vector<12x32xf32> -> vector<12x32xf32>
    %c1_162 = arith.constant 1 : index
    %c0_163 = arith.constant 0 : index
    %c0_164 = arith.constant 0 : index
    %348 = vector.load %arg17[%c1_162, %c0_163, %c0_164] : memref<2x1x32xf32, #tpu.memory_space<vmem>>, vector<1x1x32xf32>
    %349 = vector.shape_cast %348 : vector<1x1x32xf32> to vector<1x32xf32>
    %350 = vector.broadcast %349 : vector<1x32xf32> to vector<12x32xf32>
    %351 = arith.addf %347, %350 : vector<12x32xf32>
    %352 = arith.addf %301, %351 : vector<12x32xf32>
    %c0_165 = arith.constant 0 : index
    %c0_166 = arith.constant 0 : index
    %353 = vector.load %arg18[%c0_165, %c0_166] : memref<1x32xf32, #tpu.memory_space<vmem>>, vector<1x32xf32>
    %c0_167 = arith.constant 0 : index
    %c0_168 = arith.constant 0 : index
    %354 = vector.load %arg19[%c0_167, %c0_168] : memref<1x32xf32, #tpu.memory_space<vmem>>, vector<1x32xf32>
    %cst_169 = arith.constant dense<0.000000e+00> : vector<12xf32>
    %355 = vector.multi_reduction <add>, %352, %cst_169 [1] : vector<12x32xf32> to vector<12xf32>
    %356 = vector.shape_cast %355 : vector<12xf32> to vector<12x1xf32>
    %cst_170 = arith.constant 3.200000e+01 : f32
    %357 = vector.broadcast %cst_170 : f32 to vector<12x1xf32>
    %358 = arith.divf %356, %357 : vector<12x1xf32>
    %359 = vector.broadcast %358 : vector<12x1xf32> to vector<12x32xf32>
    %360 = arith.subf %352, %359 : vector<12x32xf32>
    %361 = arith.mulf %360, %360 : vector<12x32xf32>
    %cst_171 = arith.constant dense<0.000000e+00> : vector<12xf32>
    %362 = vector.multi_reduction <add>, %361, %cst_171 [1] : vector<12x32xf32> to vector<12xf32>
    %363 = vector.shape_cast %362 : vector<12xf32> to vector<12x1xf32>
    %cst_172 = arith.constant 3.200000e+01 : f32
    %364 = vector.broadcast %cst_172 : f32 to vector<12x1xf32>
    %365 = arith.divf %363, %364 : vector<12x1xf32>
    %366 = vector.broadcast %358 : vector<12x1xf32> to vector<12x32xf32>
    %367 = arith.subf %352, %366 : vector<12x32xf32>
    %cst_173 = arith.constant 9.99999974E-6 : f32
    %368 = vector.broadcast %cst_173 : f32 to vector<12x1xf32>
    %369 = arith.addf %365, %368 : vector<12x1xf32>
    %370 = math.rsqrt %369 : vector<12x1xf32>
    %371 = vector.broadcast %370 : vector<12x1xf32> to vector<12x32xf32>
    %372 = arith.mulf %367, %371 : vector<12x32xf32>
    %373 = vector.broadcast %353 : vector<1x32xf32> to vector<12x32xf32>
    %374 = arith.mulf %372, %373 : vector<12x32xf32>
    %375 = vector.broadcast %354 : vector<1x32xf32> to vector<12x32xf32>
    %376 = arith.addf %374, %375 : vector<12x32xf32>
    %377 = arith.truncf %376 : vector<12x32xf32> to vector<12x32xbf16>
    %c0_174 = arith.constant 0 : index
    %c0_175 = arith.constant 0 : index
    %378 = vector.load %arg20[%c0_174, %c0_175] : memref<32x2048xbf16, #tpu.memory_space<vmem>>, vector<32x2048xbf16>
    %cst_176 = arith.constant dense<0.000000e+00> : vector<12x2048xf32>
    %379 = tpu.matmul %377, %378, %cst_176 {dimension_numbers = #tpu.dot_dimension_numbers<[1], [0], [0], [1], [0, 0, 1, 1], [], []>} : vector<12x32xbf16>, vector<32x2048xbf16>, vector<12x2048xf32> -> vector<12x2048xf32>
    %c0_177 = arith.constant 0 : index
    %c0_178 = arith.constant 0 : index
    %380 = vector.load %arg21[%c0_177, %c0_178] : memref<1x2048xf32, #tpu.memory_space<vmem>>, vector<1x2048xf32>
    %381 = vector.broadcast %380 : vector<1x2048xf32> to vector<12x2048xf32>
    %382 = arith.addf %379, %381 : vector<12x2048xf32>
    %c0_179 = arith.constant 0 : index
    %c0_180 = arith.constant 0 : index
    %383 = vector.load %arg22[%c0_179, %c0_180] : memref<12x2048xf32, #tpu.memory_space<vmem>>, vector<12x2048xf32>
    tpu.vector_store %arg22[%c0_179, %c0_180], %382 {strides = array<i32>} : memref<12x2048xf32, #tpu.memory_space<vmem>>, vector<12x2048xf32>,
    return
  }
  func.func @transform_0(%arg0: i32) -> (i32, i32) {
    %c0_i32 = arith.constant 0 : i32
    %c0_i32_0 = arith.constant 0 : i32
    %c0_i32_1 = arith.constant 0 : i32
    return %c0_i32, %c0_i32_0 : i32, i32
  }
  func.func @transform_1(%arg0: i32) -> (i32, i32, i32) {
    %c0_i32 = arith.constant 0 : i32
    %c0_i32_0 = arith.constant 0 : i32
    %c0_i32_1 = arith.constant 0 : i32
    %c0_i32_2 = arith.constant 0 : i32
    return %c0_i32, %c0_i32_0, %c0_i32_1 : i32, i32, i32
  }
  func.func @transform_2(%arg0: i32) -> (i32, i32, i32) {
    %c0_i32 = arith.constant 0 : i32
    %c0_i32_0 = arith.constant 0 : i32
    %c0_i32_1 = arith.constant 0 : i32
    %c0_i32_2 = arith.constant 0 : i32
    return %c0_i32, %c0_i32_0, %c0_i32_1 : i32, i32, i32
  }
  func.func @transform_3(%arg0: i32) -> (i32, i32, i32) {
    %c0_i32 = arith.constant 0 : i32
    %c0_i32_0 = arith.constant 0 : i32
    %c0_i32_1 = arith.constant 0 : i32
    %c0_i32_2 = arith.constant 0 : i32
    return %c0_i32, %c0_i32_0, %c0_i32_1 : i32, i32, i32
  }
  func.func @transform_4(%arg0: i32) -> (i32, i32, i32) {
    %c0_i32 = arith.constant 0 : i32
    %c0_i32_0 = arith.constant 0 : i32
    %c0_i32_1 = arith.constant 0 : i32
    %c0_i32_2 = arith.constant 0 : i32
    return %c0_i32, %c0_i32_0, %c0_i32_1 : i32, i32, i32
  }
  func.func @transform_5(%arg0: i32) -> (i32, i32, i32) {
    %c0_i32 = arith.constant 0 : i32
    %c0_i32_0 = arith.constant 0 : i32
    %c0_i32_1 = arith.constant 0 : i32
    %c0_i32_2 = arith.constant 0 : i32
    return %c0_i32, %c0_i32_0, %c0_i32_1 : i32, i32, i32
  }
  func.func @transform_6(%arg0: i32) -> (i32, i32, i32) {
    %c0_i32 = arith.constant 0 : i32
    %c0_i32_0 = arith.constant 0 : i32
    %c0_i32_1 = arith.constant 0 : i32
    %c0_i32_2 = arith.constant 0 : i32
    return %c0_i32, %c0_i32_0, %c0_i32_1 : i32, i32, i32
  }
  func.func @transform_7(%arg0: i32) -> (i32, i32, i32) {
    %c0_i32 = arith.constant 0 : i32
    %c0_i32_0 = arith.constant 0 : i32
    %c0_i32_1 = arith.constant 0 : i32
    %c0_i32_2 = arith.constant 0 : i32
    return %c0_i32, %c0_i32_0, %c0_i32_1 : i32, i32, i32
  }
  func.func @transform_8(%arg0: i32) -> (i32, i32, i32) {
    %c0_i32 = arith.constant 0 : i32
    %c0_i32_0 = arith.constant 0 : i32
    %c0_i32_1 = arith.constant 0 : i32
    %c0_i32_2 = arith.constant 0 : i32
    return %c0_i32, %c0_i32_0, %c0_i32_1 : i32, i32, i32
  }
  func.func @transform_9(%arg0: i32) -> (i32, i32, i32) {
    %c0_i32 = arith.constant 0 : i32
    %c0_i32_0 = arith.constant 0 : i32
    %c0_i32_1 = arith.constant 0 : i32
    %c0_i32_2 = arith.constant 0 : i32
    return %c0_i32, %c0_i32_0, %c0_i32_1 : i32, i32, i32
  }
  func.func @transform_10(%arg0: i32) -> (i32, i32, i32) {
    %c0_i32 = arith.constant 0 : i32
    %c0_i32_0 = arith.constant 0 : i32
    %c0_i32_1 = arith.constant 0 : i32
    %c0_i32_2 = arith.constant 0 : i32
    return %c0_i32, %c0_i32_0, %c0_i32_1 : i32, i32, i32
  }
  func.func @transform_11(%arg0: i32) -> (i32, i32, i32) {
    %c0_i32 = arith.constant 0 : i32
    %c0_i32_0 = arith.constant 0 : i32
    %c0_i32_1 = arith.constant 0 : i32
    %c0_i32_2 = arith.constant 0 : i32
    return %c0_i32, %c0_i32_0, %c0_i32_1 : i32, i32, i32
  }
  func.func @transform_12(%arg0: i32) -> (i32, i32, i32) {
    %c0_i32 = arith.constant 0 : i32
    %c0_i32_0 = arith.constant 0 : i32
    %c0_i32_1 = arith.constant 0 : i32
    %c0_i32_2 = arith.constant 0 : i32
    return %c0_i32, %c0_i32_0, %c0_i32_1 : i32, i32, i32
  }
  func.func @transform_13(%arg0: i32) -> (i32, i32, i32) {
    %c0_i32 = arith.constant 0 : i32
    %c0_i32_0 = arith.constant 0 : i32
    %c0_i32_1 = arith.constant 0 : i32
    %c0_i32_2 = arith.constant 0 : i32
    return %c0_i32, %c0_i32_0, %c0_i32_1 : i32, i32, i32
  }
  func.func @transform_14(%arg0: i32) -> (i32, i32, i32) {
    %c0_i32 = arith.constant 0 : i32
    %c0_i32_0 = arith.constant 0 : i32
    %c0_i32_1 = arith.constant 0 : i32
    %c0_i32_2 = arith.constant 0 : i32
    return %c0_i32, %c0_i32_0, %c0_i32_1 : i32, i32, i32
  }
  func.func @transform_15(%arg0: i32) -> (i32, i32, i32) {
    %c0_i32 = arith.constant 0 : i32
    %c0_i32_0 = arith.constant 0 : i32
    %c0_i32_1 = arith.constant 0 : i32
    %c0_i32_2 = arith.constant 0 : i32
    return %c0_i32, %c0_i32_0, %c0_i32_1 : i32, i32, i32
  }
  func.func @transform_16(%arg0: i32) -> (i32, i32, i32) {
    %c0_i32 = arith.constant 0 : i32
    %c0_i32_0 = arith.constant 0 : i32
    %c0_i32_1 = arith.constant 0 : i32
    %c0_i32_2 = arith.constant 0 : i32
    return %c0_i32, %c0_i32_0, %c0_i32_1 : i32, i32, i32
  }
  func.func @transform_17(%arg0: i32) -> (i32, i32) {
    %c0_i32 = arith.constant 0 : i32
    %c0_i32_0 = arith.constant 0 : i32
    %c0_i32_1 = arith.constant 0 : i32
    return %c0_i32, %c0_i32_0 : i32, i32
  }
  func.func @transform_18(%arg0: i32) -> (i32, i32) {
    %c0_i32 = arith.constant 0 : i32
    %c0_i32_0 = arith.constant 0 : i32
    %c0_i32_1 = arith.constant 0 : i32
    return %c0_i32, %c0_i32_0 : i32, i32
  }
  func.func @transform_19(%arg0: i32) -> (i32, i32) {
    %c0_i32 = arith.constant 0 : i32
    %c0_i32_0 = arith.constant 0 : i32
    %c0_i32_1 = arith.constant 0 : i32
    return %c0_i32, %c0_i32_0 : i32, i32
  }
  func.func @transform_20(%arg0: i32) -> (i32, i32) {
    %c0_i32 = arith.constant 0 : i32
    %c0_i32_0 = arith.constant 0 : i32
    %c0_i32_1 = arith.constant 0 : i32
    return %c0_i32, %c0_i32_0 : i32, i32
  }
  func.func @transform_21(%arg0: i32) -> (i32, i32) {
    %c0_i32 = arith.constant 0 : i32
    %c0_i32_0 = arith.constant 0 : i32
    %c0_i32_1 = arith.constant 0 : i32
    return %c0_i32, %c0_i32_0 : i32, i32
  }
}

</mosaic_0001>

<llo_original>
// kernel: tpu_custom_call.1
$region0: #{tpu_custom_call.1}
  #allocation0 [shape = 'u32[]', space=smem, size = 0x4, offset = 0x4, fixed_abs, tag = 'smem constant byte address 0x4 - core index']
  #allocation1 [shape = 'u32[72,128]{1,0:T(1,128)}', space=vmem, size = 0x9000, scoped, tag = 'internal scratch']
  %s0 = inlined_call_operand.vmem [shape: f32[12,32], index: 0, kind: input, shape index: {}]
  %s1 = inlined_call_operand.vmem [shape: f32[2,1,32], index: 1, kind: input, shape index: {}]
  %s2 = inlined_call_operand.hbm [shape: f32[2,1,32], index: 2, kind: input, shape index: {}]
  %s3 = inlined_call_operand.vmem [shape: bf16[2,32,32], index: 3, kind: input, shape index: {}]
  %s4 = inlined_call_operand.hbm [shape: f32[2,1,32], index: 4, kind: input, shape index: {}]
  %s5 = inlined_call_operand.vmem [shape: bf16[2,32,32], index: 5, kind: input, shape index: {}]
  %s6 = inlined_call_operand.vmem [shape: f32[2,32,1], index: 6, kind: input, shape index: {}]
  %s7 = inlined_call_operand.vmem [shape: bf16[2,32,32], index: 7, kind: input, shape index: {}]
  %s8 = inlined_call_operand.vmem [shape: f32[2,1,32], index: 8, kind: input, shape index: {}]
  %s9 = inlined_call_operand.vmem [shape: bf16[2,32,32], index: 9, kind: input, shape index: {}]
  %s10 = inlined_call_operand.vmem [shape: f32[2,1,32], index: 10, kind: input, shape index: {}]
  %s11 = inlined_call_operand.vmem [shape: f32[2,1,32], index: 11, kind: input, shape index: {}]
  %s12 = inlined_call_operand.vmem [shape: f32[2,1,32], index: 12, kind: input, shape index: {}]
  %s13 = inlined_call_operand.vmem [shape: bf16[2,32,128], index: 13, kind: input, shape index: {}]
  %s14 = inlined_call_operand.hbm [shape: f32[2,1,128], index: 14, kind: input, shape index: {}]
  %s15 = inlined_call_operand.vmem [shape: bf16[2,128,32], index: 15, kind: input, shape index: {}]
  %s16 = inlined_call_operand.vmem [shape: f32[2,1,32], index: 16, kind: input, shape index: {}]
  %s17 = inlined_call_operand.vmem [shape: f32[1,32], index: 17, kind: input, shape index: {}]
  %s18 = inlined_call_operand.vmem [shape: f32[1,32], index: 18, kind: input, shape index: {}]
  %s19 = inlined_call_operand.hbm [shape: bf16[32,2048], index: 19, kind: input, shape index: {}]
  %s20 = inlined_call_operand.vmem [shape: f32[1,2048], index: 20, kind: input, shape index: {}]
  %s21 = inlined_call_operand.hbm [shape: f32[12,2048], index: 21, kind: output, shape index: {}]
  %s22 = sld [smem:[#allocation0]]
  $region110: #{tpu_custom_call.1} parent=0
    _
  %s24 = ssub.s32 1, %s22
  %s25 = scalar_select 0, %s24, %s22
  $region1: #{tpu_custom_call.1} parent=0
    #allocation2 [shape = 'u8[1024]{0}', space=vmem, size = 0x400, scoped, tag = 'input window, operand 2, single buffered']
    #allocation3 [shape = 's32[1]{0}', space=sflag, size = 0x4, scoped, tag = 'scoped memory for tpu_custom_call.1']
    #allocation4 [shape = 's32[1]{0}', space=sflag, size = 0x4, scoped, tag = 'scoped memory for tpu_custom_call.1']
    #allocation5 [shape = 'u8[1024]{0}', space=vmem, size = 0x400, scoped, tag = 'input window, operand 4, single buffered']
    #allocation6 [shape = 's32[1]{0}', space=sflag, size = 0x4, scoped, tag = 'scoped memory for tpu_custom_call.1']
    #allocation7 [shape = 'u8[1024]{0}', space=vmem, size = 0x400, scoped, tag = 'input window, operand 14, single buffered']
    #allocation8 [shape = 'u8[131072]{0}', space=vmem, size = 0x20000, scoped, tag = 'input window, operand 19, single buffered']
    #allocation9 [shape = 's32[1]{0}', space=sflag, size = 0x4, scoped, tag = 'scoped memory for tpu_custom_call.1']
    #allocation10 [shape = 'u8[131072]{0}', space=vmem, size = 0x20000, scoped, tag = 'output window, operand 0, single buffered']
    %26 = vsyncpa [#allocation3], 0
    %27 = vsyncpa [#allocation6], 0
    %28 = vsyncpa [#allocation9], 0
    %29 = vsyncpa [#allocation4], 0
    // Predicated region
    $region2: #{tpu_custom_call.1} parent=1 // pred_check
      _
    $region3: #{tpu_custom_call.1} parent=1 // pred_check_branch
      %31 = sbr.rel (0) target = $region5
    $region4: #{tpu_custom_call.1} parent=1 // pred_region
      _
    $region5: #{tpu_custom_call.1} parent=1 // pred_fallthru
      _
    // Predicated region
    $region6: #{tpu_custom_call.1} parent=1 // pred_check
      _
    $region7: #{tpu_custom_call.1} parent=1 // pred_check_branch
      %33 = sbr.rel (0) target = $region9
    $region8: #{tpu_custom_call.1} parent=1 // pred_region
      _
    $region9: #{tpu_custom_call.1} parent=1 // pred_fallthru
      _
    // Predicated region
    $region10: #{tpu_custom_call.1} parent=1 // pred_check
      _
    $region11: #{tpu_custom_call.1} parent=1 // pred_check_branch
      %35 = sbr.rel (0) target = $region13
    $region12: #{tpu_custom_call.1} parent=1 // pred_region
      %37 = vsyncadd [#allocation3], 0
      %s38 = sshll.u32 %s2, 4
      %s39 = int_to_ptr.hbm [resolvable:$true] %s38
      %s40 = sshll.u32 [#allocation2], 4
      %s41 = int_to_ptr.vmem [resolvable:$true] %s40
      %46 = dma.hbm_to_vmem [thread:$0]  %s39, 32, %s41, [#allocation3], 16, 16, 1
    $region13: #{tpu_custom_call.1} parent=1 // pred_fallthru
      _
    // Predicated region
    $region14: #{tpu_custom_call.1} parent=1 // pred_check
      _
    $region15: #{tpu_custom_call.1} parent=1 // pred_check_branch
      %48 = sbr.rel (0) target = $region17
    $region16: #{tpu_custom_call.1} parent=1 // pred_region
      _
    $region17: #{tpu_custom_call.1} parent=1 // pred_fallthru
      _
    // Predicated region
    $region18: #{tpu_custom_call.1} parent=1 // pred_check
      _
    $region19: #{tpu_custom_call.1} parent=1 // pred_check_branch
      %50 = sbr.rel (0) target = $region21
    $region20: #{tpu_custom_call.1} parent=1 // pred_region
      %52 = vsyncadd [#allocation6], 0
      %s53 = sshll.u32 %s4, 4
      %s54 = int_to_ptr.hbm [resolvable:$true] %s53
      %s55 = sshll.u32 [#allocation5], 4
      %s56 = int_to_ptr.vmem [resolvable:$true] %s55
      %61 = dma.hbm_to_vmem [thread:$0]  %s54, 32, %s56, [#allocation6], 16, 16, 1
    $region21: #{tpu_custom_call.1} parent=1 // pred_fallthru
      _
    // Predicated region
    $region22: #{tpu_custom_call.1} parent=1 // pred_check
      _
    $region23: #{tpu_custom_call.1} parent=1 // pred_check_branch
      %63 = sbr.rel (0) target = $region25
    $region24: #{tpu_custom_call.1} parent=1 // pred_region
      _
    $region25: #{tpu_custom_call.1} parent=1 // pred_fallthru
      _
    // Predicated region
    $region26: #{tpu_custom_call.1} parent=1 // pred_check
      _
    $region27: #{tpu_custom_call.1} parent=1 // pred_check_branch
      %65 = sbr.rel (0) target = $region29
    $region28: #{tpu_custom_call.1} parent=1 // pred_region
      _
    $region29: #{tpu_custom_call.1} parent=1 // pred_fallthru
      _
    // Predicated region
    $region30: #{tpu_custom_call.1} parent=1 // pred_check
      _
    $region31: #{tpu_custom_call.1} parent=1 // pred_check_branch
      %67 = sbr.rel (0) target = $region33
    $region32: #{tpu_custom_call.1} parent=1 // pred_region
      _
    $region33: #{tpu_custom_call.1} parent=1 // pred_fallthru
      _
    // Predicated region
    $region34: #{tpu_custom_call.1} parent=1 // pred_check
      _
    $region35: #{tpu_custom_call.1} parent=1 // pred_check_branch
      %69 = sbr.rel (0) target = $region37
    $region36: #{tpu_custom_call.1} parent=1 // pred_region
      _
    $region37: #{tpu_custom_call.1} parent=1 // pred_fallthru
      _
    // Predicated region
    $region38: #{tpu_custom_call.1} parent=1 // pred_check
      _
    $region39: #{tpu_custom_call.1} parent=1 // pred_check_branch
      %71 = sbr.rel (0) target = $region41
    $region40: #{tpu_custom_call.1} parent=1 // pred_region
      _
    $region41: #{tpu_custom_call.1} parent=1 // pred_fallthru
      _
    // Predicated region
    $region42: #{tpu_custom_call.1} parent=1 // pred_check
      _
    $region43: #{tpu_custom_call.1} parent=1 // pred_check_branch
      %73 = sbr.rel (0) target = $region45
    $region44: #{tpu_custom_call.1} parent=1 // pred_region
      _
    $region45: #{tpu_custom_call.1} parent=1 // pred_fallthru
      _
    // Predicated region
    $region46: #{tpu_custom_call.1} parent=1 // pred_check
      _
    $region47: #{tpu_custom_call.1} parent=1 // pred_check_branch
      %75 = sbr.rel (0) target = $region49
    $region48: #{tpu_custom_call.1} parent=1 // pred_region
      _
    $region49: #{tpu_custom_call.1} parent=1 // pred_fallthru
      _
    // Predicated region
    $region50: #{tpu_custom_call.1} parent=1 // pred_check
      _
    $region51: #{tpu_custom_call.1} parent=1 // pred_check_branch
      %77 = sbr.rel (0) target = $region53
    $region52: #{tpu_custom_call.1} parent=1 // pred_region
      _
    $region53: #{tpu_custom_call.1} parent=1 // pred_fallthru
      _
    // Predicated region
    $region54: #{tpu_custom_call.1} parent=1 // pred_check
      _
    $region55: #{tpu_custom_call.1} parent=1 // pred_check_branch
      %79 = sbr.rel (0) target = $region57
    $region56: #{tpu_custom_call.1} parent=1 // pred_region
      _
    $region57: #{tpu_custom_call.1} parent=1 // pred_fallthru
      _
    // Predicated region
    $region58: #{tpu_custom_call.1} parent=1 // pred_check
      _
    $region59: #{tpu_custom_call.1} parent=1 // pred_check_branch
      %81 = sbr.rel (0) target = $region61
    $region60: #{tpu_custom_call.1} parent=1 // pred_region
      %83 = vsyncadd [#allocation6], 0
      %s84 = sshll.u32 %s14, 4
      %s85 = int_to_ptr.hbm [resolvable:$true] %s84
      %s86 = sshll.u32 [#allocation7], 4
      %s87 = int_to_ptr.vmem [resolvable:$true] %s86
      %92 = dma.hbm_to_vmem [thread:$0]  %s85, 32, %s87, [#allocation6], 16, 16, 1
    $region61: #{tpu_custom_call.1} parent=1 // pred_fallthru
      _
    // Predicated region
    $region62: #{tpu_custom_call.1} parent=1 // pred_check
      _
    $region63: #{tpu_custom_call.1} parent=1 // pred_check_branch
      %94 = sbr.rel (0) target = $region65
    $region64: #{tpu_custom_call.1} parent=1 // pred_region
      _
    $region65: #{tpu_custom_call.1} parent=1 // pred_fallthru
      _
    // Predicated region
    $region66: #{tpu_custom_call.1} parent=1 // pred_check
      _
    $region67: #{tpu_custom_call.1} parent=1 // pred_check_branch
      %96 = sbr.rel (0) target = $region69
    $region68: #{tpu_custom_call.1} parent=1 // pred_region
      _
    $region69: #{tpu_custom_call.1} parent=1 // pred_fallthru
      _
    // Predicated region
    $region70: #{tpu_custom_call.1} parent=1 // pred_check
      _
    $region71: #{tpu_custom_call.1} parent=1 // pred_check_branch
      %98 = sbr.rel (0) target = $region73
    $region72: #{tpu_custom_call.1} parent=1 // pred_region
      _
    $region73: #{tpu_custom_call.1} parent=1 // pred_fallthru
      _
    // Predicated region
    $region74: #{tpu_custom_call.1} parent=1 // pred_check
      _
    $region75: #{tpu_custom_call.1} parent=1 // pred_check_branch
      %100 = sbr.rel (0) target = $region77
    $region76: #{tpu_custom_call.1} parent=1 // pred_region
      _
    $region77: #{tpu_custom_call.1} parent=1 // pred_fallthru
      _
    // Predicated region
    $region78: #{tpu_custom_call.1} parent=1 // pred_check
      _
    $region79: #{tpu_custom_call.1} parent=1 // pred_check_branch
      %102 = sbr.rel (0) target = $region81
    $region80: #{tpu_custom_call.1} parent=1 // pred_region
      %104 = vsyncadd [#allocation9], 0
      %s105 = sshll.u32 %s19, 4
      %s106 = int_to_ptr.hbm [resolvable:$true] %s105
      %s107 = sshll.u32 [#allocation8], 4
      %s108 = int_to_ptr.vmem [resolvable:$true] %s107
      %113 = dma.hbm_to_vmem [thread:$0]  %s106, 4096, %s108, [#allocation9], 1024, 1024, 64
    $region81: #{tpu_custom_call.1} parent=1 // pred_fallthru
      _
    // Predicated region
    $region82: #{tpu_custom_call.1} parent=1 // pred_check
      _
    $region83: #{tpu_custom_call.1} parent=1 // pred_check_branch
      %115 = sbr.rel (0) target = $region85
    $region84: #{tpu_custom_call.1} parent=1 // pred_region
      _
    $region85: #{tpu_custom_call.1} parent=1 // pred_fallthru
      _
    // Predicated region
    $region86: #{tpu_custom_call.1} parent=1 // pred_check
      _
    $region87: #{tpu_custom_call.1} parent=1 // pred_check_branch
      %117 = sbr.rel (0) target = $region89
    $region88: #{tpu_custom_call.1} parent=1 // pred_region
      %119 = dma.done [#allocation3], 32
    $region89: #{tpu_custom_call.1} parent=1 // pred_fallthru
      _
    // Predicated region
    $region90: #{tpu_custom_call.1} parent=1 // pred_check
      _
    $region91: #{tpu_custom_call.1} parent=1 // pred_check_branch
      %121 = sbr.rel (0) target = $region93
    $region92: #{tpu_custom_call.1} parent=1 // pred_region
      %123 = dma.done [#allocation6], 32
    $region93: #{tpu_custom_call.1} parent=1 // pred_fallthru
      _
    // Predicated region
    $region94: #{tpu_custom_call.1} parent=1 // pred_check
      _
    $region95: #{tpu_custom_call.1} parent=1 // pred_check_branch
      %125 = sbr.rel (0) target = $region97
    $region96: #{tpu_custom_call.1} parent=1 // pred_region
      %127 = dma.done [#allocation6], 32
    $region97: #{tpu_custom_call.1} parent=1 // pred_fallthru
      _
    // Predicated region
    $region98: #{tpu_custom_call.1} parent=1 // pred_check
      _
    $region99: #{tpu_custom_call.1} parent=1 // pred_check_branch
      %129 = sbr.rel (0) target = $region101
    $region100: #{tpu_custom_call.1} parent=1 // pred_region
      %131 = dma.done [#allocation9], 4096
    $region101: #{tpu_custom_call.1} parent=1 // pred_fallthru
      _
    %v133 = vld [vmem:[%s0] sm:$0xff]
    %v134 = vld [vmem:[%s0 + $0x8] sm:$0xf]
    %v135 = vld [vmem:[%s1] sm:$0x1]
    %v136 = vld [vmem:[#allocation2] sm:$0x1]
    %vm137 = vcmask 261120
    %v138 = vsel %vm137, %v133, 0.0
    %139 = vadd.xlane.f32.xlu0 %v138
    %v140 = vpop.xlane.xlu0 %139
    %vm141 = vcmask 257024
    %v142 = vsel %vm141, %v134, 0.0
    %143 = vadd.xlane.f32.xlu0 %v142
    %v144 = vpop.xlane.xlu0 %143
    %v145 = vrcp.pop 32.0
    %v146 = vmul.f32 32.0, %v145
    %v147 = vsub.f32 1.0, %v146
    %v148 = vmul.f32 %v145, %v147
    %v149 = vadd.f32 %v145, %v148
    %vm150 = vweird.f32 %v145
    %v151 = vsel %vm150, %v145, %v149
    %v152 = vmul.f32 %v140, %v151
    %v153 = vmul.f32 %v144, %v151
    %v154 = vsub.f32 %v133, %v152
    %v155 = vsub.f32 %v134, %v153
    %v156 = vmul.f32 %v154, %v154
    %v157 = vmul.f32 %v155, %v155
    %v158 = vsel %vm137, %v156, 0.0
    %159 = vadd.xlane.f32.xlu0 %v158
    %v160 = vpop.xlane.xlu0 %159
    %v161 = vsel %vm141, %v157, 0.0
    %162 = vadd.xlane.f32.xlu0 %v161
    %v163 = vpop.xlane.xlu0 %162
    %v164 = vmul.f32 %v160, %v151
    %v165 = vmul.f32 %v163, %v151
    %v166 = vadd.f32 %v164, 1e-05
    %v167 = vadd.f32 %v165, 1e-05
    %v168 = vrsqrt.pop %v166
    %v169 = vmul.f32 %v168, %v166
    %v170 = vmul.f32 %v169, %v168
    %v171 = vmul.f32 0.5, %v170
    %v172 = vsub.f32 1.5, %v171
    %v173 = vmul.f32 %v168, %v172
    %vm174 = vweird.f32 %v166
    %vm175 = vweird.f32 %v168
    %vm176 = vmor %vm174, %vm175
    %v177 = vsel %vm176, %v168, %v173
    %v178 = vrsqrt.pop %v167
    %v179 = vmul.f32 %v178, %v167
    %v180 = vmul.f32 %v179, %v178
    %v181 = vmul.f32 0.5, %v180
    %v182 = vsub.f32 1.5, %v181
    %v183 = vmul.f32 %v178, %v182
    %vm184 = vweird.f32 %v167
    %vm185 = vweird.f32 %v178
    %vm186 = vmor %vm184, %vm185
    %v187 = vsel %vm186, %v178, %v183
    %v188 = vmul.f32 %v154, %v177
    %v189 = vmul.f32 %v155, %v187
    %v191 = vperm.slane %v135, 0
    %v193 = vmul.f32 %v188, %v191
    %v194 = vmul.f32 %v189, %v191
    %v196 = vperm.slane %v136, 0
    %v198 = vadd.f32 %v193, %v196
    %v199 = vadd.f32 %v194, %v196
    %v200 = vpack.c.bf16 %v199, %v198
    %v201 = vld [vmem:[%s3] sm:$0xf]
    %v202 = vld [vmem:[%s3 + $0x4] sm:$0xf]
    %v203 = vld [vmem:[%s3 + $0x8] sm:$0xf]
    %v204 = vld [vmem:[%s3 + $0xc] sm:$0xf]
    %v205 = vld [vmem:[#allocation5] sm:$0x1]
    %v207 = vperm.slane %v205, 0
    %v213 = vunpack.c.l.b16 %v201
    %v214 = vunpack.c.l.b16 %v202
    %v215 = vunpack.c.l.b16 %v203
    %v216 = vunpack.c.l.b16 %v204
    %v217 = vpack.c.b16 %v214, %v213
    %v218 = vpack.c.b16 %v216, %v215
    %v222 = vsel %vm137, %v200, 0
    %224 = vmatpush.bf16.msra.mxu0 0
    %225 = vmatpush.bf16.msra.mxu0 0
    %226 = vmatpush.bf16.msra.mxu0 0
    %227 = vmatpush.bf16.msra.mxu0 0
    %228 = vmatpush.bf16.msra.mxu0 0
    %229 = vmatpush.bf16.msra.mxu0 0
    %230 = vmatpush.bf16.msra.mxu0 %v218
    %231 = vmatpush.bf16.msra.mxu0 %v217
    %232 = vmatmul.bf16.gmra.mxu0 %v222
    %v233 = vpop.f32.mrf.mxu0
    %v234 = vadd.f32 %v207, %v233
    %v235 = vpop.f32.mrf.mxu0
    %v236 = vadd.f32 %v207, %v235
    %237 = vdwg.mxu0
    %v238 = vld [vmem:[%s5] sm:$0xf]
    %v239 = vld [vmem:[%s5 + $0x4] sm:$0xf]
    %v240 = vld [vmem:[%s5 + $0x8] sm:$0xf]
    %v241 = vld [vmem:[%s5 + $0xc] sm:$0xf]
    %v242 = vld [vmem:[%s6] sm:$0xff]
    %v243 = vld [vmem:[%s6 + $0x8] sm:$0xff]
    %v244 = vld [vmem:[%s6 + $0x10] sm:$0xff]
    %v245 = vld [vmem:[%s6 + $0x18] sm:$0xff]
    %247 = vset.pattern.permute.xlu0 0
    %248 = vperm.xlu0 %247, %v242
    %v249 = vpop.permute.xlu0 %248
    %252 = vset.pattern.permute.xlu0 0
    %253 = vperm.xlu0 %252, %v243
    %v254 = vpop.permute.xlu0 %253
    %257 = vset.pattern.permute.xlu0 0
    %258 = vperm.xlu0 %257, %v244
    %v259 = vpop.permute.xlu0 %258
    %262 = vset.pattern.permute.xlu0 0
    %263 = vperm.xlu0 %262, %v245
    %v264 = vpop.permute.xlu0 %263
    %v270 = vunpack.c.l.b16 %v238
    %v271 = vunpack.c.l.b16 %v239
    %v272 = vunpack.c.l.b16 %v240
    %v273 = vunpack.c.l.b16 %v241
    %v274 = vpack.c.b16 %v271, %v270
    %v275 = vpack.c.b16 %v273, %v272
    %v277 = vsel %vm137, %v274, 0
    %v280 = vsel %vm137, %v275, 0
    %282 = vmatpush.bf16.xpose.msra.mxu0 0
    %283 = vmatpush.bf16.xpose.msra.mxu0 0
    %284 = vmatpush.bf16.xpose.msra.mxu0 0
    %285 = vmatpush.bf16.xpose.msra.mxu0 0
    %286 = vmatpush.bf16.xpose.msra.mxu0 0
    %287 = vmatpush.bf16.xpose.msra.mxu0 0
    %288 = vmatpush.bf16.xpose.msra.mxu0 0
    %289 = vmatpush.bf16.xpose.msra.mxu0 %v222
    %290 = vmatmul.bf16.gmra.mxu0 %v277
    %v291 = vpop.f32.mrf.mxu0
    %v292 = vadd.f32 %v249, %v291
    %v293 = vpop.f32.mrf.mxu0
    %v294 = vadd.f32 %v254, %v293
    %295 = vmatmul.bf16.gmra.mxu0 %v280
    %v296 = vpop.f32.mrf.mxu0
    %v297 = vadd.f32 %v259, %v296
    %v298 = vpop.f32.mrf.mxu0
    %v299 = vadd.f32 %v264, %v298
    %300 = vdwg.mxu0
    %v301 = vld [vmem:[%s7] sm:$0xf]
    %v302 = vld [vmem:[%s7 + $0x4] sm:$0xf]
    %v303 = vld [vmem:[%s7 + $0x8] sm:$0xf]
    %v304 = vld [vmem:[%s7 + $0xc] sm:$0xf]
    %v305 = vld [vmem:[%s8] sm:$0x1]
    %v307 = vperm.slane %v305, 0
    %v313 = vunpack.c.l.b16 %v301
    %v314 = vunpack.c.l.b16 %v302
    %v315 = vunpack.c.l.b16 %v303
    %v316 = vunpack.c.l.b16 %v304
    %v317 = vpack.c.b16 %v314, %v313
    %v318 = vpack.c.b16 %v316, %v315
    %321 = vmatpush.bf16.msra.mxu0 0
    %322 = vmatpush.bf16.msra.mxu0 0
    %323 = vmatpush.bf16.msra.mxu0 0
    %324 = vmatpush.bf16.msra.mxu0 0
    %325 = vmatpush.bf16.msra.mxu0 0
    %326 = vmatpush.bf16.msra.mxu0 0
    %327 = vmatpush.bf16.msra.mxu0 %v318
    %328 = vmatpush.bf16.msra.mxu0 %v317
    %329 = vmatmul.bf16.gmra.mxu0 %v222
    %v330 = vpop.f32.mrf.mxu0
    %v331 = vadd.f32 %v307, %v330
    %v332 = vpop.f32.mrf.mxu0
    %v333 = vadd.f32 %v307, %v332
    %334 = vdwg.mxu0
    %v335 = vpack.c.bf16 %v234, %v234
    %v336 = vpack.c.bf16 %v236, %v236
    %v337 = vpack.c.bf16 %v292, %v292
    %v338 = vpack.c.bf16 %v294, %v294
    %v339 = vpack.c.bf16 %v297, %v297
    %v340 = vpack.c.bf16 %v299, %v299
    %v341 = vpack.c.bf16 %v331, %v331
    %v342 = vpack.c.bf16 %v333, %v333
    %v345 = vunpack.c.l.b16 %v335
    %v346 = vunpack.c.l.b16 %v336
    %v347 = vpack.c.b16 %v346, %v345
    %vm348 = vcmask 64512
    %v350 = vsel %vm348, %v347, 0
    %vm352 = vcmask 1043456
    %v354 = vsel %vm352, %v337, 0
    %356 = vmatpush.bf16.msra.mxu0 0
    %357 = vmatpush.bf16.msra.mxu0 0
    %358 = vmatpush.bf16.msra.mxu0 0
    %359 = vmatpush.bf16.msra.mxu0 0
    %360 = vmatpush.bf16.msra.mxu0 0
    %361 = vmatpush.bf16.msra.mxu0 0
    %362 = vmatpush.bf16.msra.mxu0 0
    %363 = vmatpush.bf16.msra.mxu0 %v354
    %364 = vmatmul.bf16.gmra.mxu0 %v350
    %v365 = vpop.f32.mrf.mxu0
    %v366 = vadd.f32 0.0, %v365
    %v367 = vpop.f32.mrf.mxu0
    %v368 = vadd.f32 0.0, %v367
    %369 = vdwg.mxu0
    %vm370 = vcmask 97280
    %v371 = vsel %vm370, %v366, -inf
    %372 = vmax.xlane.f32.xlu0 %v371
    %v373 = vpop.xlane.xlu0 %372
    %vm374 = vcmask 93184
    %v375 = vsel %vm374, %v368, -inf
    %376 = vmax.xlane.f32.xlu0 %v375
    %v377 = vpop.xlane.xlu0 %376
    %v378 = vsub.f32 %v366, %v373
    %v379 = vsub.f32 %v368, %v377
    %v380 = vmul.f32 %v378, 1.442695
    %v381 = vpow.pop %v380
    %v382 = vmul.f32 %v379, 1.442695
    %v383 = vpow.pop %v382
    %v384 = vsel %vm370, %v381, 0.0
    %385 = vadd.xlane.f32.xlu0 %v384
    %v386 = vpop.xlane.xlu0 %385
    %v387 = vsel %vm374, %v383, 0.0
    %388 = vadd.xlane.f32.xlu0 %v387
    %v389 = vpop.xlane.xlu0 %388
    %v390 = vrcp.pop %v386
    %v391 = vrcp.pop %v389
    %v392 = vmul.f32 %v381, %v390
    %v393 = vmul.f32 %v383, %v391
    %v394 = vpack.c.bf16 %v393, %v392
    %v397 = vunpack.c.l.b16 %v341
    %v398 = vunpack.c.l.b16 %v342
    %v399 = vpack.c.b16 %v398, %v397
    %v401 = vsel %vm370, %v394, 0
    %vm403 = vcmask 1045504
    %v405 = vsel %vm403, %v399, 0
    %407 = vmatpush.bf16.msra.mxu0 0
    %408 = vmatpush.bf16.msra.mxu0 0
    %409 = vmatpush.bf16.msra.mxu0 0
    %410 = vmatpush.bf16.msra.mxu0 0
    %411 = vmatpush.bf16.msra.mxu0 0
    %412 = vmatpush.bf16.msra.mxu0 0
    %413 = vmatpush.bf16.msra.mxu0 0
    %414 = vmatpush.bf16.msra.mxu0 %v405
    %415 = vmatmul.bf16.gmra.mxu0 %v401
    %v416 = vpop.f32.mrf.mxu0
    %v417 = vadd.f32 0.0, %v416
    %v418 = vpop.f32.mrf.mxu0
    %v419 = vadd.f32 0.0, %v418
    %420 = vdwg.mxu0
    %421 = vrot.lane.b32.xlu0 %v347, 120
    %v422 = vpop.permute.xlu0 %421
    %v424 = vsel %vm348, %v422, 0
    %v427 = vsel %vm352, %v338, 0
    %429 = vmatpush.bf16.msra.mxu0 0
    %430 = vmatpush.bf16.msra.mxu0 0
    %431 = vmatpush.bf16.msra.mxu0 0
    %432 = vmatpush.bf16.msra.mxu0 0
    %433 = vmatpush.bf16.msra.mxu0 0
    %434 = vmatpush.bf16.msra.mxu0 0
    %435 = vmatpush.bf16.msra.mxu0 0
    %436 = vmatpush.bf16.msra.mxu0 %v427
    %437 = vmatmul.bf16.gmra.mxu0 %v424
    %v438 = vpop.f32.mrf.mxu0
    %v439 = vadd.f32 0.0, %v438
    %v440 = vpop.f32.mrf.mxu0
    %v441 = vadd.f32 0.0, %v440
    %442 = vdwg.mxu0
    %v443 = vsel %vm370, %v439, -inf
    %444 = vmax.xlane.f32.xlu0 %v443
    %v445 = vpop.xlane.xlu0 %444
    %v446 = vsel %vm374, %v441, -inf
    %447 = vmax.xlane.f32.xlu0 %v446
    %v448 = vpop.xlane.xlu0 %447
    %v449 = vsub.f32 %v439, %v445
    %v450 = vsub.f32 %v441, %v448
    %v451 = vmul.f32 %v449, 1.442695
    %v452 = vpow.pop %v451
    %v453 = vmul.f32 %v450, 1.442695
    %v454 = vpow.pop %v453
    %v455 = vsel %vm370, %v452, 0.0
    %456 = vadd.xlane.f32.xlu0 %v455
    %v457 = vpop.xlane.xlu0 %456
    %v458 = vsel %vm374, %v454, 0.0
    %459 = vadd.xlane.f32.xlu0 %v458
    %v460 = vpop.xlane.xlu0 %459
    %v461 = vrcp.pop %v457
    %v462 = vrcp.pop %v460
    %v463 = vmul.f32 %v452, %v461
    %v464 = vmul.f32 %v454, %v462
    %v465 = vpack.c.bf16 %v464, %v463
    %466 = vrot.lane.b32.xlu0 %v399, 120
    %v467 = vpop.permute.xlu0 %466
    %v469 = vsel %vm370, %v465, 0
    %v472 = vsel %vm403, %v467, 0
    %474 = vmatpush.bf16.msra.mxu0 0
    %475 = vmatpush.bf16.msra.mxu0 0
    %476 = vmatpush.bf16.msra.mxu0 0
    %477 = vmatpush.bf16.msra.mxu0 0
    %478 = vmatpush.bf16.msra.mxu0 0
    %479 = vmatpush.bf16.msra.mxu0 0
    %480 = vmatpush.bf16.msra.mxu0 0
    %481 = vmatpush.bf16.msra.mxu0 %v472
    %482 = vmatmul.bf16.gmra.mxu0 %v469
    %v483 = vpop.f32.mrf.mxu0
    %v484 = vadd.f32 0.0, %v483
    %v485 = vpop.f32.mrf.mxu0
    %v486 = vadd.f32 0.0, %v485
    %487 = vdwg.mxu0
    %488 = vrot.lane.b32.xlu0 %v347, 112
    %v489 = vpop.permute.xlu0 %488
    %v491 = vsel %vm348, %v489, 0
    %v494 = vsel %vm352, %v339, 0
    %496 = vmatpush.bf16.msra.mxu0 0
    %497 = vmatpush.bf16.msra.mxu0 0
    %498 = vmatpush.bf16.msra.mxu0 0
    %499 = vmatpush.bf16.msra.mxu0 0
    %500 = vmatpush.bf16.msra.mxu0 0
    %501 = vmatpush.bf16.msra.mxu0 0
    %502 = vmatpush.bf16.msra.mxu0 0
    %503 = vmatpush.bf16.msra.mxu0 %v494
    %504 = vmatmul.bf16.gmra.mxu0 %v491
    %v505 = vpop.f32.mrf.mxu0
    %v506 = vadd.f32 0.0, %v505
    %v507 = vpop.f32.mrf.mxu0
    %v508 = vadd.f32 0.0, %v507
    %509 = vdwg.mxu0
    %v510 = vsel %vm370, %v506, -inf
    %511 = vmax.xlane.f32.xlu0 %v510
    %v512 = vpop.xlane.xlu0 %511
    %v513 = vsel %vm374, %v508, -inf
    %514 = vmax.xlane.f32.xlu0 %v513
    %v515 = vpop.xlane.xlu0 %514
    %v516 = vsub.f32 %v506, %v512
    %v517 = vsub.f32 %v508, %v515
    %v518 = vmul.f32 %v516, 1.442695
    %v519 = vpow.pop %v518
    %v520 = vmul.f32 %v517, 1.442695
    %v521 = vpow.pop %v520
    %v522 = vsel %vm370, %v519, 0.0
    %523 = vadd.xlane.f32.xlu0 %v522
    %v524 = vpop.xlane.xlu0 %523
    %v525 = vsel %vm374, %v521, 0.0
    %526 = vadd.xlane.f32.xlu0 %v525
    %v527 = vpop.xlane.xlu0 %526
    %v528 = vrcp.pop %v524
    %v529 = vrcp.pop %v527
    %v530 = vmul.f32 %v519, %v528
    %v531 = vmul.f32 %v521, %v529
    %v532 = vpack.c.bf16 %v531, %v530
    %533 = vrot.lane.b32.xlu0 %v399, 112
    %v534 = vpop.permute.xlu0 %533
    %v536 = vsel %vm370, %v532, 0
    %v539 = vsel %vm403, %v534, 0
    %541 = vmatpush.bf16.msra.mxu0 0
    %542 = vmatpush.bf16.msra.mxu0 0
    %543 = vmatpush.bf16.msra.mxu0 0
    %544 = vmatpush.bf16.msra.mxu0 0
    %545 = vmatpush.bf16.msra.mxu0 0
    %546 = vmatpush.bf16.msra.mxu0 0
    %547 = vmatpush.bf16.msra.mxu0 0
    %548 = vmatpush.bf16.msra.mxu0 %v539
    %549 = vmatmul.bf16.gmra.mxu0 %v536
    %v550 = vpop.f32.mrf.mxu0
    %v551 = vadd.f32 0.0, %v550
    %v552 = vpop.f32.mrf.mxu0
    %v553 = vadd.f32 0.0, %v552
    %554 = vdwg.mxu0
    %555 = vrot.lane.b32.xlu0 %v347, 104
    %v556 = vpop.permute.xlu0 %555
    %v558 = vsel %vm348, %v556, 0
    %v561 = vsel %vm352, %v340, 0
    %563 = vmatpush.bf16.msra.mxu0 0
    %564 = vmatpush.bf16.msra.mxu0 0
    %565 = vmatpush.bf16.msra.mxu0 0
    %566 = vmatpush.bf16.msra.mxu0 0
    %567 = vmatpush.bf16.msra.mxu0 0
    %568 = vmatpush.bf16.msra.mxu0 0
    %569 = vmatpush.bf16.msra.mxu0 0
    %570 = vmatpush.bf16.msra.mxu0 %v561
    %571 = vmatmul.bf16.gmra.mxu0 %v558
    %v572 = vpop.f32.mrf.mxu0
    %v573 = vadd.f32 0.0, %v572
    %v574 = vpop.f32.mrf.mxu0
    %v575 = vadd.f32 0.0, %v574
    %576 = vdwg.mxu0
    %v577 = vsel %vm370, %v573, -inf
    %578 = vmax.xlane.f32.xlu0 %v577
    %v579 = vpop.xlane.xlu0 %578
    %v580 = vsel %vm374, %v575, -inf
    %581 = vmax.xlane.f32.xlu0 %v580
    %v582 = vpop.xlane.xlu0 %581
    %v583 = vsub.f32 %v573, %v579
    %v584 = vsub.f32 %v575, %v582
    %v585 = vmul.f32 %v583, 1.442695
    %v586 = vpow.pop %v585
    %v587 = vmul.f32 %v584, 1.442695
    %v588 = vpow.pop %v587
    %v589 = vsel %vm370, %v586, 0.0
    %590 = vadd.xlane.f32.xlu0 %v589
    %v591 = vpop.xlane.xlu0 %590
    %v592 = vsel %vm374, %v588, 0.0
    %593 = vadd.xlane.f32.xlu0 %v592
    %v594 = vpop.xlane.xlu0 %593
    %v595 = vrcp.pop %v591
    %v596 = vrcp.pop %v594
    %v597 = vmul.f32 %v586, %v595
    %v598 = vmul.f32 %v588, %v596
    %v599 = vpack.c.bf16 %v598, %v597
    %600 = vrot.lane.b32.xlu0 %v399, 104
    %v601 = vpop.permute.xlu0 %600
    %v603 = vsel %vm370, %v599, 0
    %v606 = vsel %vm403, %v601, 0
    %608 = vmatpush.bf16.msra.mxu0 0
    %609 = vmatpush.bf16.msra.mxu0 0
    %610 = vmatpush.bf16.msra.mxu0 0
    %611 = vmatpush.bf16.msra.mxu0 0
    %612 = vmatpush.bf16.msra.mxu0 0
    %613 = vmatpush.bf16.msra.mxu0 0
    %614 = vmatpush.bf16.msra.mxu0 0
    %615 = vmatpush.bf16.msra.mxu0 %v606
    %616 = vmatmul.bf16.gmra.mxu0 %v603
    %v617 = vpop.f32.mrf.mxu0
    %v618 = vadd.f32 0.0, %v617
    %v619 = vpop.f32.mrf.mxu0
    %v620 = vadd.f32 0.0, %v619
    %621 = vdwg.mxu0
    %624 = vrot.lane.b32.xlu0 %v484, 8
    %v625 = vpop.permute.xlu0 %624
    %626 = vrot.lane.b32.xlu0 %v486, 8
    %v627 = vpop.permute.xlu0 %626
    %632 = vrot.lane.b32.xlu0 %v551, 16
    %v633 = vpop.permute.xlu0 %632
    %634 = vrot.lane.b32.xlu0 %v553, 16
    %v635 = vpop.permute.xlu0 %634
    %640 = vrot.lane.b32.xlu0 %v618, 24
    %v641 = vpop.permute.xlu0 %640
    %642 = vrot.lane.b32.xlu0 %v620, 24
    %v643 = vpop.permute.xlu0 %642
    %v646 = vsel %vm348, %v417, %v625
    %v647 = vsel %vm348, %v419, %v627
    %vm648 = vcmask 130048
    %v649 = vsel %vm648, %v646, %v633
    %v650 = vsel %vm648, %v647, %v635
    %vm651 = vcmask 195584
    %v652 = vsel %vm651, %v649, %v641
    %v653 = vsel %vm651, %v650, %v643
    %v654 = vpack.c.bf16 %v653, %v652
    %v655 = vld [vmem:[%s9] sm:$0xf]
    %v656 = vld [vmem:[%s9 + $0x4] sm:$0xf]
    %v657 = vld [vmem:[%s9 + $0x8] sm:$0xf]
    %v658 = vld [vmem:[%s9 + $0xc] sm:$0xf]
    %v659 = vld [vmem:[%s10] sm:$0x1]
    %v661 = vperm.slane %v659, 0
    %v667 = vunpack.c.l.b16 %v655
    %v668 = vunpack.c.l.b16 %v656
    %v669 = vunpack.c.l.b16 %v657
    %v670 = vunpack.c.l.b16 %v658
    %v671 = vpack.c.b16 %v668, %v667
    %v672 = vpack.c.b16 %v670, %v669
    %v676 = vsel %vm137, %v654, 0
    %678 = vmatpush.bf16.msra.mxu0 0
    %679 = vmatpush.bf16.msra.mxu0 0
    %680 = vmatpush.bf16.msra.mxu0 0
    %681 = vmatpush.bf16.msra.mxu0 0
    %682 = vmatpush.bf16.msra.mxu0 0
    %683 = vmatpush.bf16.msra.mxu0 0
    %684 = vmatpush.bf16.msra.mxu0 %v672
    %685 = vmatpush.bf16.msra.mxu0 %v671
    %686 = vmatmul.bf16.gmra.mxu0 %v676
    %v687 = vpop.f32.mrf.mxu0
    %v688 = vadd.f32 %v661, %v687
    %v689 = vpop.f32.mrf.mxu0
    %v690 = vadd.f32 %v661, %v689
    %691 = vdwg.mxu0
    %v692 = vadd.f32 %v133, %v688
    %v693 = vadd.f32 %v134, %v690
    %v694 = vld [vmem:[%s11] sm:$0x1]
    %v695 = vld [vmem:[%s12] sm:$0x1]
    %v696 = vsel %vm137, %v692, 0.0
    %697 = vadd.xlane.f32.xlu0 %v696
    %v698 = vpop.xlane.xlu0 %697
    %v699 = vsel %vm141, %v693, 0.0
    %700 = vadd.xlane.f32.xlu0 %v699
    %v701 = vpop.xlane.xlu0 %700
    %v702 = vmul.f32 %v698, %v151
    %v703 = vmul.f32 %v701, %v151
    %v704 = vsub.f32 %v692, %v702
    %v705 = vsub.f32 %v693, %v703
    %v706 = vmul.f32 %v704, %v704
    %v707 = vmul.f32 %v705, %v705
    %v708 = vsel %vm137, %v706, 0.0
    %709 = vadd.xlane.f32.xlu0 %v708
    %v710 = vpop.xlane.xlu0 %709
    %v711 = vsel %vm141, %v707, 0.0
    %712 = vadd.xlane.f32.xlu0 %v711
    %v713 = vpop.xlane.xlu0 %712
    %v714 = vmul.f32 %v710, %v151
    %v715 = vmul.f32 %v713, %v151
    %v716 = vadd.f32 %v714, 1e-05
    %v717 = vadd.f32 %v715, 1e-05
    %v718 = vrsqrt.pop %v716
    %v719 = vmul.f32 %v718, %v716
    %v720 = vmul.f32 %v719, %v718
    %v721 = vmul.f32 0.5, %v720
    %v722 = vsub.f32 1.5, %v721
    %v723 = vmul.f32 %v718, %v722
    %vm724 = vweird.f32 %v716
    %vm725 = vweird.f32 %v718
    %vm726 = vmor %vm724, %vm725
    %v727 = vsel %vm726, %v718, %v723
    %v728 = vrsqrt.pop %v717
    %v729 = vmul.f32 %v728, %v717
    %v730 = vmul.f32 %v729, %v728
    %v731 = vmul.f32 0.5, %v730
    %v732 = vsub.f32 1.5, %v731
    %v733 = vmul.f32 %v728, %v732
    %vm734 = vweird.f32 %v717
    %vm735 = vweird.f32 %v728
    %vm736 = vmor %vm734, %vm735
    %v737 = vsel %vm736, %v728, %v733
    %v738 = vmul.f32 %v704, %v727
    %v739 = vmul.f32 %v705, %v737
    %v741 = vperm.slane %v694, 0
    %v743 = vmul.f32 %v738, %v741
    %v744 = vmul.f32 %v739, %v741
    %v746 = vperm.slane %v695, 0
    %v748 = vadd.f32 %v743, %v746
    %v749 = vadd.f32 %v744, %v746
    %v750 = vpack.c.bf16 %v749, %v748
    %v751 = vld [vmem:[%s13] sm:$0xf]
    %v752 = vld [vmem:[%s13 + $0x4] sm:$0xf]
    %v753 = vld [vmem:[%s13 + $0x8] sm:$0xf]
    %v754 = vld [vmem:[%s13 + $0xc] sm:$0xf]
    %v755 = vld [vmem:[#allocation7] sm:$0x1]
    %v757 = vperm.slane %v755, 0
    %v763 = vunpack.c.l.b16 %v751
    %v764 = vunpack.c.l.b16 %v752
    %v765 = vunpack.c.l.b16 %v753
    %v766 = vunpack.c.l.b16 %v754
    %v767 = vpack.c.b16 %v764, %v763
    %v768 = vpack.c.b16 %v766, %v765
    %v772 = vsel %vm137, %v750, 0
    %774 = vmatpush.bf16.msra.mxu0 0
    %775 = vmatpush.bf16.msra.mxu0 0
    %776 = vmatpush.bf16.msra.mxu0 0
    %777 = vmatpush.bf16.msra.mxu0 0
    %778 = vmatpush.bf16.msra.mxu0 0
    %779 = vmatpush.bf16.msra.mxu0 0
    %780 = vmatpush.bf16.msra.mxu0 %v768
    %781 = vmatpush.bf16.msra.mxu0 %v767
    %782 = vmatmul.bf16.gmra.mxu0 %v772
    %v783 = vpop.f32.mrf.mxu0
    %v784 = vadd.f32 %v757, %v783
    %v785 = vpop.f32.mrf.mxu0
    %v786 = vadd.f32 %v757, %v785
    %787 = vdwg.mxu0
    %v788 = vmul.f32 %v784, 0.5
    %v789 = vmul.f32 %v786, 0.5
    %v790 = vmul.f32 %v784, 0.70710677
    %v791 = vmul.f32 %v786, 0.70710677
    %v792 = vmul.f32 %v790, %v790
    %v793 = vmin.f32 16.0, %v792
    %v794 = vmul.f32 %v793, 2.1237322e-06
    %v795 = vadd.f32 %v794, 0.00028619796
    %v796 = vmul.f32 %v793, %v795
    %v797 = vadd.f32 %v796, 0.0036580483
    %v798 = vmul.f32 %v793, %v797
    %v799 = vadd.f32 %v798, 0.05243302
    %v800 = vmul.f32 %v793, %v799
    %v801 = vadd.f32 %v800, 0.18741608
    %v802 = vmul.f32 %v793, %v801
    %v803 = vadd.f32 %v802, 1.1283791
    %v804 = vmul.f32 %v790, %v803
    %v805 = vmul.f32 %v793, 3.8918573e-05
    %v806 = vadd.f32 %v805, 0.001143296
    %v807 = vmul.f32 %v793, %v806
    %v808 = vadd.f32 %v807, 0.014752088
    %v809 = vmul.f32 %v793, %v808
    %v810 = vadd.f32 %v809, 0.112945676
    %v811 = vmul.f32 %v793, %v810
    %v812 = vadd.f32 %v811, 0.4994258
    %v813 = vmul.f32 %v793, %v812
    %v814 = vadd.f32 %v813, 1.0
    %v815 = vrcp.pop %v814
    %v816 = vmul.f32 %v814, %v815
    %v817 = vsub.f32 1.0, %v816
    %v818 = vmul.f32 %v815, %v817
    %v819 = vadd.f32 %v815, %v818
    %vm820 = vweird.f32 %v814
    %vm821 = vweird.f32 %v815
    %vm822 = vmor %vm820, %vm821
    %v823 = vsel %vm822, %v815, %v819
    %v824 = vand.u32 2147483647, %v814
    %vm825 = vcmp.eq.f32.partialorder %v824, 8.507059e+37
    %v826 = vand.u32 %v814, 2147483648
    %v827 = vor.u32 1.1754944e-38, %v826
    %v828 = vsel %vm825, %v827, %v823
    %v829 = vmul.f32 %v804, %v828
    %v830 = vmin.f32 %v829, 1.0
    %v831 = vmax.f32 %v830, -1.0
    %v832 = vmul.f32 %v791, %v791
    %v833 = vmin.f32 16.0, %v832
    %v834 = vmul.f32 %v833, 2.1237322e-06
    %v835 = vadd.f32 %v834, 0.00028619796
    %v836 = vmul.f32 %v833, %v835
    %v837 = vadd.f32 %v836, 0.0036580483
    %v838 = vmul.f32 %v833, %v837
    %v839 = vadd.f32 %v838, 0.05243302
    %v840 = vmul.f32 %v833, %v839
    %v841 = vadd.f32 %v840, 0.18741608
    %v842 = vmul.f32 %v833, %v841
    %v843 = vadd.f32 %v842, 1.1283791
    %v844 = vmul.f32 %v791, %v843
    %v845 = vmul.f32 %v833, 3.8918573e-05
    %v846 = vadd.f32 %v845, 0.001143296
    %v847 = vmul.f32 %v833, %v846
    %v848 = vadd.f32 %v847, 0.014752088
    %v849 = vmul.f32 %v833, %v848
    %v850 = vadd.f32 %v849, 0.112945676
    %v851 = vmul.f32 %v833, %v850
    %v852 = vadd.f32 %v851, 0.4994258
    %v853 = vmul.f32 %v833, %v852
    %v854 = vadd.f32 %v853, 1.0
    %v855 = vrcp.pop %v854
    %v856 = vmul.f32 %v854, %v855
    %v857 = vsub.f32 1.0, %v856
    %v858 = vmul.f32 %v855, %v857
    %v859 = vadd.f32 %v855, %v858
    %vm860 = vweird.f32 %v854
    %vm861 = vweird.f32 %v855
    %vm862 = vmor %vm860, %vm861
    %v863 = vsel %vm862, %v855, %v859
    %v864 = vand.u32 2147483647, %v854
    %vm865 = vcmp.eq.f32.partialorder %v864, 8.507059e+37
    %v866 = vand.u32 %v854, 2147483648
    %v867 = vor.u32 1.1754944e-38, %v866
    %v868 = vsel %vm865, %v867, %v863
    %v869 = vmul.f32 %v844, %v868
    %v870 = vmin.f32 %v869, 1.0
    %v871 = vmax.f32 %v870, -1.0
    %v872 = vadd.f32 %v831, 1.0
    %v873 = vadd.f32 %v871, 1.0
    %v874 = vmul.f32 %v788, %v872
    %v875 = vmul.f32 %v789, %v873
    %v876 = vpack.c.bf16 %v875, %v874
    %v877 = vld [vmem:[%s15] sm:$0xf]
    %v878 = vld [vmem:[%s15 + $0x4] sm:$0xf]
    %v879 = vld [vmem:[%s15 + $0x8] sm:$0xf]
    %v880 = vld [vmem:[%s15 + $0xc] sm:$0xf]
    %v881 = vld [vmem:[%s15 + $0x10] sm:$0xf]
    %v882 = vld [vmem:[%s15 + $0x14] sm:$0xf]
    %v883 = vld [vmem:[%s15 + $0x18] sm:$0xf]
    %v884 = vld [vmem:[%s15 + $0x1c] sm:$0xf]
    %v885 = vld [vmem:[%s15 + $0x20] sm:$0xf]
    %v886 = vld [vmem:[%s15 + $0x24] sm:$0xf]
    %v887 = vld [vmem:[%s15 + $0x28] sm:$0xf]
    %v888 = vld [vmem:[%s15 + $0x2c] sm:$0xf]
    %v889 = vld [vmem:[%s15 + $0x30] sm:$0xf]
    %v890 = vld [vmem:[%s15 + $0x34] sm:$0xf]
    %v891 = vld [vmem:[%s15 + $0x38] sm:$0xf]
    %v892 = vld [vmem:[%s15 + $0x3c] sm:$0xf]
    %v893 = vld [vmem:[%s16] sm:$0x1]
    %v895 = vperm.slane %v893, 0
    %v913 = vunpack.c.l.b16 %v877
    %v914 = vunpack.c.l.b16 %v878
    %v915 = vunpack.c.l.b16 %v879
    %v916 = vunpack.c.l.b16 %v880
    %v917 = vunpack.c.l.b16 %v881
    %v918 = vunpack.c.l.b16 %v882
    %v919 = vunpack.c.l.b16 %v883
    %v920 = vunpack.c.l.b16 %v884
    %v921 = vunpack.c.l.b16 %v885
    %v922 = vunpack.c.l.b16 %v886
    %v923 = vunpack.c.l.b16 %v887
    %v924 = vunpack.c.l.b16 %v888
    %v925 = vunpack.c.l.b16 %v889
    %v926 = vunpack.c.l.b16 %v890
    %v927 = vunpack.c.l.b16 %v891
    %v928 = vunpack.c.l.b16 %v892
    %v929 = vpack.c.b16 %v914, %v913
    %v930 = vpack.c.b16 %v916, %v915
    %v931 = vpack.c.b16 %v918, %v917
    %v932 = vpack.c.b16 %v920, %v919
    %v933 = vpack.c.b16 %v922, %v921
    %v934 = vpack.c.b16 %v924, %v923
    %v935 = vpack.c.b16 %v926, %v925
    %v936 = vpack.c.b16 %v928, %v927
    %945 = vmatpush.bf16.msra.mxu0 %v936
    %946 = vmatpush.bf16.msra.mxu0 %v935
    %947 = vmatpush.bf16.msra.mxu0 %v934
    %948 = vmatpush.bf16.msra.mxu0 %v933
    %949 = vmatpush.bf16.msra.mxu0 %v932
    %950 = vmatpush.bf16.msra.mxu0 %v931
    %951 = vmatpush.bf16.msra.mxu0 %v930
    %952 = vmatpush.bf16.msra.mxu0 %v929
    %953 = vmatmul.bf16.gmra.mxu0 %v876
    %v954 = vpop.f32.mrf.mxu0
    %v955 = vadd.f32 %v895, %v954
    %v956 = vpop.f32.mrf.mxu0
    %v957 = vadd.f32 %v895, %v956
    %958 = vdwg.mxu0
    %v959 = vadd.f32 %v692, %v955
    %v960 = vadd.f32 %v693, %v957
    %s961 = scalar_lea.vmem %s1, 1
    %v962 = vld [vmem:[%s961] sm:$0x1]
    %s963 = scalar_lea.vmem [#allocation2], 1
    %v964 = vld [vmem:[%s963] sm:$0x1]
    %v965 = vsel %vm137, %v959, 0.0
    %966 = vadd.xlane.f32.xlu0 %v965
    %v967 = vpop.xlane.xlu0 %966
    %v968 = vsel %vm141, %v960, 0.0
    %969 = vadd.xlane.f32.xlu0 %v968
    %v970 = vpop.xlane.xlu0 %969
    %v971 = vmul.f32 %v967, %v151
    %v972 = vmul.f32 %v970, %v151
    %v973 = vsub.f32 %v959, %v971
    %v974 = vsub.f32 %v960, %v972
    %v975 = vmul.f32 %v973, %v973
    %v976 = vmul.f32 %v974, %v974
    %v977 = vsel %vm137, %v975, 0.0
    %978 = vadd.xlane.f32.xlu0 %v977
    %v979 = vpop.xlane.xlu0 %978
    %v980 = vsel %vm141, %v976, 0.0
    %981 = vadd.xlane.f32.xlu0 %v980
    %v982 = vpop.xlane.xlu0 %981
    %v983 = vmul.f32 %v979, %v151
    %v984 = vmul.f32 %v982, %v151
    %v985 = vadd.f32 %v983, 1e-05
    %v986 = vadd.f32 %v984, 1e-05
    %v987 = vrsqrt.pop %v985
    %v988 = vmul.f32 %v987, %v985
    %v989 = vmul.f32 %v988, %v987
    %v990 = vmul.f32 0.5, %v989
    %v991 = vsub.f32 1.5, %v990
    %v992 = vmul.f32 %v987, %v991
    %vm993 = vweird.f32 %v985
    %vm994 = vweird.f32 %v987
    %vm995 = vmor %vm993, %vm994
    %v996 = vsel %vm995, %v987, %v992
    %v997 = vrsqrt.pop %v986
    %v998 = vmul.f32 %v997, %v986
    %v999 = vmul.f32 %v998, %v997
    %v1000 = vmul.f32 0.5, %v999
    %v1001 = vsub.f32 1.5, %v1000
    %v1002 = vmul.f32 %v997, %v1001
    %vm1003 = vweird.f32 %v986
    %vm1004 = vweird.f32 %v997
    %vm1005 = vmor %vm1003, %vm1004
    %v1006 = vsel %vm1005, %v997, %v1002
    %v1007 = vmul.f32 %v973, %v996
    %v1008 = vmul.f32 %v974, %v1006
    %v1010 = vperm.slane %v962, 0
    %v1012 = vmul.f32 %v1007, %v1010
    %v1013 = vmul.f32 %v1008, %v1010
    %v1015 = vperm.slane %v964, 0
    %v1017 = vadd.f32 %v1012, %v1015
    %v1018 = vadd.f32 %v1013, %v1015
    %v1019 = vpack.c.bf16 %v1018, %v1017
    %s1020 = scalar_lea.vmem %s3, 16
    %v1021 = vld [vmem:[%s1020] sm:$0xf]
    %v1022 = vld [vmem:[%s1020 + $0x4] sm:$0xf]
    %v1023 = vld [vmem:[%s1020 + $0x8] sm:$0xf]
    %v1024 = vld [vmem:[%s1020 + $0xc] sm:$0xf]
    %s1025 = scalar_lea.vmem [#allocation5], 1
    %v1026 = vld [vmem:[%s1025] sm:$0x1]
    %v1028 = vperm.slane %v1026, 0
    %v1034 = vunpack.c.l.b16 %v1021
    %v1035 = vunpack.c.l.b16 %v1022
    %v1036 = vunpack.c.l.b16 %v1023
    %v1037 = vunpack.c.l.b16 %v1024
    %v1038 = vpack.c.b16 %v1035, %v1034
    %v1039 = vpack.c.b16 %v1037, %v1036
    %v1043 = vsel %vm137, %v1019, 0
    %1045 = vmatpush.bf16.msra.mxu0 0
    %1046 = vmatpush.bf16.msra.mxu0 0
    %1047 = vmatpush.bf16.msra.mxu0 0
    %1048 = vmatpush.bf16.msra.mxu0 0
    %1049 = vmatpush.bf16.msra.mxu0 0
    %1050 = vmatpush.bf16.msra.mxu0 0
    %1051 = vmatpush.bf16.msra.mxu0 %v1039
    %1052 = vmatpush.bf16.msra.mxu0 %v1038
    %1053 = vmatmul.bf16.gmra.mxu0 %v1043
    %v1054 = vpop.f32.mrf.mxu0
    %v1055 = vadd.f32 %v1028, %v1054
    %v1056 = vpop.f32.mrf.mxu0
    %v1057 = vadd.f32 %v1028, %v1056
    %1058 = vdwg.mxu0
    %s1059 = scalar_lea.vmem %s5, 16
    %v1060 = vld [vmem:[%s1059] sm:$0xf]
    %v1061 = vld [vmem:[%s1059 + $0x4] sm:$0xf]
    %v1062 = vld [vmem:[%s1059 + $0x8] sm:$0xf]
    %v1063 = vld [vmem:[%s1059 + $0xc] sm:$0xf]
    %s1064 = scalar_lea.vmem %s6, 32
    %v1065 = vld [vmem:[%s1064] sm:$0xff]
    %v1066 = vld [vmem:[%s1064 + $0x8] sm:$0xff]
    %v1067 = vld [vmem:[%s1064 + $0x10] sm:$0xff]
    %v1068 = vld [vmem:[%s1064 + $0x18] sm:$0xff]
    %1070 = vset.pattern.permute.xlu0 0
    %1071 = vperm.xlu0 %1070, %v1065
    %v1072 = vpop.permute.xlu0 %1071
    %1075 = vset.pattern.permute.xlu0 0
    %1076 = vperm.xlu0 %1075, %v1066
    %v1077 = vpop.permute.xlu0 %1076
    %1080 = vset.pattern.permute.xlu0 0
    %1081 = vperm.xlu0 %1080, %v1067
    %v1082 = vpop.permute.xlu0 %1081
    %1085 = vset.pattern.permute.xlu0 0
    %1086 = vperm.xlu0 %1085, %v1068
    %v1087 = vpop.permute.xlu0 %1086
    %v1093 = vunpack.c.l.b16 %v1060
    %v1094 = vunpack.c.l.b16 %v1061
    %v1095 = vunpack.c.l.b16 %v1062
    %v1096 = vunpack.c.l.b16 %v1063
    %v1097 = vpack.c.b16 %v1094, %v1093
    %v1098 = vpack.c.b16 %v1096, %v1095
    %v1100 = vsel %vm137, %v1097, 0
    %v1103 = vsel %vm137, %v1098, 0
    %1105 = vmatpush.bf16.xpose.msra.mxu0 0
    %1106 = vmatpush.bf16.xpose.msra.mxu0 0
    %1107 = vmatpush.bf16.xpose.msra.mxu0 0
    %1108 = vmatpush.bf16.xpose.msra.mxu0 0
    %1109 = vmatpush.bf16.xpose.msra.mxu0 0
    %1110 = vmatpush.bf16.xpose.msra.mxu0 0
    %1111 = vmatpush.bf16.xpose.msra.mxu0 0
    %1112 = vmatpush.bf16.xpose.msra.mxu0 %v1043
    %1113 = vmatmul.bf16.gmra.mxu0 %v1100
    %v1114 = vpop.f32.mrf.mxu0
    %v1115 = vadd.f32 %v1072, %v1114
    %v1116 = vpop.f32.mrf.mxu0
    %v1117 = vadd.f32 %v1077, %v1116
    %1118 = vmatmul.bf16.gmra.mxu0 %v1103
    %v1119 = vpop.f32.mrf.mxu0
    %v1120 = vadd.f32 %v1082, %v1119
    %v1121 = vpop.f32.mrf.mxu0
    %v1122 = vadd.f32 %v1087, %v1121
    %1123 = vdwg.mxu0
    %s1124 = scalar_lea.vmem %s7, 16
    %v1125 = vld [vmem:[%s1124] sm:$0xf]
    %v1126 = vld [vmem:[%s1124 + $0x4] sm:$0xf]
    %v1127 = vld [vmem:[%s1124 + $0x8] sm:$0xf]
    %v1128 = vld [vmem:[%s1124 + $0xc] sm:$0xf]
    %s1129 = scalar_lea.vmem %s8, 1
    %v1130 = vld [vmem:[%s1129] sm:$0x1]
    %v1132 = vperm.slane %v1130, 0
    %v1138 = vunpack.c.l.b16 %v1125
    %v1139 = vunpack.c.l.b16 %v1126
    %v1140 = vunpack.c.l.b16 %v1127
    %v1141 = vunpack.c.l.b16 %v1128
    %v1142 = vpack.c.b16 %v1139, %v1138
    %v1143 = vpack.c.b16 %v1141, %v1140
    %1146 = vmatpush.bf16.msra.mxu0 0
    %1147 = vmatpush.bf16.msra.mxu0 0
    %1148 = vmatpush.bf16.msra.mxu0 0
    %1149 = vmatpush.bf16.msra.mxu0 0
    %1150 = vmatpush.bf16.msra.mxu0 0
    %1151 = vmatpush.bf16.msra.mxu0 0
    %1152 = vmatpush.bf16.msra.mxu0 %v1143
    %1153 = vmatpush.bf16.msra.mxu0 %v1142
    %1154 = vmatmul.bf16.gmra.mxu0 %v1043
    %v1155 = vpop.f32.mrf.mxu0
    %v1156 = vadd.f32 %v1132, %v1155
    %v1157 = vpop.f32.mrf.mxu0
    %v1158 = vadd.f32 %v1132, %v1157
    %1159 = vdwg.mxu0
    %v1160 = vpack.c.bf16 %v1055, %v1055
    %v1161 = vpack.c.bf16 %v1057, %v1057
    %v1162 = vpack.c.bf16 %v1115, %v1115
    %v1163 = vpack.c.bf16 %v1117, %v1117
    %v1164 = vpack.c.bf16 %v1120, %v1120
    %v1165 = vpack.c.bf16 %v1122, %v1122
    %v1166 = vpack.c.bf16 %v1156, %v1156
    %v1167 = vpack.c.bf16 %v1158, %v1158
    %v1170 = vunpack.c.l.b16 %v1160
    %v1171 = vunpack.c.l.b16 %v1161
    %v1172 = vpack.c.b16 %v1171, %v1170
    %v1174 = vsel %vm348, %v1172, 0
    %v1177 = vsel %vm352, %v1162, 0
    %1179 = vmatpush.bf16.msra.mxu0 0
    %1180 = vmatpush.bf16.msra.mxu0 0
    %1181 = vmatpush.bf16.msra.mxu0 0
    %1182 = vmatpush.bf16.msra.mxu0 0
    %1183 = vmatpush.bf16.msra.mxu0 0
    %1184 = vmatpush.bf16.msra.mxu0 0
    %1185 = vmatpush.bf16.msra.mxu0 0
    %1186 = vmatpush.bf16.msra.mxu0 %v1177
    %1187 = vmatmul.bf16.gmra.mxu0 %v1174
    %v1188 = vpop.f32.mrf.mxu0
    %v1189 = vadd.f32 0.0, %v1188
    %v1190 = vpop.f32.mrf.mxu0
    %v1191 = vadd.f32 0.0, %v1190
    %1192 = vdwg.mxu0
    %v1193 = vsel %vm370, %v1189, -inf
    %1194 = vmax.xlane.f32.xlu0 %v1193
    %v1195 = vpop.xlane.xlu0 %1194
    %v1196 = vsel %vm374, %v1191, -inf
    %1197 = vmax.xlane.f32.xlu0 %v1196
    %v1198 = vpop.xlane.xlu0 %1197
    %v1199 = vsub.f32 %v1189, %v1195
    %v1200 = vsub.f32 %v1191, %v1198
    %v1201 = vmul.f32 %v1199, 1.442695
    %v1202 = vpow.pop %v1201
    %v1203 = vmul.f32 %v1200, 1.442695
    %v1204 = vpow.pop %v1203
    %v1205 = vsel %vm370, %v1202, 0.0
    %1206 = vadd.xlane.f32.xlu0 %v1205
    %v1207 = vpop.xlane.xlu0 %1206
    %v1208 = vsel %vm374, %v1204, 0.0
    %1209 = vadd.xlane.f32.xlu0 %v1208
    %v1210 = vpop.xlane.xlu0 %1209
    %v1211 = vrcp.pop %v1207
    %v1212 = vrcp.pop %v1210
    %v1213 = vmul.f32 %v1202, %v1211
    %v1214 = vmul.f32 %v1204, %v1212
    %v1215 = vpack.c.bf16 %v1214, %v1213
    %v1218 = vunpack.c.l.b16 %v1166
    %v1219 = vunpack.c.l.b16 %v1167
    %v1220 = vpack.c.b16 %v1219, %v1218
    %v1222 = vsel %vm370, %v1215, 0
    %v1225 = vsel %vm403, %v1220, 0
    %1227 = vmatpush.bf16.msra.mxu0 0
    %1228 = vmatpush.bf16.msra.mxu0 0
    %1229 = vmatpush.bf16.msra.mxu0 0
    %1230 = vmatpush.bf16.msra.mxu0 0
    %1231 = vmatpush.bf16.msra.mxu0 0
    %1232 = vmatpush.bf16.msra.mxu0 0
    %1233 = vmatpush.bf16.msra.mxu0 0
    %1234 = vmatpush.bf16.msra.mxu0 %v1225
    %1235 = vmatmul.bf16.gmra.mxu0 %v1222
    %v1236 = vpop.f32.mrf.mxu0
    %v1237 = vadd.f32 0.0, %v1236
    %v1238 = vpop.f32.mrf.mxu0
    %v1239 = vadd.f32 0.0, %v1238
    %1240 = vdwg.mxu0
    %1241 = vrot.lane.b32.xlu0 %v1172, 120
    %v1242 = vpop.permute.xlu0 %1241
    %v1244 = vsel %vm348, %v1242, 0
    %v1247 = vsel %vm352, %v1163, 0
    %1249 = vmatpush.bf16.msra.mxu0 0
    %1250 = vmatpush.bf16.msra.mxu0 0
    %1251 = vmatpush.bf16.msra.mxu0 0
    %1252 = vmatpush.bf16.msra.mxu0 0
    %1253 = vmatpush.bf16.msra.mxu0 0
    %1254 = vmatpush.bf16.msra.mxu0 0
    %1255 = vmatpush.bf16.msra.mxu0 0
    %1256 = vmatpush.bf16.msra.mxu0 %v1247
    %1257 = vmatmul.bf16.gmra.mxu0 %v1244
    %v1258 = vpop.f32.mrf.mxu0
    %v1259 = vadd.f32 0.0, %v1258
    %v1260 = vpop.f32.mrf.mxu0
    %v1261 = vadd.f32 0.0, %v1260
    %1262 = vdwg.mxu0
    %v1263 = vsel %vm370, %v1259, -inf
    %1264 = vmax.xlane.f32.xlu0 %v1263
    %v1265 = vpop.xlane.xlu0 %1264
    %v1266 = vsel %vm374, %v1261, -inf
    %1267 = vmax.xlane.f32.xlu0 %v1266
    %v1268 = vpop.xlane.xlu0 %1267
    %v1269 = vsub.f32 %v1259, %v1265
    %v1270 = vsub.f32 %v1261, %v1268
    %v1271 = vmul.f32 %v1269, 1.442695
    %v1272 = vpow.pop %v1271
    %v1273 = vmul.f32 %v1270, 1.442695
    %v1274 = vpow.pop %v1273
    %v1275 = vsel %vm370, %v1272, 0.0
    %1276 = vadd.xlane.f32.xlu0 %v1275
    %v1277 = vpop.xlane.xlu0 %1276
    %v1278 = vsel %vm374, %v1274, 0.0
    %1279 = vadd.xlane.f32.xlu0 %v1278
    %v1280 = vpop.xlane.xlu0 %1279
    %v1281 = vrcp.pop %v1277
    %v1282 = vrcp.pop %v1280
    %v1283 = vmul.f32 %v1272, %v1281
    %v1284 = vmul.f32 %v1274, %v1282
    %v1285 = vpack.c.bf16 %v1284, %v1283
    %1286 = vrot.lane.b32.xlu0 %v1220, 120
    %v1287 = vpop.permute.xlu0 %1286
    %v1289 = vsel %vm370, %v1285, 0
    %v1292 = vsel %vm403, %v1287, 0
    %1294 = vmatpush.bf16.msra.mxu0 0
    %1295 = vmatpush.bf16.msra.mxu0 0
    %1296 = vmatpush.bf16.msra.mxu0 0
    %1297 = vmatpush.bf16.msra.mxu0 0
    %1298 = vmatpush.bf16.msra.mxu0 0
    %1299 = vmatpush.bf16.msra.mxu0 0
    %1300 = vmatpush.bf16.msra.mxu0 0
    %1301 = vmatpush.bf16.msra.mxu0 %v1292
    %1302 = vmatmul.bf16.gmra.mxu0 %v1289
    %v1303 = vpop.f32.mrf.mxu0
    %v1304 = vadd.f32 0.0, %v1303
    %v1305 = vpop.f32.mrf.mxu0
    %v1306 = vadd.f32 0.0, %v1305
    %1307 = vdwg.mxu0
    %1308 = vrot.lane.b32.xlu0 %v1172, 112
    %v1309 = vpop.permute.xlu0 %1308
    %v1311 = vsel %vm348, %v1309, 0
    %v1314 = vsel %vm352, %v1164, 0
    %1316 = vmatpush.bf16.msra.mxu0 0
    %1317 = vmatpush.bf16.msra.mxu0 0
    %1318 = vmatpush.bf16.msra.mxu0 0
    %1319 = vmatpush.bf16.msra.mxu0 0
    %1320 = vmatpush.bf16.msra.mxu0 0
    %1321 = vmatpush.bf16.msra.mxu0 0
    %1322 = vmatpush.bf16.msra.mxu0 0
    %1323 = vmatpush.bf16.msra.mxu0 %v1314
    %1324 = vmatmul.bf16.gmra.mxu0 %v1311
    %v1325 = vpop.f32.mrf.mxu0
    %v1326 = vadd.f32 0.0, %v1325
    %v1327 = vpop.f32.mrf.mxu0
    %v1328 = vadd.f32 0.0, %v1327
    %1329 = vdwg.mxu0
    %v1330 = vsel %vm370, %v1326, -inf
    %1331 = vmax.xlane.f32.xlu0 %v1330
    %v1332 = vpop.xlane.xlu0 %1331
    %v1333 = vsel %vm374, %v1328, -inf
    %1334 = vmax.xlane.f32.xlu0 %v1333
    %v1335 = vpop.xlane.xlu0 %1334
    %v1336 = vsub.f32 %v1326, %v1332
    %v1337 = vsub.f32 %v1328, %v1335
    %v1338 = vmul.f32 %v1336, 1.442695
    %v1339 = vpow.pop %v1338
    %v1340 = vmul.f32 %v1337, 1.442695
    %v1341 = vpow.pop %v1340
    %v1342 = vsel %vm370, %v1339, 0.0
    %1343 = vadd.xlane.f32.xlu0 %v1342
    %v1344 = vpop.xlane.xlu0 %1343
    %v1345 = vsel %vm374, %v1341, 0.0
    %1346 = vadd.xlane.f32.xlu0 %v1345
    %v1347 = vpop.xlane.xlu0 %1346
    %v1348 = vrcp.pop %v1344
    %v1349 = vrcp.pop %v1347
    %v1350 = vmul.f32 %v1339, %v1348
    %v1351 = vmul.f32 %v1341, %v1349
    %v1352 = vpack.c.bf16 %v1351, %v1350
    %1353 = vrot.lane.b32.xlu0 %v1220, 112
    %v1354 = vpop.permute.xlu0 %1353
    %v1356 = vsel %vm370, %v1352, 0
    %v1359 = vsel %vm403, %v1354, 0
    %1361 = vmatpush.bf16.msra.mxu0 0
    %1362 = vmatpush.bf16.msra.mxu0 0
    %1363 = vmatpush.bf16.msra.mxu0 0
    %1364 = vmatpush.bf16.msra.mxu0 0
    %1365 = vmatpush.bf16.msra.mxu0 0
    %1366 = vmatpush.bf16.msra.mxu0 0
    %1367 = vmatpush.bf16.msra.mxu0 0
    %1368 = vmatpush.bf16.msra.mxu0 %v1359
    %1369 = vmatmul.bf16.gmra.mxu0 %v1356
    %v1370 = vpop.f32.mrf.mxu0
    %v1371 = vadd.f32 0.0, %v1370
    %v1372 = vpop.f32.mrf.mxu0
    %v1373 = vadd.f32 0.0, %v1372
    %1374 = vdwg.mxu0
    %1375 = vrot.lane.b32.xlu0 %v1172, 104
    %v1376 = vpop.permute.xlu0 %1375
    %v1378 = vsel %vm348, %v1376, 0
    %v1381 = vsel %vm352, %v1165, 0
    %1383 = vmatpush.bf16.msra.mxu0 0
    %1384 = vmatpush.bf16.msra.mxu0 0
    %1385 = vmatpush.bf16.msra.mxu0 0
    %1386 = vmatpush.bf16.msra.mxu0 0
    %1387 = vmatpush.bf16.msra.mxu0 0
    %1388 = vmatpush.bf16.msra.mxu0 0
    %1389 = vmatpush.bf16.msra.mxu0 0
    %1390 = vmatpush.bf16.msra.mxu0 %v1381
    %1391 = vmatmul.bf16.gmra.mxu0 %v1378
    %v1392 = vpop.f32.mrf.mxu0
    %v1393 = vadd.f32 0.0, %v1392
    %v1394 = vpop.f32.mrf.mxu0
    %v1395 = vadd.f32 0.0, %v1394
    %1396 = vdwg.mxu0
    %v1397 = vsel %vm370, %v1393, -inf
    %1398 = vmax.xlane.f32.xlu0 %v1397
    %v1399 = vpop.xlane.xlu0 %1398
    %v1400 = vsel %vm374, %v1395, -inf
    %1401 = vmax.xlane.f32.xlu0 %v1400
    %v1402 = vpop.xlane.xlu0 %1401
    %v1403 = vsub.f32 %v1393, %v1399
    %v1404 = vsub.f32 %v1395, %v1402
    %v1405 = vmul.f32 %v1403, 1.442695
    %v1406 = vpow.pop %v1405
    %v1407 = vmul.f32 %v1404, 1.442695
    %v1408 = vpow.pop %v1407
    %v1409 = vsel %vm370, %v1406, 0.0
    %1410 = vadd.xlane.f32.xlu0 %v1409
    %v1411 = vpop.xlane.xlu0 %1410
    %v1412 = vsel %vm374, %v1408, 0.0
    %1413 = vadd.xlane.f32.xlu0 %v1412
    %v1414 = vpop.xlane.xlu0 %1413
    %v1415 = vrcp.pop %v1411
    %v1416 = vrcp.pop %v1414
    %v1417 = vmul.f32 %v1406, %v1415
    %v1418 = vmul.f32 %v1408, %v1416
    %v1419 = vpack.c.bf16 %v1418, %v1417
    %1420 = vrot.lane.b32.xlu0 %v1220, 104
    %v1421 = vpop.permute.xlu0 %1420
    %v1423 = vsel %vm370, %v1419, 0
    %v1426 = vsel %vm403, %v1421, 0
    %1428 = vmatpush.bf16.msra.mxu0 0
    %1429 = vmatpush.bf16.msra.mxu0 0
    %1430 = vmatpush.bf16.msra.mxu0 0
    %1431 = vmatpush.bf16.msra.mxu0 0
    %1432 = vmatpush.bf16.msra.mxu0 0
    %1433 = vmatpush.bf16.msra.mxu0 0
    %1434 = vmatpush.bf16.msra.mxu0 0
    %1435 = vmatpush.bf16.msra.mxu0 %v1426
    %1436 = vmatmul.bf16.gmra.mxu0 %v1423
    %v1437 = vpop.f32.mrf.mxu0
    %v1438 = vadd.f32 0.0, %v1437
    %v1439 = vpop.f32.mrf.mxu0
    %v1440 = vadd.f32 0.0, %v1439
    %1441 = vdwg.mxu0
    %1444 = vrot.lane.b32.xlu0 %v1304, 8
    %v1445 = vpop.permute.xlu0 %1444
    %1446 = vrot.lane.b32.xlu0 %v1306, 8
    %v1447 = vpop.permute.xlu0 %1446
    %1452 = vrot.lane.b32.xlu0 %v1371, 16
    %v1453 = vpop.permute.xlu0 %1452
    %1454 = vrot.lane.b32.xlu0 %v1373, 16
    %v1455 = vpop.permute.xlu0 %1454
    %1460 = vrot.lane.b32.xlu0 %v1438, 24
    %v1461 = vpop.permute.xlu0 %1460
    %1462 = vrot.lane.b32.xlu0 %v1440, 24
    %v1463 = vpop.permute.xlu0 %1462
    %v1466 = vsel %vm348, %v1237, %v1445
    %v1467 = vsel %vm348, %v1239, %v1447
    %v1468 = vsel %vm648, %v1466, %v1453
    %v1469 = vsel %vm648, %v1467, %v1455
    %v1470 = vsel %vm651, %v1468, %v1461
    %v1471 = vsel %vm651, %v1469, %v1463
    %v1472 = vpack.c.bf16 %v1471, %v1470
    %s1473 = scalar_lea.vmem %s9, 16
    %v1474 = vld [vmem:[%s1473] sm:$0xf]
    %v1475 = vld [vmem:[%s1473 + $0x4] sm:$0xf]
    %v1476 = vld [vmem:[%s1473 + $0x8] sm:$0xf]
    %v1477 = vld [vmem:[%s1473 + $0xc] sm:$0xf]
    %s1478 = scalar_lea.vmem %s10, 1
    %v1479 = vld [vmem:[%s1478] sm:$0x1]
    %v1481 = vperm.slane %v1479, 0
    %v1487 = vunpack.c.l.b16 %v1474
    %v1488 = vunpack.c.l.b16 %v1475
    %v1489 = vunpack.c.l.b16 %v1476
    %v1490 = vunpack.c.l.b16 %v1477
    %v1491 = vpack.c.b16 %v1488, %v1487
    %v1492 = vpack.c.b16 %v1490, %v1489
    %v1496 = vsel %vm137, %v1472, 0
    %1498 = vmatpush.bf16.msra.mxu0 0
    %1499 = vmatpush.bf16.msra.mxu0 0
    %1500 = vmatpush.bf16.msra.mxu0 0
    %1501 = vmatpush.bf16.msra.mxu0 0
    %1502 = vmatpush.bf16.msra.mxu0 0
    %1503 = vmatpush.bf16.msra.mxu0 0
    %1504 = vmatpush.bf16.msra.mxu0 %v1492
    %1505 = vmatpush.bf16.msra.mxu0 %v1491
    %1506 = vmatmul.bf16.gmra.mxu0 %v1496
    %v1507 = vpop.f32.mrf.mxu0
    %v1508 = vadd.f32 %v1481, %v1507
    %v1509 = vpop.f32.mrf.mxu0
    %v1510 = vadd.f32 %v1481, %v1509
    %1511 = vdwg.mxu0
    %v1512 = vadd.f32 %v959, %v1508
    %v1513 = vadd.f32 %v960, %v1510
    %s1514 = scalar_lea.vmem %s11, 1
    %v1515 = vld [vmem:[%s1514] sm:$0x1]
    %s1516 = scalar_lea.vmem %s12, 1
    %v1517 = vld [vmem:[%s1516] sm:$0x1]
    %v1518 = vsel %vm137, %v1512, 0.0
    %1519 = vadd.xlane.f32.xlu0 %v1518
    %v1520 = vpop.xlane.xlu0 %1519
    %v1521 = vsel %vm141, %v1513, 0.0
    %1522 = vadd.xlane.f32.xlu0 %v1521
    %v1523 = vpop.xlane.xlu0 %1522
    %v1524 = vmul.f32 %v1520, %v151
    %v1525 = vmul.f32 %v1523, %v151
    %v1526 = vsub.f32 %v1512, %v1524
    %v1527 = vsub.f32 %v1513, %v1525
    %v1528 = vmul.f32 %v1526, %v1526
    %v1529 = vmul.f32 %v1527, %v1527
    %v1530 = vsel %vm137, %v1528, 0.0
    %1531 = vadd.xlane.f32.xlu0 %v1530
    %v1532 = vpop.xlane.xlu0 %1531
    %v1533 = vsel %vm141, %v1529, 0.0
    %1534 = vadd.xlane.f32.xlu0 %v1533
    %v1535 = vpop.xlane.xlu0 %1534
    %v1536 = vmul.f32 %v1532, %v151
    %v1537 = vmul.f32 %v1535, %v151
    %v1538 = vadd.f32 %v1536, 1e-05
    %v1539 = vadd.f32 %v1537, 1e-05
    %v1540 = vrsqrt.pop %v1538
    %v1541 = vmul.f32 %v1540, %v1538
    %v1542 = vmul.f32 %v1541, %v1540
    %v1543 = vmul.f32 0.5, %v1542
    %v1544 = vsub.f32 1.5, %v1543
    %v1545 = vmul.f32 %v1540, %v1544
    %vm1546 = vweird.f32 %v1538
    %vm1547 = vweird.f32 %v1540
    %vm1548 = vmor %vm1546, %vm1547
    %v1549 = vsel %vm1548, %v1540, %v1545
    %v1550 = vrsqrt.pop %v1539
    %v1551 = vmul.f32 %v1550, %v1539
    %v1552 = vmul.f32 %v1551, %v1550
    %v1553 = vmul.f32 0.5, %v1552
    %v1554 = vsub.f32 1.5, %v1553
    %v1555 = vmul.f32 %v1550, %v1554
    %vm1556 = vweird.f32 %v1539
    %vm1557 = vweird.f32 %v1550
    %vm1558 = vmor %vm1556, %vm1557
    %v1559 = vsel %vm1558, %v1550, %v1555
    %v1560 = vmul.f32 %v1526, %v1549
    %v1561 = vmul.f32 %v1527, %v1559
    %v1563 = vperm.slane %v1515, 0
    %v1565 = vmul.f32 %v1560, %v1563
    %v1566 = vmul.f32 %v1561, %v1563
    %v1568 = vperm.slane %v1517, 0
    %v1570 = vadd.f32 %v1565, %v1568
    %v1571 = vadd.f32 %v1566, %v1568
    %v1572 = vpack.c.bf16 %v1571, %v1570
    %s1573 = scalar_lea.vmem %s13, 16
    %v1574 = vld [vmem:[%s1573] sm:$0xf]
    %v1575 = vld [vmem:[%s1573 + $0x4] sm:$0xf]
    %v1576 = vld [vmem:[%s1573 + $0x8] sm:$0xf]
    %v1577 = vld [vmem:[%s1573 + $0xc] sm:$0xf]
    %s1578 = scalar_lea.vmem [#allocation7], 1
    %v1579 = vld [vmem:[%s1578] sm:$0x1]
    %v1581 = vperm.slane %v1579, 0
    %v1587 = vunpack.c.l.b16 %v1574
    %v1588 = vunpack.c.l.b16 %v1575
    %v1589 = vunpack.c.l.b16 %v1576
    %v1590 = vunpack.c.l.b16 %v1577
    %v1591 = vpack.c.b16 %v1588, %v1587
    %v1592 = vpack.c.b16 %v1590, %v1589
    %v1596 = vsel %vm137, %v1572, 0
    %1598 = vmatpush.bf16.msra.mxu0 0
    %1599 = vmatpush.bf16.msra.mxu0 0
    %1600 = vmatpush.bf16.msra.mxu0 0
    %1601 = vmatpush.bf16.msra.mxu0 0
    %1602 = vmatpush.bf16.msra.mxu0 0
    %1603 = vmatpush.bf16.msra.mxu0 0
    %1604 = vmatpush.bf16.msra.mxu0 %v1592
    %1605 = vmatpush.bf16.msra.mxu0 %v1591
    %1606 = vmatmul.bf16.gmra.mxu0 %v1596
    %v1607 = vpop.f32.mrf.mxu0
    %v1608 = vadd.f32 %v1581, %v1607
    %v1609 = vpop.f32.mrf.mxu0
    %v1610 = vadd.f32 %v1581, %v1609
    %1611 = vdwg.mxu0
    %v1612 = vmul.f32 %v1608, 0.5
    %v1613 = vmul.f32 %v1610, 0.5
    %v1614 = vmul.f32 %v1608, 0.70710677
    %v1615 = vmul.f32 %v1610, 0.70710677
    %v1616 = vmul.f32 %v1614, %v1614
    %v1617 = vmin.f32 16.0, %v1616
    %v1618 = vmul.f32 %v1617, 2.1237322e-06
    %v1619 = vadd.f32 %v1618, 0.00028619796
    %v1620 = vmul.f32 %v1617, %v1619
    %v1621 = vadd.f32 %v1620, 0.0036580483
    %v1622 = vmul.f32 %v1617, %v1621
    %v1623 = vadd.f32 %v1622, 0.05243302
    %v1624 = vmul.f32 %v1617, %v1623
    %v1625 = vadd.f32 %v1624, 0.18741608
    %v1626 = vmul.f32 %v1617, %v1625
    %v1627 = vadd.f32 %v1626, 1.1283791
    %v1628 = vmul.f32 %v1614, %v1627
    %v1629 = vmul.f32 %v1617, 3.8918573e-05
    %v1630 = vadd.f32 %v1629, 0.001143296
    %v1631 = vmul.f32 %v1617, %v1630
    %v1632 = vadd.f32 %v1631, 0.014752088
    %v1633 = vmul.f32 %v1617, %v1632
    %v1634 = vadd.f32 %v1633, 0.112945676
    %v1635 = vmul.f32 %v1617, %v1634
    %v1636 = vadd.f32 %v1635, 0.4994258
    %v1637 = vmul.f32 %v1617, %v1636
    %v1638 = vadd.f32 %v1637, 1.0
    %v1639 = vrcp.pop %v1638
    %v1640 = vmul.f32 %v1638, %v1639
    %v1641 = vsub.f32 1.0, %v1640
    %v1642 = vmul.f32 %v1639, %v1641
    %v1643 = vadd.f32 %v1639, %v1642
    %vm1644 = vweird.f32 %v1638
    %vm1645 = vweird.f32 %v1639
    %vm1646 = vmor %vm1644, %vm1645
    %v1647 = vsel %vm1646, %v1639, %v1643
    %v1648 = vand.u32 2147483647, %v1638
    %vm1649 = vcmp.eq.f32.partialorder %v1648, 8.507059e+37
    %v1650 = vand.u32 %v1638, 2147483648
    %v1651 = vor.u32 1.1754944e-38, %v1650
    %v1652 = vsel %vm1649, %v1651, %v1647
    %v1653 = vmul.f32 %v1628, %v1652
    %v1654 = vmin.f32 %v1653, 1.0
    %v1655 = vmax.f32 %v1654, -1.0
    %v1656 = vmul.f32 %v1615, %v1615
    %v1657 = vmin.f32 16.0, %v1656
    %v1658 = vmul.f32 %v1657, 2.1237322e-06
    %v1659 = vadd.f32 %v1658, 0.00028619796
    %v1660 = vmul.f32 %v1657, %v1659
    %v1661 = vadd.f32 %v1660, 0.0036580483
    %v1662 = vmul.f32 %v1657, %v1661
    %v1663 = vadd.f32 %v1662, 0.05243302
    %v1664 = vmul.f32 %v1657, %v1663
    %v1665 = vadd.f32 %v1664, 0.18741608
    %v1666 = vmul.f32 %v1657, %v1665
    %v1667 = vadd.f32 %v1666, 1.1283791
    %v1668 = vmul.f32 %v1615, %v1667
    %v1669 = vmul.f32 %v1657, 3.8918573e-05
    %v1670 = vadd.f32 %v1669, 0.001143296
    %v1671 = vmul.f32 %v1657, %v1670
    %v1672 = vadd.f32 %v1671, 0.014752088
    %v1673 = vmul.f32 %v1657, %v1672
    %v1674 = vadd.f32 %v1673, 0.112945676
    %v1675 = vmul.f32 %v1657, %v1674
    %v1676 = vadd.f32 %v1675, 0.4994258
    %v1677 = vmul.f32 %v1657, %v1676
    %v1678 = vadd.f32 %v1677, 1.0
    %v1679 = vrcp.pop %v1678
    %v1680 = vmul.f32 %v1678, %v1679
    %v1681 = vsub.f32 1.0, %v1680
    %v1682 = vmul.f32 %v1679, %v1681
    %v1683 = vadd.f32 %v1679, %v1682
    %vm1684 = vweird.f32 %v1678
    %vm1685 = vweird.f32 %v1679
    %vm1686 = vmor %vm1684, %vm1685
    %v1687 = vsel %vm1686, %v1679, %v1683
    %v1688 = vand.u32 2147483647, %v1678
    %vm1689 = vcmp.eq.f32.partialorder %v1688, 8.507059e+37
    %v1690 = vand.u32 %v1678, 2147483648
    %v1691 = vor.u32 1.1754944e-38, %v1690
    %v1692 = vsel %vm1689, %v1691, %v1687
    %v1693 = vmul.f32 %v1668, %v1692
    %v1694 = vmin.f32 %v1693, 1.0
    %v1695 = vmax.f32 %v1694, -1.0
    %v1696 = vadd.f32 %v1655, 1.0
    %v1697 = vadd.f32 %v1695, 1.0
    %v1698 = vmul.f32 %v1612, %v1696
    %v1699 = vmul.f32 %v1613, %v1697
    %v1700 = vpack.c.bf16 %v1699, %v1698
    %s1701 = scalar_lea.vmem %s15, 64
    %v1702 = vld [vmem:[%s1701] sm:$0xf]
    %v1703 = vld [vmem:[%s1701 + $0x4] sm:$0xf]
    %v1704 = vld [vmem:[%s1701 + $0x8] sm:$0xf]
    %v1705 = vld [vmem:[%s1701 + $0xc] sm:$0xf]
    %v1706 = vld [vmem:[%s1701 + $0x10] sm:$0xf]
    %v1707 = vld [vmem:[%s1701 + $0x14] sm:$0xf]
    %v1708 = vld [vmem:[%s1701 + $0x18] sm:$0xf]
    %v1709 = vld [vmem:[%s1701 + $0x1c] sm:$0xf]
    %v1710 = vld [vmem:[%s1701 + $0x20] sm:$0xf]
    %v1711 = vld [vmem:[%s1701 + $0x24] sm:$0xf]
    %v1712 = vld [vmem:[%s1701 + $0x28] sm:$0xf]
    %v1713 = vld [vmem:[%s1701 + $0x2c] sm:$0xf]
    %v1714 = vld [vmem:[%s1701 + $0x30] sm:$0xf]
    %v1715 = vld [vmem:[%s1701 + $0x34] sm:$0xf]
    %v1716 = vld [vmem:[%s1701 + $0x38] sm:$0xf]
    %v1717 = vld [vmem:[%s1701 + $0x3c] sm:$0xf]
    %s1718 = scalar_lea.vmem %s16, 1
    %v1719 = vld [vmem:[%s1718] sm:$0x1]
    %v1721 = vperm.slane %v1719, 0
    %v1739 = vunpack.c.l.b16 %v1702
    %v1740 = vunpack.c.l.b16 %v1703
    %v1741 = vunpack.c.l.b16 %v1704
    %v1742 = vunpack.c.l.b16 %v1705
    %v1743 = vunpack.c.l.b16 %v1706
    %v1744 = vunpack.c.l.b16 %v1707
    %v1745 = vunpack.c.l.b16 %v1708
    %v1746 = vunpack.c.l.b16 %v1709
    %v1747 = vunpack.c.l.b16 %v1710
    %v1748 = vunpack.c.l.b16 %v1711
    %v1749 = vunpack.c.l.b16 %v1712
    %v1750 = vunpack.c.l.b16 %v1713
    %v1751 = vunpack.c.l.b16 %v1714
    %v1752 = vunpack.c.l.b16 %v1715
    %v1753 = vunpack.c.l.b16 %v1716
    %v1754 = vunpack.c.l.b16 %v1717
    %v1755 = vpack.c.b16 %v1740, %v1739
    %v1756 = vpack.c.b16 %v1742, %v1741
    %v1757 = vpack.c.b16 %v1744, %v1743
    %v1758 = vpack.c.b16 %v1746, %v1745
    %v1759 = vpack.c.b16 %v1748, %v1747
    %v1760 = vpack.c.b16 %v1750, %v1749
    %v1761 = vpack.c.b16 %v1752, %v1751
    %v1762 = vpack.c.b16 %v1754, %v1753
    %1771 = vmatpush.bf16.msra.mxu0 %v1762
    %1772 = vmatpush.bf16.msra.mxu0 %v1761
    %1773 = vmatpush.bf16.msra.mxu0 %v1760
    %1774 = vmatpush.bf16.msra.mxu0 %v1759
    %1775 = vmatpush.bf16.msra.mxu0 %v1758
    %1776 = vmatpush.bf16.msra.mxu0 %v1757
    %1777 = vmatpush.bf16.msra.mxu0 %v1756
    %1778 = vmatpush.bf16.msra.mxu0 %v1755
    %1779 = vmatmul.bf16.gmra.mxu0 %v1700
    %v1780 = vpop.f32.mrf.mxu0
    %v1781 = vadd.f32 %v1721, %v1780
    %v1782 = vpop.f32.mrf.mxu0
    %v1783 = vadd.f32 %v1721, %v1782
    %1784 = vdwg.mxu0
    %v1785 = vadd.f32 %v1512, %v1781
    %v1786 = vadd.f32 %v1513, %v1783
    %v1787 = vld [vmem:[%s17] sm:$0x1]
    %v1788 = vld [vmem:[%s18] sm:$0x1]
    %v1789 = vsel %vm137, %v1785, 0.0
    %1790 = vadd.xlane.f32.xlu0 %v1789
    %v1791 = vpop.xlane.xlu0 %1790
    %v1792 = vsel %vm141, %v1786, 0.0
    %1793 = vadd.xlane.f32.xlu0 %v1792
    %v1794 = vpop.xlane.xlu0 %1793
    %v1795 = vmul.f32 %v1791, %v151
    %v1796 = vmul.f32 %v1794, %v151
    %v1797 = vsub.f32 %v1785, %v1795
    %v1798 = vsub.f32 %v1786, %v1796
    %v1799 = vmul.f32 %v1797, %v1797
    %v1800 = vmul.f32 %v1798, %v1798
    %v1801 = vsel %vm137, %v1799, 0.0
    %1802 = vadd.xlane.f32.xlu0 %v1801
    %v1803 = vpop.xlane.xlu0 %1802
    %v1804 = vsel %vm141, %v1800, 0.0
    %1805 = vadd.xlane.f32.xlu0 %v1804
    %v1806 = vpop.xlane.xlu0 %1805
    %v1807 = vmul.f32 %v1803, %v151
    %v1808 = vmul.f32 %v1806, %v151
    %v1809 = vadd.f32 %v1807, 1e-05
    %v1810 = vadd.f32 %v1808, 1e-05
    %v1811 = vrsqrt.pop %v1809
    %v1812 = vmul.f32 %v1811, %v1809
    %v1813 = vmul.f32 %v1812, %v1811
    %v1814 = vmul.f32 0.5, %v1813
    %v1815 = vsub.f32 1.5, %v1814
    %v1816 = vmul.f32 %v1811, %v1815
    %vm1817 = vweird.f32 %v1809
    %vm1818 = vweird.f32 %v1811
    %vm1819 = vmor %vm1817, %vm1818
    %v1820 = vsel %vm1819, %v1811, %v1816
    %v1821 = vrsqrt.pop %v1810
    %v1822 = vmul.f32 %v1821, %v1810
    %v1823 = vmul.f32 %v1822, %v1821
    %v1824 = vmul.f32 0.5, %v1823
    %v1825 = vsub.f32 1.5, %v1824
    %v1826 = vmul.f32 %v1821, %v1825
    %vm1827 = vweird.f32 %v1810
    %vm1828 = vweird.f32 %v1821
    %vm1829 = vmor %vm1827, %vm1828
    %v1830 = vsel %vm1829, %v1821, %v1826
    %v1831 = vmul.f32 %v1797, %v1820
    %v1832 = vmul.f32 %v1798, %v1830
    %v1834 = vperm.slane %v1787, 0
    %v1836 = vmul.f32 %v1831, %v1834
    %v1837 = vmul.f32 %v1832, %v1834
    %v1839 = vperm.slane %v1788, 0
    %v1841 = vadd.f32 %v1836, %v1839
    %v1842 = vadd.f32 %v1837, %v1839
    %v1843 = vpack.c.bf16 %v1842, %v1841
    %v1844 = vld [vmem:[#allocation8] sm:$0xff]
    %v1845 = vld [vmem:[#allocation8 + $0x8] sm:$0xff]
    %v1846 = vld [vmem:[#allocation8 + $0x10] sm:$0xff]
    %v1847 = vld [vmem:[#allocation8 + $0x18] sm:$0xff]
    %v1848 = vld [vmem:[#allocation8 + $0x20] sm:$0xff]
    %v1849 = vld [vmem:[#allocation8 + $0x28] sm:$0xff]
    %v1850 = vld [vmem:[#allocation8 + $0x30] sm:$0xff]
    %v1851 = vld [vmem:[#allocation8 + $0x38] sm:$0xff]
    %v1852 = vld [vmem:[#allocation8 + $0x40] sm:$0xff]
    %v1853 = vld [vmem:[#allocation8 + $0x48] sm:$0xff]
    %v1854 = vld [vmem:[#allocation8 + $0x50] sm:$0xff]
    %v1855 = vld [vmem:[#allocation8 + $0x58] sm:$0xff]
    %v1856 = vld [vmem:[#allocation8 + $0x60] sm:$0xff]
    %v1857 = vld [vmem:[#allocation8 + $0x68] sm:$0xff]
    %v1858 = vld [vmem:[#allocation8 + $0x70] sm:$0xff]
    %v1859 = vld [vmem:[#allocation8 + $0x78] sm:$0xff]
    %v1860 = vld [vmem:[#allocation8 + $0x80] sm:$0xff]
    %v1861 = vld [vmem:[#allocation8 + $0x88] sm:$0xff]
    %v1862 = vld [vmem:[#allocation8 + $0x90] sm:$0xff]
    %v1863 = vld [vmem:[#allocation8 + $0x98] sm:$0xff]
    %v1864 = vld [vmem:[#allocation8 + $0xa0] sm:$0xff]
    %v1865 = vld [vmem:[#allocation8 + $0xa8] sm:$0xff]
    %v1866 = vld [vmem:[#allocation8 + $0xb0] sm:$0xff]
    %v1867 = vld [vmem:[#allocation8 + $0xb8] sm:$0xff]
    %v1868 = vld [vmem:[#allocation8 + $0xc0] sm:$0xff]
    %v1869 = vld [vmem:[#allocation8 + $0xc8] sm:$0xff]
    %v1870 = vld [vmem:[#allocation8 + $0xd0] sm:$0xff]
    %v1871 = vld [vmem:[#allocation8 + $0xd8] sm:$0xff]
    %v1872 = vld [vmem:[#allocation8 + $0xe0] sm:$0xff]
    %v1873 = vld [vmem:[#allocation8 + $0xe8] sm:$0xff]
    %v1874 = vld [vmem:[#allocation8 + $0xf0] sm:$0xff]
    %v1875 = vld [vmem:[#allocation8 + $0xf8] sm:$0xff]
    %v1876 = vld [vmem:[%s20] sm:$0xff]
    %v1877 = vld [vmem:[%s20 + $0x8] sm:$0xff]
    %v1880 = vperm.slane %v1876, 0
    %v1881 = vperm.slane %v1876, 1
    %v1882 = vperm.slane %v1876, 2
    %v1883 = vperm.slane %v1876, 3
    %v1884 = vperm.slane %v1876, 4
    %v1885 = vperm.slane %v1876, 5
    %v1886 = vperm.slane %v1876, 6
    %v1887 = vperm.slane %v1876, 7
    %v1888 = vperm.slane %v1877, 0
    %v1889 = vperm.slane %v1877, 1
    %v1890 = vperm.slane %v1877, 2
    %v1891 = vperm.slane %v1877, 3
    %v1892 = vperm.slane %v1877, 4
    %v1893 = vperm.slane %v1877, 5
    %v1894 = vperm.slane %v1877, 6
    %v1895 = vperm.slane %v1877, 7
    %v1944 = vunpack.c.l.b16 %v1844
    %v1945 = vunpack.c.h.b16 %v1844
    %v1946 = vunpack.c.l.b16 %v1845
    %v1947 = vunpack.c.h.b16 %v1845
    %v1948 = vunpack.c.l.b16 %v1846
    %v1949 = vunpack.c.h.b16 %v1846
    %v1950 = vunpack.c.l.b16 %v1847
    %v1951 = vunpack.c.h.b16 %v1847
    %v1952 = vunpack.c.l.b16 %v1848
    %v1953 = vunpack.c.h.b16 %v1848
    %v1954 = vunpack.c.l.b16 %v1849
    %v1955 = vunpack.c.h.b16 %v1849
    %v1956 = vunpack.c.l.b16 %v1850
    %v1957 = vunpack.c.h.b16 %v1850
    %v1958 = vunpack.c.l.b16 %v1851
    %v1959 = vunpack.c.h.b16 %v1851
    %v1960 = vunpack.c.l.b16 %v1852
    %v1961 = vunpack.c.h.b16 %v1852
    %v1962 = vunpack.c.l.b16 %v1853
    %v1963 = vunpack.c.h.b16 %v1853
    %v1964 = vunpack.c.l.b16 %v1854
    %v1965 = vunpack.c.h.b16 %v1854
    %v1966 = vunpack.c.l.b16 %v1855
    %v1967 = vunpack.c.h.b16 %v1855
    %v1968 = vunpack.c.l.b16 %v1856
    %v1969 = vunpack.c.h.b16 %v1856
    %v1970 = vunpack.c.l.b16 %v1857
    %v1971 = vunpack.c.h.b16 %v1857
    %v1972 = vunpack.c.l.b16 %v1858
    %v1973 = vunpack.c.h.b16 %v1858
    %v1974 = vunpack.c.l.b16 %v1859
    %v1975 = vunpack.c.h.b16 %v1859
    %v1976 = vunpack.c.l.b16 %v1860
    %v1977 = vunpack.c.h.b16 %v1860
    %v1978 = vunpack.c.l.b16 %v1861
    %v1979 = vunpack.c.h.b16 %v1861
    %v1980 = vunpack.c.l.b16 %v1862
    %v1981 = vunpack.c.h.b16 %v1862
    %v1982 = vunpack.c.l.b16 %v1863
    %v1983 = vunpack.c.h.b16 %v1863
    %v1984 = vunpack.c.l.b16 %v1864
    %v1985 = vunpack.c.h.b16 %v1864
    %v1986 = vunpack.c.l.b16 %v1865
    %v1987 = vunpack.c.h.b16 %v1865
    %v1988 = vunpack.c.l.b16 %v1866
    %v1989 = vunpack.c.h.b16 %v1866
    %v1990 = vunpack.c.l.b16 %v1867
    %v1991 = vunpack.c.h.b16 %v1867
    %v1992 = vunpack.c.l.b16 %v1868
    %v1993 = vunpack.c.h.b16 %v1868
    %v1994 = vunpack.c.l.b16 %v1869
    %v1995 = vunpack.c.h.b16 %v1869
    %v1996 = vunpack.c.l.b16 %v1870
    %v1997 = vunpack.c.h.b16 %v1870
    %v1998 = vunpack.c.l.b16 %v1871
    %v1999 = vunpack.c.h.b16 %v1871
    %v2000 = vunpack.c.l.b16 %v1872
    %v2001 = vunpack.c.h.b16 %v1872
    %v2002 = vunpack.c.l.b16 %v1873
    %v2003 = vunpack.c.h.b16 %v1873
    %v2004 = vunpack.c.l.b16 %v1874
    %v2005 = vunpack.c.h.b16 %v1874
    %v2006 = vunpack.c.l.b16 %v1875
    %v2007 = vunpack.c.h.b16 %v1875
    %v2008 = vpack.c.b16 %v1960, %v1944
    %v2009 = vpack.c.b16 %v1961, %v1945
    %v2010 = vpack.c.b16 %v1962, %v1946
    %v2011 = vpack.c.b16 %v1963, %v1947
    %v2012 = vpack.c.b16 %v1964, %v1948
    %v2013 = vpack.c.b16 %v1965, %v1949
    %v2014 = vpack.c.b16 %v1966, %v1950
    %v2015 = vpack.c.b16 %v1967, %v1951
    %v2016 = vpack.c.b16 %v1968, %v1952
    %v2017 = vpack.c.b16 %v1969, %v1953
    %v2018 = vpack.c.b16 %v1970, %v1954
    %v2019 = vpack.c.b16 %v1971, %v1955
    %v2020 = vpack.c.b16 %v1972, %v1956
    %v2021 = vpack.c.b16 %v1973, %v1957
    %v2022 = vpack.c.b16 %v1974, %v1958
    %v2023 = vpack.c.b16 %v1975, %v1959
    %v2024 = vpack.c.b16 %v1992, %v1976
    %v2025 = vpack.c.b16 %v1993, %v1977
    %v2026 = vpack.c.b16 %v1994, %v1978
    %v2027 = vpack.c.b16 %v1995, %v1979
    %v2028 = vpack.c.b16 %v1996, %v1980
    %v2029 = vpack.c.b16 %v1997, %v1981
    %v2030 = vpack.c.b16 %v1998, %v1982
    %v2031 = vpack.c.b16 %v1999, %v1983
    %v2032 = vpack.c.b16 %v2000, %v1984
    %v2033 = vpack.c.b16 %v2001, %v1985
    %v2034 = vpack.c.b16 %v2002, %v1986
    %v2035 = vpack.c.b16 %v2003, %v1987
    %v2036 = vpack.c.b16 %v2004, %v1988
    %v2037 = vpack.c.b16 %v2005, %v1989
    %v2038 = vpack.c.b16 %v2006, %v1990
    %v2039 = vpack.c.b16 %v2007, %v1991
    %v2073 = vsel %vm137, %v1843, 0
    %2075 = vmatpush.bf16.msra.mxu0 0
    %2076 = vmatpush.bf16.msra.mxu0 0
    %2077 = vmatpush.bf16.msra.mxu0 0
    %2078 = vmatpush.bf16.msra.mxu0 0
    %2079 = vmatpush.bf16.msra.mxu0 0
    %2080 = vmatpush.bf16.msra.mxu0 0
    %2081 = vmatpush.bf16.msra.mxu0 %v2024
    %2082 = vmatpush.bf16.msra.mxu0 %v2008
    %2083 = vmatmul.bf16.gmra.mxu0 %v2073
    %v2084 = vpop.f32.mrf.mxu0
    %v2085 = vadd.f32 %v1880, %v2084
    %v2086 = vpop.f32.mrf.mxu0
    %v2087 = vadd.f32 %v1880, %v2086
    %2088 = vdwg.mxu0
    %2089 = vmatpush.bf16.msra.mxu0 0
    %2090 = vmatpush.bf16.msra.mxu0 0
    %2091 = vmatpush.bf16.msra.mxu0 0
    %2092 = vmatpush.bf16.msra.mxu0 0
    %2093 = vmatpush.bf16.msra.mxu0 0
    %2094 = vmatpush.bf16.msra.mxu0 0
    %2095 = vmatpush.bf16.msra.mxu0 %v2025
    %2096 = vmatpush.bf16.msra.mxu0 %v2009
    %2097 = vmatmul.bf16.gmra.mxu0 %v2073
    %v2098 = vpop.f32.mrf.mxu0
    %v2099 = vadd.f32 %v1881, %v2098
    %v2100 = vpop.f32.mrf.mxu0
    %v2101 = vadd.f32 %v1881, %v2100
    %2102 = vdwg.mxu0
    %2103 = vmatpush.bf16.msra.mxu0 0
    %2104 = vmatpush.bf16.msra.mxu0 0
    %2105 = vmatpush.bf16.msra.mxu0 0
    %2106 = vmatpush.bf16.msra.mxu0 0
    %2107 = vmatpush.bf16.msra.mxu0 0
    %2108 = vmatpush.bf16.msra.mxu0 0
    %2109 = vmatpush.bf16.msra.mxu0 %v2026
    %2110 = vmatpush.bf16.msra.mxu0 %v2010
    %2111 = vmatmul.bf16.gmra.mxu0 %v2073
    %v2112 = vpop.f32.mrf.mxu0
    %v2113 = vadd.f32 %v1882, %v2112
    %v2114 = vpop.f32.mrf.mxu0
    %v2115 = vadd.f32 %v1882, %v2114
    %2116 = vdwg.mxu0
    %2117 = vmatpush.bf16.msra.mxu0 0
    %2118 = vmatpush.bf16.msra.mxu0 0
    %2119 = vmatpush.bf16.msra.mxu0 0
    %2120 = vmatpush.bf16.msra.mxu0 0
    %2121 = vmatpush.bf16.msra.mxu0 0
    %2122 = vmatpush.bf16.msra.mxu0 0
    %2123 = vmatpush.bf16.msra.mxu0 %v2027
    %2124 = vmatpush.bf16.msra.mxu0 %v2011
    %2125 = vmatmul.bf16.gmra.mxu0 %v2073
    %v2126 = vpop.f32.mrf.mxu0
    %v2127 = vadd.f32 %v1883, %v2126
    %v2128 = vpop.f32.mrf.mxu0
    %v2129 = vadd.f32 %v1883, %v2128
    %2130 = vdwg.mxu0
    %2131 = vmatpush.bf16.msra.mxu0 0
    %2132 = vmatpush.bf16.msra.mxu0 0
    %2133 = vmatpush.bf16.msra.mxu0 0
    %2134 = vmatpush.bf16.msra.mxu0 0
    %2135 = vmatpush.bf16.msra.mxu0 0
    %2136 = vmatpush.bf16.msra.mxu0 0
    %2137 = vmatpush.bf16.msra.mxu0 %v2028
    %2138 = vmatpush.bf16.msra.mxu0 %v2012
    %2139 = vmatmul.bf16.gmra.mxu0 %v2073
    %v2140 = vpop.f32.mrf.mxu0
    %v2141 = vadd.f32 %v1884, %v2140
    %v2142 = vpop.f32.mrf.mxu0
    %v2143 = vadd.f32 %v1884, %v2142
    %2144 = vdwg.mxu0
    %2145 = vmatpush.bf16.msra.mxu0 0
    %2146 = vmatpush.bf16.msra.mxu0 0
    %2147 = vmatpush.bf16.msra.mxu0 0
    %2148 = vmatpush.bf16.msra.mxu0 0
    %2149 = vmatpush.bf16.msra.mxu0 0
    %2150 = vmatpush.bf16.msra.mxu0 0
    %2151 = vmatpush.bf16.msra.mxu0 %v2029
    %2152 = vmatpush.bf16.msra.mxu0 %v2013
    %2153 = vmatmul.bf16.gmra.mxu0 %v2073
    %v2154 = vpop.f32.mrf.mxu0
    %v2155 = vadd.f32 %v1885, %v2154
    %v2156 = vpop.f32.mrf.mxu0
    %v2157 = vadd.f32 %v1885, %v2156
    %2158 = vdwg.mxu0
    %2159 = vmatpush.bf16.msra.mxu0 0
    %2160 = vmatpush.bf16.msra.mxu0 0
    %2161 = vmatpush.bf16.msra.mxu0 0
    %2162 = vmatpush.bf16.msra.mxu0 0
    %2163 = vmatpush.bf16.msra.mxu0 0
    %2164 = vmatpush.bf16.msra.mxu0 0
    %2165 = vmatpush.bf16.msra.mxu0 %v2030
    %2166 = vmatpush.bf16.msra.mxu0 %v2014
    %2167 = vmatmul.bf16.gmra.mxu0 %v2073
    %v2168 = vpop.f32.mrf.mxu0
    %v2169 = vadd.f32 %v1886, %v2168
    %v2170 = vpop.f32.mrf.mxu0
    %v2171 = vadd.f32 %v1886, %v2170
    %2172 = vdwg.mxu0
    %2173 = vmatpush.bf16.msra.mxu0 0
    %2174 = vmatpush.bf16.msra.mxu0 0
    %2175 = vmatpush.bf16.msra.mxu0 0
    %2176 = vmatpush.bf16.msra.mxu0 0
    %2177 = vmatpush.bf16.msra.mxu0 0
    %2178 = vmatpush.bf16.msra.mxu0 0
    %2179 = vmatpush.bf16.msra.mxu0 %v2031
    %2180 = vmatpush.bf16.msra.mxu0 %v2015
    %2181 = vmatmul.bf16.gmra.mxu0 %v2073
    %v2182 = vpop.f32.mrf.mxu0
    %v2183 = vadd.f32 %v1887, %v2182
    %v2184 = vpop.f32.mrf.mxu0
    %v2185 = vadd.f32 %v1887, %v2184
    %2186 = vdwg.mxu0
    %2187 = vmatpush.bf16.msra.mxu0 0
    %2188 = vmatpush.bf16.msra.mxu0 0
    %2189 = vmatpush.bf16.msra.mxu0 0
    %2190 = vmatpush.bf16.msra.mxu0 0
    %2191 = vmatpush.bf16.msra.mxu0 0
    %2192 = vmatpush.bf16.msra.mxu0 0
    %2193 = vmatpush.bf16.msra.mxu0 %v2032
    %2194 = vmatpush.bf16.msra.mxu0 %v2016
    %2195 = vmatmul.bf16.gmra.mxu0 %v2073
    %v2196 = vpop.f32.mrf.mxu0
    %v2197 = vadd.f32 %v1888, %v2196
    %v2198 = vpop.f32.mrf.mxu0
    %v2199 = vadd.f32 %v1888, %v2198
    %2200 = vdwg.mxu0
    %2201 = vmatpush.bf16.msra.mxu0 0
    %2202 = vmatpush.bf16.msra.mxu0 0
    %2203 = vmatpush.bf16.msra.mxu0 0
    %2204 = vmatpush.bf16.msra.mxu0 0
    %2205 = vmatpush.bf16.msra.mxu0 0
    %2206 = vmatpush.bf16.msra.mxu0 0
    %2207 = vmatpush.bf16.msra.mxu0 %v2033
    %2208 = vmatpush.bf16.msra.mxu0 %v2017
    %2209 = vmatmul.bf16.gmra.mxu0 %v2073
    %v2210 = vpop.f32.mrf.mxu0
    %v2211 = vadd.f32 %v1889, %v2210
    %v2212 = vpop.f32.mrf.mxu0
    %v2213 = vadd.f32 %v1889, %v2212
    %2214 = vdwg.mxu0
    %2215 = vmatpush.bf16.msra.mxu0 0
    %2216 = vmatpush.bf16.msra.mxu0 0
    %2217 = vmatpush.bf16.msra.mxu0 0
    %2218 = vmatpush.bf16.msra.mxu0 0
    %2219 = vmatpush.bf16.msra.mxu0 0
    %2220 = vmatpush.bf16.msra.mxu0 0
    %2221 = vmatpush.bf16.msra.mxu0 %v2034
    %2222 = vmatpush.bf16.msra.mxu0 %v2018
    %2223 = vmatmul.bf16.gmra.mxu0 %v2073
    %v2224 = vpop.f32.mrf.mxu0
    %v2225 = vadd.f32 %v1890, %v2224
    %v2226 = vpop.f32.mrf.mxu0
    %v2227 = vadd.f32 %v1890, %v2226
    %2228 = vdwg.mxu0
    %2229 = vmatpush.bf16.msra.mxu0 0
    %2230 = vmatpush.bf16.msra.mxu0 0
    %2231 = vmatpush.bf16.msra.mxu0 0
    %2232 = vmatpush.bf16.msra.mxu0 0
    %2233 = vmatpush.bf16.msra.mxu0 0
    %2234 = vmatpush.bf16.msra.mxu0 0
    %2235 = vmatpush.bf16.msra.mxu0 %v2035
    %2236 = vmatpush.bf16.msra.mxu0 %v2019
    %2237 = vmatmul.bf16.gmra.mxu0 %v2073
    %v2238 = vpop.f32.mrf.mxu0
    %v2239 = vadd.f32 %v1891, %v2238
    %v2240 = vpop.f32.mrf.mxu0
    %v2241 = vadd.f32 %v1891, %v2240
    %2242 = vdwg.mxu0
    %2243 = vmatpush.bf16.msra.mxu0 0
    %2244 = vmatpush.bf16.msra.mxu0 0
    %2245 = vmatpush.bf16.msra.mxu0 0
    %2246 = vmatpush.bf16.msra.mxu0 0
    %2247 = vmatpush.bf16.msra.mxu0 0
    %2248 = vmatpush.bf16.msra.mxu0 0
    %2249 = vmatpush.bf16.msra.mxu0 %v2036
    %2250 = vmatpush.bf16.msra.mxu0 %v2020
    %2251 = vmatmul.bf16.gmra.mxu0 %v2073
    %v2252 = vpop.f32.mrf.mxu0
    %v2253 = vadd.f32 %v1892, %v2252
    %v2254 = vpop.f32.mrf.mxu0
    %v2255 = vadd.f32 %v1892, %v2254
    %2256 = vdwg.mxu0
    %2257 = vmatpush.bf16.msra.mxu0 0
    %2258 = vmatpush.bf16.msra.mxu0 0
    %2259 = vmatpush.bf16.msra.mxu0 0
    %2260 = vmatpush.bf16.msra.mxu0 0
    %2261 = vmatpush.bf16.msra.mxu0 0
    %2262 = vmatpush.bf16.msra.mxu0 0
    %2263 = vmatpush.bf16.msra.mxu0 %v2037
    %2264 = vmatpush.bf16.msra.mxu0 %v2021
    %2265 = vmatmul.bf16.gmra.mxu0 %v2073
    %v2266 = vpop.f32.mrf.mxu0
    %v2267 = vadd.f32 %v1893, %v2266
    %v2268 = vpop.f32.mrf.mxu0
    %v2269 = vadd.f32 %v1893, %v2268
    %2270 = vdwg.mxu0
    %2271 = vmatpush.bf16.msra.mxu0 0
    %2272 = vmatpush.bf16.msra.mxu0 0
    %2273 = vmatpush.bf16.msra.mxu0 0
    %2274 = vmatpush.bf16.msra.mxu0 0
    %2275 = vmatpush.bf16.msra.mxu0 0
    %2276 = vmatpush.bf16.msra.mxu0 0
    %2277 = vmatpush.bf16.msra.mxu0 %v2038
    %2278 = vmatpush.bf16.msra.mxu0 %v2022
    %2279 = vmatmul.bf16.gmra.mxu0 %v2073
    %v2280 = vpop.f32.mrf.mxu0
    %v2281 = vadd.f32 %v1894, %v2280
    %v2282 = vpop.f32.mrf.mxu0
    %v2283 = vadd.f32 %v1894, %v2282
    %2284 = vdwg.mxu0
    %2285 = vmatpush.bf16.msra.mxu0 0
    %2286 = vmatpush.bf16.msra.mxu0 0
    %2287 = vmatpush.bf16.msra.mxu0 0
    %2288 = vmatpush.bf16.msra.mxu0 0
    %2289 = vmatpush.bf16.msra.mxu0 0
    %2290 = vmatpush.bf16.msra.mxu0 0
    %2291 = vmatpush.bf16.msra.mxu0 %v2039
    %2292 = vmatpush.bf16.msra.mxu0 %v2023
    %2293 = vmatmul.bf16.gmra.mxu0 %v2073
    %v2294 = vpop.f32.mrf.mxu0
    %v2295 = vadd.f32 %v1895, %v2294
    %v2296 = vpop.f32.mrf.mxu0
    %v2297 = vadd.f32 %v1895, %v2296
    %2298 = vdwg.mxu0
    %2299 = vst [vmem:[#allocation10] sm:$0xff] %v2085
    %2300 = vst [vmem:[#allocation10 + $0x8] sm:$0xff] %v2099
    %2301 = vst [vmem:[#allocation10 + $0x10] sm:$0xff] %v2113
    %2302 = vst [vmem:[#allocation10 + $0x18] sm:$0xff] %v2127
    %2303 = vst [vmem:[#allocation10 + $0x20] sm:$0xff] %v2141
    %2304 = vst [vmem:[#allocation10 + $0x28] sm:$0xff] %v2155
    %2305 = vst [vmem:[#allocation10 + $0x30] sm:$0xff] %v2169
    %2306 = vst [vmem:[#allocation10 + $0x38] sm:$0xff] %v2183
    %2307 = vst [vmem:[#allocation10 + $0x40] sm:$0xff] %v2197
    %2308 = vst [vmem:[#allocation10 + $0x48] sm:$0xff] %v2211
    %2309 = vst [vmem:[#allocation10 + $0x50] sm:$0xff] %v2225
    %2310 = vst [vmem:[#allocation10 + $0x58] sm:$0xff] %v2239
    %2311 = vst [vmem:[#allocation10 + $0x60] sm:$0xff] %v2253
    %2312 = vst [vmem:[#allocation10 + $0x68] sm:$0xff] %v2267
    %2313 = vst [vmem:[#allocation10 + $0x70] sm:$0xff] %v2281
    %2314 = vst [vmem:[#allocation10 + $0x78] sm:$0xff] %v2295
    %2315 = vst [vmem:[#allocation10 + $0x80] sm:$0xf] %v2087
    %2316 = vst [vmem:[#allocation10 + $0x88] sm:$0xf] %v2101
    %2317 = vst [vmem:[#allocation10 + $0x90] sm:$0xf] %v2115
    %2318 = vst [vmem:[#allocation10 + $0x98] sm:$0xf] %v2129
    %2319 = vst [vmem:[#allocation10 + $0xa0] sm:$0xf] %v2143
    %2320 = vst [vmem:[#allocation10 + $0xa8] sm:$0xf] %v2157
    %2321 = vst [vmem:[#allocation10 + $0xb0] sm:$0xf] %v2171
    %2322 = vst [vmem:[#allocation10 + $0xb8] sm:$0xf] %v2185
    %2323 = vst [vmem:[#allocation10 + $0xc0] sm:$0xf] %v2199
    %2324 = vst [vmem:[#allocation10 + $0xc8] sm:$0xf] %v2213
    %2325 = vst [vmem:[#allocation10 + $0xd0] sm:$0xf] %v2227
    %2326 = vst [vmem:[#allocation10 + $0xd8] sm:$0xf] %v2241
    %2327 = vst [vmem:[#allocation10 + $0xe0] sm:$0xf] %v2255
    %2328 = vst [vmem:[#allocation10 + $0xe8] sm:$0xf] %v2269
    %2329 = vst [vmem:[#allocation10 + $0xf0] sm:$0xf] %v2283
    %2330 = vst [vmem:[#allocation10 + $0xf8] sm:$0xf] %v2297
    // Predicated region
    $region102: #{tpu_custom_call.1} parent=1 // pred_check
      _
    $region103: #{tpu_custom_call.1} parent=1 // pred_check_branch
      %2332 = sbr.rel (0) target = $region105
    $region104: #{tpu_custom_call.1} parent=1 // pred_region
      %2334 = vsyncadd [#allocation4], 0
      %s2335 = sshll.u32 [#allocation10], 4
      %s2336 = int_to_ptr.vmem [resolvable:$true] %s2335
      %s2337 = sshll.u32 %s21, 4
      %s2338 = int_to_ptr.hbm [resolvable:$true] %s2337
      %2343 = dma.vmem_to_hbm [thread:$0]  %s2336, 4096, %s2338, [#allocation4], 2048, 2048, 128
    $region105: #{tpu_custom_call.1} parent=1 // pred_fallthru
      _
    // Predicated region
    $region106: #{tpu_custom_call.1} parent=1 // pred_check
      _
    $region107: #{tpu_custom_call.1} parent=1 // pred_check_branch
      %2345 = sbr.rel (0) target = $region109
    $region108: #{tpu_custom_call.1} parent=1 // pred_region
      %2347 = dma.done [#allocation4], 4096
    $region109: #{tpu_custom_call.1} parent=1 // pred_fallthru
      _
    %2348 = vsyncpa [#allocation3], 1
    %2349 = vsyncpa [#allocation6], 1
    %2350 = vsyncpa [#allocation9], 1
    %2351 = vsyncpa [#allocation4], 1

</llo_original>
